<compile_context>
chip_gen: v5e
topology: v5e:2x2
jax: 0.10.0
libtpu: 0.0.40
codegen_flags: <defaults>
</compile_context>

<pallas_src>
import jax
import jax.numpy as jnp
from jax.experimental import pallas as pl
from jax.experimental.pallas import tpu as pltpu

T = 9            # input_seq_len
H = 32           # lstm_hidden_size
NUM_CLASSES = 3
LANES = 256      # packed-parameter buffer width (both fwd|bwd gate halves)


# ----------------------------------------------------------------------------
# Packed-parameter layout (static, 8-row aligned, last dim = 256 lanes).
# ----------------------------------------------------------------------------
def _round8(n):
    return ((n + 7) // 8) * 8


_W_ENTRIES = (                       # (name, rows) -- matrices stored (in, out)
    ("t1w", 3), ("t2w0", 16), ("t2w1", 16), ("t2w2", 16),
    ("s1w", 3), ("l1w", 2),
    ("wih0", 48), ("whh0", 64),      # layer-1: [fwd|bwd] cols; whh block-diag
    ("wih1", 64), ("whh1", 64),      # layer-2: [fwd|bwd] cols; whh block-diag
    ("aw", 64),                      # attention Linear(64,1) as a column
    ("ta1w", 8), ("ta2w", 32), ("c1w", 80), ("c2w", 40),
)
W_OFF = {}
_off = 0
for _name, _rows in _W_ENTRIES:
    W_OFF[_name] = _off
    _off += _round8(_rows)
W_NROWS = _off                        # 536

_V_NAMES = ("t1s", "t1h", "t2s", "t2h", "s1s", "s1h", "l1s", "l1h",
            "b0", "b1", "ta1b", "ta2b", "c1b", "c2b")
V_ROW = {n: i for i, n in enumerate(_V_NAMES)}
V_NROWS = _round8(len(_V_NAMES))      # 16


# ----------------------------------------------------------------------------
# Kernel
# ----------------------------------------------------------------------------
def hybrid_kernel(x_ref, w_ref, v_ref, out_ref, out1_scr, out2_scr):
    f32 = jnp.float32
    bf16 = jnp.bfloat16
    x = x_ref[...]                                    # (B, T), B multiple of 8
    B = x.shape[0]

    def W(name, rows, cols, roff=0, coff=0):          # (rows, cols) weight slab
        off = W_OFF[name] + roff
        return w_ref[off:off + rows, coff:coff + cols]

    def V(name, cols, coff=0):                        # (1, cols) row vector
        r = V_ROW[name]
        return v_ref[r:r + 1, coff:coff + cols]

    zc = jnp.zeros((B, 1), f32)
    z16 = jnp.zeros((B, 16), f32)

    # ---- conv window matrices, time stacked on sublanes (rows t*B:(t+1)*B) ----
    xpad = jnp.concatenate([zc, x, zc], axis=1)                               # (B, T+2)
    xw_t = jnp.concatenate([xpad[:, t:t + 3] for t in range(T)], axis=0)      # (T*B, 3)
    slopes = x[:, 1:] - x[:, :-1]                                             # (B, T-1)
    spad = jnp.concatenate([zc, slopes, zc], axis=1)                          # (B, T+1)
    xw_s = jnp.concatenate([spad[:, t:t + 3] for t in range(T - 1)], axis=0)  # ((T-1)*B, 3)
    xw_l = jnp.concatenate([x[:, t:t + 2] for t in range(T - 1)], axis=0)     # ((T-1)*B, 2)

    # ---- trend_net: conv1 -> BN -> ReLU -> conv2 -> BN -> ReLU (BN folded) ----
    h1 = jnp.maximum(jnp.dot(xw_t, W("t1w", 3, 16), preferred_element_type=f32)
                     * V("t1s", 16) + V("t1h", 16), 0.0)                      # (T*B, 16)
    h1_m1 = jnp.concatenate([z16, h1[:(T - 1) * B]], axis=0)                  # h1[t-1]
    h1_p1 = jnp.concatenate([h1[B:], z16], axis=0)                            # h1[t+1]
    trend = (jnp.dot(h1_m1, W("t2w0", 16, 16), preferred_element_type=f32)
             + jnp.dot(h1, W("t2w1", 16, 16), preferred_element_type=f32)
             + jnp.dot(h1_p1, W("t2w2", 16, 16), preferred_element_type=f32))
    trend = jnp.maximum(trend * V("t2s", 16) + V("t2h", 16), 0.0)             # (T*B, 16)

    # ---- slope_net / local_net + right zero pad in time (F.pad((0,1))) ----
    sl = jnp.maximum(jnp.dot(xw_s, W("s1w", 3, 16), preferred_element_type=f32)
                     * V("s1s", 16) + V("s1h", 16), 0.0)
    sl = jnp.concatenate([sl, z16], axis=0)                                   # (T*B, 16)
    lc = jnp.maximum(jnp.dot(xw_l, W("l1w", 2, 16), preferred_element_type=f32)
                     * V("l1s", 16) + V("l1h", 16), 0.0)
    lc = jnp.concatenate([lc, z16], axis=0)                                   # (T*B, 16)

    # ---- layer-1 input projection, fused [fwd | bwd] gates in 256 lanes ----
    # bf16 operands, f32 accumulation; bias added in f32.
    xp1 = (jnp.dot(trend.astype(bf16), W("wih0", 16, 256, roff=0).astype(bf16),
                   preferred_element_type=f32)
           + jnp.dot(sl.astype(bf16), W("wih0", 16, 256, roff=16).astype(bf16),
                     preferred_element_type=f32)
           + jnp.dot(lc.astype(bf16), W("wih0", 16, 256, roff=32).astype(bf16),
                     preferred_element_type=f32)
           + V("b0", 256))                                                    # (T*B, 256)

    # ---- fused bidirectional LSTM recurrence ----
    # Packed gate columns per direction: [i, f, o, 2*g]; ONE sigmoid over the
    # fused (B,256) gates (tanh(g) = 2*sigmoid(2g) - 1) and ONE tanh over the
    # lane-concat [cf|cb]. Whh is a block-diagonal (64,256) so one MXU matmul
    # per serial step covers both directions.
    def bilstm(xp_all, whh_bd, out_scr):
        h = jnp.zeros((B, 2 * H), f32)                # [hf | hb]
        cf = jnp.zeros((B, H), f32)
        cb = jnp.zeros((B, H), f32)
        for s in range(T):
            t_f, t_b = s, T - 1 - s
            pre = jnp.concatenate(
                [xp_all[t_f * B:(t_f + 1) * B, 0:128],
                 xp_all[t_b * B:(t_b + 1) * B, 128:256]], axis=1)             # (B, 256)
            gates = pre + jnp.dot(h, whh_bd, preferred_element_type=f32)      # (B, 256)
            sg = jax.nn.sigmoid(gates)
            i_f, f_f, o_f = sg[:, 0:H], sg[:, H:2 * H], sg[:, 2 * H:3 * H]
            g_f = 2.0 * sg[:, 3 * H:4 * H] - 1.0
            i_b, f_b, o_b = (sg[:, 128:128 + H], sg[:, 128 + H:128 + 2 * H],
                             sg[:, 128 + 2 * H:128 + 3 * H])
            g_b = 2.0 * sg[:, 128 + 3 * H:128 + 4 * H] - 1.0
            cf = f_f * cf + i_f * g_f
            cb = f_b * cb + i_b * g_b
            h = (jnp.concatenate([o_f, o_b], axis=1)
                 * jnp.tanh(jnp.concatenate([cf, cb], axis=1)))               # (B, 2H)
            # scratch-resident per-timestep outputs (aligned sublane rows)
            out_scr[t_f * B:(t_f + 1) * B, 0:H] = h[:, 0:H]
            out_scr[t_b * B:(t_b + 1) * B, H:2 * H] = h[:, H:2 * H]

    bilstm(xp1, W("whh0", 2 * H, 256), out1_scr)

    # ---- layer-2 input projection: single fused 256-lane matmul ----
    out1 = out1_scr[...]                                                      # (T*B, 2H)
    xp2 = (jnp.dot(out1.astype(bf16), W("wih1", 2 * H, 256).astype(bf16),
                   preferred_element_type=f32) + V("b1", 256))                # (T*B, 256)

    bilstm(xp2, W("whh1", 2 * H, 256), out2_scr)

    # ---- attention: Linear(64,1) + softmax over time ----
    # Bias dropped (constant over time, cancels under softmax). Scores from a
    # single matmul on the scratch-resident layer-2 outputs; the attention
    # column is zero-padded to 128 output lanes, lane 0 holds the score.
    out2 = out2_scr[...]                                                      # (T*B, 2H)
    sc_full = jnp.dot(out2, W("aw", 2 * H, 128), preferred_element_type=f32)  # (T*B, 128)
    scores = jnp.concatenate(
        [sc_full[t * B:(t + 1) * B, 0:1] for t in range(T)], axis=1)          # (B, T)
    scores = scores - jnp.max(scores, axis=1, keepdims=True)
    e = jnp.exp(scores)
    attn = e * pl.reciprocal(jnp.sum(e, axis=1, keepdims=True), approx=True)  # (B, T)

    att = jnp.zeros((B, 2 * H), f32)
    for t in range(T):
        att = att + attn[:, t:t + 1] * out2[t * B:(t + 1) * B, :]             # (B, 2H)

    # ---- trend_analysis MLP on raw slopes (B, 8) ----
    ta = jnp.maximum(jnp.dot(slopes, W("ta1w", 8, 32), preferred_element_type=f32)
                     + V("ta1b", 32), 0.0)
    ta = jnp.maximum(jnp.dot(ta, W("ta2w", 32, 16), preferred_element_type=f32)
                     + V("ta2b", 16), 0.0)

    # ---- classifier (dropout = identity in eval); lane-dense (B, 128) output ----
    hc = jnp.maximum(
        jnp.dot(att, W("c1w", 2 * H, 40, roff=0), preferred_element_type=f32)
        + jnp.dot(ta, W("c1w", 16, 40, roff=2 * H), preferred_element_type=f32)
        + V("c1b", 40), 0.0)                                                  # (B, 40)
    out_ref[...] = (jnp.dot(hc, W("c2w", 40, 128), preferred_element_type=f32)
                    + V("c2b", 128))


# ----------------------------------------------------------------------------
# Parameter construction (PyTorch layout) and packing into the two buffers.
# ----------------------------------------------------------------------------
def make_params(key):
    """Deterministic synthetic parameters in PyTorch layout."""
    keys = iter(jax.random.split(key, 64))

    def nrm(shape, s=0.1):
        return s * jax.random.normal(next(keys), shape, jnp.float32)

    def conv_bn(cout, cin, k):
        return dict(W=nrm((cout, cin, k)), b=nrm((cout,)),
                    gamma=1.0 + nrm((cout,)), beta=nrm((cout,)),
                    mean=nrm((cout,)),
                    var=0.5 + jax.random.uniform(next(keys), (cout,), jnp.float32))

    def lstm_dir(in_dim):
        return dict(Wih=nrm((4 * H, in_dim)), Whh=nrm((4 * H, H)),
                    bih=nrm((4 * H,)), bhh=nrm((4 * H,)))

    p = {
        "t1": conv_bn(16, 1, 3), "t2": conv_bn(16, 16, 3),
        "s1": conv_bn(16, 1, 3), "l1": conv_bn(16, 1, 2),
        "lstm": {(0, "f"): lstm_dir(48), (0, "b"): lstm_dir(48),
                 (1, "f"): lstm_dir(2 * H), (1, "b"): lstm_dir(2 * H)},
        "att_w": nrm((1, 2 * H)), "att_b": nrm((1,)),
        "ta1_w": nrm((32, 8)), "ta1_b": nrm((32,)),
        "ta2_w": nrm((16, 32)), "ta2_b": nrm((16,)),
        "c1_w": nrm((40, 80)), "c1_b": nrm((40,)),
        "c2_w": nrm((NUM_CLASSES, 40)), "c2_b": nrm((NUM_CLASSES,)),
    }
    return p


def pack_params(p):
    """Pack all parameters into (W_NROWS,256) matrix and (V_NROWS,256) vector buffers."""
    wbuf = jnp.zeros((W_NROWS, LANES), jnp.float32)
    vbuf = jnp.zeros((V_NROWS, LANES), jnp.float32)

    def put_w(buf, name, mat, roff=0, coff=0):
        r, c = mat.shape
        off = W_OFF[name] + roff
        return buf.at[off:off + r, coff:coff + c].set(mat)

    def put_v(buf, name, vec, coff=0):
        vec = jnp.reshape(vec, (-1,))
        return buf.at[V_ROW[name], coff:coff + vec.shape[0]].set(vec)

    def fold_bn(cb):
        scale = cb["gamma"] / jnp.sqrt(cb["var"] + 1e-5)
        shift = (cb["b"] - cb["mean"]) * scale + cb["beta"]
        return scale, shift

    # conv nets: weights as (taps/in, out) slabs; BN + conv bias folded to scale/shift
    wbuf = put_w(wbuf, "t1w", p["t1"]["W"][:, 0, :].T)                            # (3,16)
    s, h = fold_bn(p["t1"]); vbuf = put_v(vbuf, "t1s", s); vbuf = put_v(vbuf, "t1h", h)
    for k in range(3):                                                            # (16,16) per tap
        wbuf = put_w(wbuf, f"t2w{k}", p["t2"]["W"][:, :, k].T)
    s, h = fold_bn(p["t2"]); vbuf = put_v(vbuf, "t2s", s); vbuf = put_v(vbuf, "t2h", h)
    wbuf = put_w(wbuf, "s1w", p["s1"]["W"][:, 0, :].T)                            # (3,16)
    s, h = fold_bn(p["s1"]); vbuf = put_v(vbuf, "s1s", s); vbuf = put_v(vbuf, "s1h", h)
    wbuf = put_w(wbuf, "l1w", p["l1"]["W"][:, 0, :].T)                            # (2,16)
    s, h = fold_bn(p["l1"]); vbuf = put_v(vbuf, "l1s", s); vbuf = put_v(vbuf, "l1h", h)

    # LSTM: PyTorch gate rows [i,f,g,o] -> packed columns [i,f,o,2g], stored (in, 4H)
    def reorder(M):
        i, f, g, o = M[0:H], M[H:2 * H], M[2 * H:3 * H], M[3 * H:4 * H]
        return jnp.concatenate([i, f, o, 2.0 * g], axis=0).T

    def reorder_b(b):
        return jnp.concatenate([b[0:H], b[H:2 * H], b[3 * H:4 * H], 2.0 * b[2 * H:3 * H]])

    # fwd gates go to lanes 0:128, bwd gates to lanes 128:256; Whh is block-diagonal
    for layer, ih, hh, bn in ((0, "wih0", "whh0", "b0"), (1, "wih1", "whh1", "b1")):
        for d, coff in (("f", 0), ("b", 128)):
            q = p["lstm"][(layer, d)]
            wbuf = put_w(wbuf, ih, reorder(q["Wih"]), coff=coff)
            wbuf = put_w(wbuf, hh, reorder(q["Whh"]), roff=(0 if d == "f" else H), coff=coff)
            vbuf = put_v(vbuf, bn, reorder_b(q["bih"] + q["bhh"]), coff=coff)

    # attention Linear(64,1): stored as a (64,1) column (rows 0:32 fwd, 32:64 bwd);
    # bias dropped (cancels under softmax); columns 1:128 stay zero.
    wbuf = put_w(wbuf, "aw", p["att_w"].T)

    # trend_analysis and classifier dense layers, stored (in, out)
    wbuf = put_w(wbuf, "ta1w", p["ta1_w"].T); vbuf = put_v(vbuf, "ta1b", p["ta1_b"])
    wbuf = put_w(wbuf, "ta2w", p["ta2_w"].T); vbuf = put_v(vbuf, "ta2b", p["ta2_b"])
    wbuf = put_w(wbuf, "c1w", p["c1_w"].T);   vbuf = put_v(vbuf, "c1b", p["c1_b"])
    wbuf = put_w(wbuf, "c2w", p["c2_w"].T);   vbuf = put_v(vbuf, "c2b", p["c2_b"])
    return wbuf, vbuf


# ----------------------------------------------------------------------------
# Wrapper
# ----------------------------------------------------------------------------
def _device_kind():
    try:
        return jax.devices()[0].device_kind.lower()
    except Exception:
        return ""


def _is_v5e(kind):
    return ("v5 lite" in kind) or ("v5e" in kind) or ("v5litepod" in kind)


def _is_v7x(kind):
    return ("7x" in kind) or ("v7" in kind)


def _cost_estimate(batch):
    tbb = T * batch
    conv = 2 * tbb * (3 * 16 + 3 * 16 * 16) + 2 * (T - 1) * batch * (3 * 16 + 2 * 16)
    proj = 2 * tbb * (48 * 256 + 64 * 256)
    rec = 2 * T * 2 * batch * (2 * H) * 256
    attn = 2 * tbb * (2 * H) * 2
    head = 2 * batch * (8 * 32 + 32 * 16 + 80 * 40 + 40 * 128)
    trans = 2 * T * batch * (256 + 2 * H) + batch * T + batch
    bytes_accessed = 4 * (batch * T + (W_NROWS + V_NROWS) * LANES + batch * 128
                          + 4 * tbb * 2 * H)
    return pl.CostEstimate(flops=int(conv + proj + rec + attn + head),
                           transcendentals=int(trans),
                           bytes_accessed=int(bytes_accessed))


def hybrid_forward(x, wbuf, vbuf, *, block_b=None):
    B0 = x.shape[0]
    assert x.shape[1] == T

    kind = _device_kind()
    B_pad = _round8(B0)                       # 8-aligned batch (B=2 -> 8)

    blk = block_b
    if blk is None:
        blk = 128 if _is_v5e(kind) else 256   # v5e: smaller default block
    # v7x has 2 TensorCores: make sure the "parallel" batch grid has >= 2 steps.
    if _is_v7x(kind) and B_pad >= 16:
        blk = min(blk, _round8(pl.cdiv(B_pad, 2)))
    tb = _round8(min(B_pad, blk))
    B_total = pl.cdiv(B_pad, tb) * tb
    grid = (B_total // tb,)

    if B_total != B0:
        x = jnp.zeros((B_total, T), x.dtype).at[:B0].set(x)

    # rough per-block VMEM need: weight buffers (double-buffered) + scratch +
    # lane-padded temporaries; only raise the scoped limit when needed.
    est = 4 * (2 * (W_NROWS + V_NROWS) * LANES
               + 2 * T * tb * 2 * H
               + 14 * T * tb * 128)
    vmem_limit = None
    if est > (16 << 20):
        vmem_limit = min(est + (8 << 20), 48 << 20)

    out = pl.pallas_call(
        hybrid_kernel,
        out_shape=jax.ShapeDtypeStruct((B_total, 128), jnp.float32),   # lane-dense
        grid_spec=pltpu.PrefetchScalarGridSpec(
            num_scalar_prefetch=0,
            grid=grid,
            in_specs=[
                pl.BlockSpec((tb, T), lambda i: (i, 0)),
                pl.BlockSpec((W_NROWS, LANES), lambda i: (0, 0)),
                pl.BlockSpec((V_NROWS, LANES), lambda i: (0, 0)),
            ],
            out_specs=pl.BlockSpec((tb, 128), lambda i: (i, 0)),
            scratch_shapes=[
                pltpu.VMEM((T * tb, 2 * H), jnp.float32),   # layer-1 outputs
                pltpu.VMEM((T * tb, 2 * H), jnp.float32),   # layer-2 outputs
            ],
        ),
        compiler_params=pltpu.CompilerParams(
            dimension_semantics=("parallel",),
            vmem_limit_bytes=vmem_limit),
        cost_estimate=_cost_estimate(B_total),
    )(x, wbuf, vbuf)
    return out[:B0, :NUM_CLASSES]


if __name__ == "__main__":
    key = jax.random.PRNGKey(0)
    kp, kx = jax.random.split(key)
    params = make_params(kp)
    wbuf, vbuf = pack_params(params)
    x = 3.0 * jax.random.normal(kx, (2, T), jnp.float32)   # (batch=2, seq_len=9)

    logits = hybrid_forward(x, wbuf, vbuf)
    logits = jax.block_until_ready(logits)

    assert logits.shape == (2, NUM_CLASSES)
    assert bool(jnp.all(jnp.isfinite(logits)))
    print("KERNEL_OK")
</pallas_src>

<mosaic_0001>
module attributes {stable_mosaic.version = 11 : i64} {
  func.func @hybrid_kernel(%arg0: i32, %arg1: memref<8x9xf32, #tpu.memory_space<vmem>>, %arg2: memref<536x256xf32, #tpu.memory_space<vmem>>, %arg3: memref<16x256xf32, #tpu.memory_space<vmem>>, %arg4: memref<8x128xf32, #tpu.memory_space<vmem>>, %arg5: memref<72x64xf32, #tpu.memory_space<vmem>>, %arg6: memref<72x64xf32, #tpu.memory_space<vmem>>) attributes {dimension_semantics = [#tpu.dimension_semantics<parallel>], iteration_bounds = array<i64: 1>, scalar_prefetch = 0 : i64, scratch_operands = 2 : i64, tpu.core_type = #tpu.core_type<tc>, window_params = [{transform_indices = @transform_0, window_bounds = array<i64: 8, 9>}, {pipeline_mode = #tpu.pipeline_mode<synchronous>, transform_indices = @transform_1, window_bounds = array<i64: 536, 256>}, {pipeline_mode = #tpu.pipeline_mode<synchronous>, transform_indices = @transform_2, window_bounds = array<i64: 16, 256>}, {transform_indices = @transform_3, window_bounds = array<i64: 8, 128>}]} {
    %c0 = arith.constant 0 : index
    %c0_0 = arith.constant 0 : index
    %0 = vector.load %arg1[%c0, %c0_0] : memref<8x9xf32, #tpu.memory_space<vmem>>, vector<8x9xf32>
    %cst = arith.constant 0.000000e+00 : f32
    %1 = vector.broadcast %cst : f32 to vector<8x1xf32>
    %cst_1 = arith.constant 0.000000e+00 : f32
    %2 = vector.broadcast %cst_1 : f32 to vector<8x16xf32>
    %3 = tpu.concatenate %1, %0, %1 in 1 : vector<8x1xf32>, vector<8x9xf32>, vector<8x1xf32> -> vector<8x11xf32>
    %4 = vector.extract_strided_slice %3 {offsets = [0, 0], sizes = [8, 3], strides = [1, 1]} : vector<8x11xf32> to vector<8x3xf32>
    %5 = vector.extract_strided_slice %3 {offsets = [0, 1], sizes = [8, 3], strides = [1, 1]} : vector<8x11xf32> to vector<8x3xf32>
    %6 = vector.extract_strided_slice %3 {offsets = [0, 2], sizes = [8, 3], strides = [1, 1]} : vector<8x11xf32> to vector<8x3xf32>
    %7 = vector.extract_strided_slice %3 {offsets = [0, 3], sizes = [8, 3], strides = [1, 1]} : vector<8x11xf32> to vector<8x3xf32>
    %8 = vector.extract_strided_slice %3 {offsets = [0, 4], sizes = [8, 3], strides = [1, 1]} : vector<8x11xf32> to vector<8x3xf32>
    %9 = vector.extract_strided_slice %3 {offsets = [0, 5], sizes = [8, 3], strides = [1, 1]} : vector<8x11xf32> to vector<8x3xf32>
    %10 = vector.extract_strided_slice %3 {offsets = [0, 6], sizes = [8, 3], strides = [1, 1]} : vector<8x11xf32> to vector<8x3xf32>
    %11 = vector.extract_strided_slice %3 {offsets = [0, 7], sizes = [8, 3], strides = [1, 1]} : vector<8x11xf32> to vector<8x3xf32>
    %12 = vector.extract_strided_slice %3 {offsets = [0, 8], sizes = [8, 3], strides = [1, 1]} : vector<8x11xf32> to vector<8x3xf32>
    %13 = tpu.concatenate %4, %5, %6, %7, %8, %9, %10, %11, %12 in 0 : vector<8x3xf32>, vector<8x3xf32>, vector<8x3xf32>, vector<8x3xf32>, vector<8x3xf32>, vector<8x3xf32>, vector<8x3xf32>, vector<8x3xf32>, vector<8x3xf32> -> vector<72x3xf32>
    %14 = vector.extract_strided_slice %0 {offsets = [0, 1], sizes = [8, 8], strides = [1, 1]} : vector<8x9xf32> to vector<8x8xf32>
    %15 = vector.extract_strided_slice %0 {offsets = [0, 0], sizes = [8, 8], strides = [1, 1]} : vector<8x9xf32> to vector<8x8xf32>
    %16 = arith.subf %14, %15 : vector<8x8xf32>
    %17 = tpu.concatenate %1, %16, %1 in 1 : vector<8x1xf32>, vector<8x8xf32>, vector<8x1xf32> -> vector<8x10xf32>
    %18 = vector.extract_strided_slice %17 {offsets = [0, 0], sizes = [8, 3], strides = [1, 1]} : vector<8x10xf32> to vector<8x3xf32>
    %19 = vector.extract_strided_slice %17 {offsets = [0, 1], sizes = [8, 3], strides = [1, 1]} : vector<8x10xf32> to vector<8x3xf32>
    %20 = vector.extract_strided_slice %17 {offsets = [0, 2], sizes = [8, 3], strides = [1, 1]} : vector<8x10xf32> to vector<8x3xf32>
    %21 = vector.extract_strided_slice %17 {offsets = [0, 3], sizes = [8, 3], strides = [1, 1]} : vector<8x10xf32> to vector<8x3xf32>
    %22 = vector.extract_strided_slice %17 {offsets = [0, 4], sizes = [8, 3], strides = [1, 1]} : vector<8x10xf32> to vector<8x3xf32>
    %23 = vector.extract_strided_slice %17 {offsets = [0, 5], sizes = [8, 3], strides = [1, 1]} : vector<8x10xf32> to vector<8x3xf32>
    %24 = vector.extract_strided_slice %17 {offsets = [0, 6], sizes = [8, 3], strides = [1, 1]} : vector<8x10xf32> to vector<8x3xf32>
    %25 = vector.extract_strided_slice %17 {offsets = [0, 7], sizes = [8, 3], strides = [1, 1]} : vector<8x10xf32> to vector<8x3xf32>
    %26 = tpu.concatenate %18, %19, %20, %21, %22, %23, %24, %25 in 0 : vector<8x3xf32>, vector<8x3xf32>, vector<8x3xf32>, vector<8x3xf32>, vector<8x3xf32>, vector<8x3xf32>, vector<8x3xf32>, vector<8x3xf32> -> vector<64x3xf32>
    %27 = vector.extract_strided_slice %0 {offsets = [0, 0], sizes = [8, 2], strides = [1, 1]} : vector<8x9xf32> to vector<8x2xf32>
    %28 = vector.extract_strided_slice %0 {offsets = [0, 1], sizes = [8, 2], strides = [1, 1]} : vector<8x9xf32> to vector<8x2xf32>
    %29 = vector.extract_strided_slice %0 {offsets = [0, 2], sizes = [8, 2], strides = [1, 1]} : vector<8x9xf32> to vector<8x2xf32>
    %30 = vector.extract_strided_slice %0 {offsets = [0, 3], sizes = [8, 2], strides = [1, 1]} : vector<8x9xf32> to vector<8x2xf32>
    %31 = vector.extract_strided_slice %0 {offsets = [0, 4], sizes = [8, 2], strides = [1, 1]} : vector<8x9xf32> to vector<8x2xf32>
    %32 = vector.extract_strided_slice %0 {offsets = [0, 5], sizes = [8, 2], strides = [1, 1]} : vector<8x9xf32> to vector<8x2xf32>
    %33 = vector.extract_strided_slice %0 {offsets = [0, 6], sizes = [8, 2], strides = [1, 1]} : vector<8x9xf32> to vector<8x2xf32>
    %34 = vector.extract_strided_slice %0 {offsets = [0, 7], sizes = [8, 2], strides = [1, 1]} : vector<8x9xf32> to vector<8x2xf32>
    %35 = tpu.concatenate %27, %28, %29, %30, %31, %32, %33, %34 in 0 : vector<8x2xf32>, vector<8x2xf32>, vector<8x2xf32>, vector<8x2xf32>, vector<8x2xf32>, vector<8x2xf32>, vector<8x2xf32>, vector<8x2xf32> -> vector<64x2xf32>
    %c0_2 = arith.constant 0 : index
    %c0_3 = arith.constant 0 : index
    %36 = vector.load %arg2[%c0_2, %c0_3] : memref<536x256xf32, #tpu.memory_space<vmem>>, vector<3x16xf32>
    %cst_4 = arith.constant dense<0.000000e+00> : vector<72x16xf32>
    %37 = tpu.matmul %13, %36, %cst_4 {dimension_numbers = #tpu.dot_dimension_numbers<[1], [0], [0], [1], [0, 0, 1, 1], [], []>} : vector<72x3xf32>, vector<3x16xf32>, vector<72x16xf32> -> vector<72x16xf32>
    %c0_5 = arith.constant 0 : index
    %c0_6 = arith.constant 0 : index
    %38 = vector.load %arg3[%c0_5, %c0_6] : memref<16x256xf32, #tpu.memory_space<vmem>>, vector<1x16xf32>
    %39 = vector.broadcast %38 : vector<1x16xf32> to vector<72x16xf32>
    %40 = arith.mulf %37, %39 : vector<72x16xf32>
    %c1 = arith.constant 1 : index
    %c0_7 = arith.constant 0 : index
    %41 = vector.load %arg3[%c1, %c0_7] : memref<16x256xf32, #tpu.memory_space<vmem>>, vector<1x16xf32>
    %42 = vector.broadcast %41 : vector<1x16xf32> to vector<72x16xf32>
    %43 = arith.addf %40, %42 : vector<72x16xf32>
    %cst_8 = arith.constant 0.000000e+00 : f32
    %44 = vector.broadcast %cst_8 : f32 to vector<72x16xf32>
    %45 = arith.maximumf %43, %44 : vector<72x16xf32>
    %46 = vector.extract_strided_slice %45 {offsets = [0, 0], sizes = [64, 16], strides = [1, 1]} : vector<72x16xf32> to vector<64x16xf32>
    %47 = tpu.concatenate %2, %46 in 0 : vector<8x16xf32>, vector<64x16xf32> -> vector<72x16xf32>
    %48 = vector.extract_strided_slice %45 {offsets = [8, 0], sizes = [64, 16], strides = [1, 1]} : vector<72x16xf32> to vector<64x16xf32>
    %49 = tpu.concatenate %48, %2 in 0 : vector<64x16xf32>, vector<8x16xf32> -> vector<72x16xf32>
    %c8 = arith.constant 8 : index
    %c0_9 = arith.constant 0 : index
    %50 = vector.load %arg2[%c8, %c0_9] : memref<536x256xf32, #tpu.memory_space<vmem>>, vector<16x16xf32>
    %cst_10 = arith.constant dense<0.000000e+00> : vector<72x16xf32>
    %51 = tpu.matmul %47, %50, %cst_10 {dimension_numbers = #tpu.dot_dimension_numbers<[1], [0], [0], [1], [0, 0, 1, 1], [], []>} : vector<72x16xf32>, vector<16x16xf32>, vector<72x16xf32> -> vector<72x16xf32>
    %c24 = arith.constant 24 : index
    %c0_11 = arith.constant 0 : index
    %52 = vector.load %arg2[%c24, %c0_11] : memref<536x256xf32, #tpu.memory_space<vmem>>, vector<16x16xf32>
    %cst_12 = arith.constant dense<0.000000e+00> : vector<72x16xf32>
    %53 = tpu.matmul %45, %52, %cst_12 {dimension_numbers = #tpu.dot_dimension_numbers<[1], [0], [0], [1], [0, 0, 1, 1], [], []>} : vector<72x16xf32>, vector<16x16xf32>, vector<72x16xf32> -> vector<72x16xf32>
    %54 = arith.addf %51, %53 : vector<72x16xf32>
    %c40 = arith.constant 40 : index
    %c0_13 = arith.constant 0 : index
    %55 = vector.load %arg2[%c40, %c0_13] : memref<536x256xf32, #tpu.memory_space<vmem>>, vector<16x16xf32>
    %cst_14 = arith.constant dense<0.000000e+00> : vector<72x16xf32>
    %56 = tpu.matmul %49, %55, %cst_14 {dimension_numbers = #tpu.dot_dimension_numbers<[1], [0], [0], [1], [0, 0, 1, 1], [], []>} : vector<72x16xf32>, vector<16x16xf32>, vector<72x16xf32> -> vector<72x16xf32>
    %57 = arith.addf %54, %56 : vector<72x16xf32>
    %c2 = arith.constant 2 : index
    %c0_15 = arith.constant 0 : index
    %58 = vector.load %arg3[%c2, %c0_15] : memref<16x256xf32, #tpu.memory_space<vmem>>, vector<1x16xf32>
    %59 = vector.broadcast %58 : vector<1x16xf32> to vector<72x16xf32>
    %60 = arith.mulf %57, %59 : vector<72x16xf32>
    %c3 = arith.constant 3 : index
    %c0_16 = arith.constant 0 : index
    %61 = vector.load %arg3[%c3, %c0_16] : memref<16x256xf32, #tpu.memory_space<vmem>>, vector<1x16xf32>
    %62 = vector.broadcast %61 : vector<1x16xf32> to vector<72x16xf32>
    %63 = arith.addf %60, %62 : vector<72x16xf32>
    %cst_17 = arith.constant 0.000000e+00 : f32
    %64 = vector.broadcast %cst_17 : f32 to vector<72x16xf32>
    %65 = arith.maximumf %63, %64 : vector<72x16xf32>
    %c56 = arith.constant 56 : index
    %c0_18 = arith.constant 0 : index
    %66 = vector.load %arg2[%c56, %c0_18] : memref<536x256xf32, #tpu.memory_space<vmem>>, vector<3x16xf32>
    %cst_19 = arith.constant dense<0.000000e+00> : vector<64x16xf32>
    %67 = tpu.matmul %26, %66, %cst_19 {dimension_numbers = #tpu.dot_dimension_numbers<[1], [0], [0], [1], [0, 0, 1, 1], [], []>} : vector<64x3xf32>, vector<3x16xf32>, vector<64x16xf32> -> vector<64x16xf32>
    %c4 = arith.constant 4 : index
    %c0_20 = arith.constant 0 : index
    %68 = vector.load %arg3[%c4, %c0_20] : memref<16x256xf32, #tpu.memory_space<vmem>>, vector<1x16xf32>
    %69 = vector.broadcast %68 : vector<1x16xf32> to vector<64x16xf32>
    %70 = arith.mulf %67, %69 : vector<64x16xf32>
    %c5 = arith.constant 5 : index
    %c0_21 = arith.constant 0 : index
    %71 = vector.load %arg3[%c5, %c0_21] : memref<16x256xf32, #tpu.memory_space<vmem>>, vector<1x16xf32>
    %72 = vector.broadcast %71 : vector<1x16xf32> to vector<64x16xf32>
    %73 = arith.addf %70, %72 : vector<64x16xf32>
    %cst_22 = arith.constant 0.000000e+00 : f32
    %74 = vector.broadcast %cst_22 : f32 to vector<64x16xf32>
    %75 = arith.maximumf %73, %74 : vector<64x16xf32>
    %76 = tpu.concatenate %75, %2 in 0 : vector<64x16xf32>, vector<8x16xf32> -> vector<72x16xf32>
    %c64 = arith.constant 64 : index
    %c0_23 = arith.constant 0 : index
    %77 = vector.load %arg2[%c64, %c0_23] : memref<536x256xf32, #tpu.memory_space<vmem>>, vector<2x16xf32>
    %cst_24 = arith.constant dense<0.000000e+00> : vector<64x16xf32>
    %78 = tpu.matmul %35, %77, %cst_24 {dimension_numbers = #tpu.dot_dimension_numbers<[1], [0], [0], [1], [0, 0, 1, 1], [], []>} : vector<64x2xf32>, vector<2x16xf32>, vector<64x16xf32> -> vector<64x16xf32>
    %c6 = arith.constant 6 : index
    %c0_25 = arith.constant 0 : index
    %79 = vector.load %arg3[%c6, %c0_25] : memref<16x256xf32, #tpu.memory_space<vmem>>, vector<1x16xf32>
    %80 = vector.broadcast %79 : vector<1x16xf32> to vector<64x16xf32>
    %81 = arith.mulf %78, %80 : vector<64x16xf32>
    %c7 = arith.constant 7 : index
    %c0_26 = arith.constant 0 : index
    %82 = vector.load %arg3[%c7, %c0_26] : memref<16x256xf32, #tpu.memory_space<vmem>>, vector<1x16xf32>
    %83 = vector.broadcast %82 : vector<1x16xf32> to vector<64x16xf32>
    %84 = arith.addf %81, %83 : vector<64x16xf32>
    %cst_27 = arith.constant 0.000000e+00 : f32
    %85 = vector.broadcast %cst_27 : f32 to vector<64x16xf32>
    %86 = arith.maximumf %84, %85 : vector<64x16xf32>
    %87 = tpu.concatenate %86, %2 in 0 : vector<64x16xf32>, vector<8x16xf32> -> vector<72x16xf32>
    %88 = arith.truncf %65 : vector<72x16xf32> to vector<72x16xbf16>
    %c72 = arith.constant 72 : index
    %c0_28 = arith.constant 0 : index
    %89 = vector.load %arg2[%c72, %c0_28] : memref<536x256xf32, #tpu.memory_space<vmem>>, vector<16x256xf32>
    %90 = arith.truncf %89 : vector<16x256xf32> to vector<16x256xbf16>
    %cst_29 = arith.constant dense<0.000000e+00> : vector<72x256xf32>
    %91 = tpu.matmul %88, %90, %cst_29 {dimension_numbers = #tpu.dot_dimension_numbers<[1], [0], [0], [1], [0, 0, 1, 1], [], []>} : vector<72x16xbf16>, vector<16x256xbf16>, vector<72x256xf32> -> vector<72x256xf32>
    %92 = arith.truncf %76 : vector<72x16xf32> to vector<72x16xbf16>
    %c88 = arith.constant 88 : index
    %c0_30 = arith.constant 0 : index
    %93 = vector.load %arg2[%c88, %c0_30] : memref<536x256xf32, #tpu.memory_space<vmem>>, vector<16x256xf32>
    %94 = arith.truncf %93 : vector<16x256xf32> to vector<16x256xbf16>
    %cst_31 = arith.constant dense<0.000000e+00> : vector<72x256xf32>
    %95 = tpu.matmul %92, %94, %cst_31 {dimension_numbers = #tpu.dot_dimension_numbers<[1], [0], [0], [1], [0, 0, 1, 1], [], []>} : vector<72x16xbf16>, vector<16x256xbf16>, vector<72x256xf32> -> vector<72x256xf32>
    %96 = arith.addf %91, %95 : vector<72x256xf32>
    %97 = arith.truncf %87 : vector<72x16xf32> to vector<72x16xbf16>
    %c104 = arith.constant 104 : index
    %c0_32 = arith.constant 0 : index
    %98 = vector.load %arg2[%c104, %c0_32] : memref<536x256xf32, #tpu.memory_space<vmem>>, vector<16x256xf32>
    %99 = arith.truncf %98 : vector<16x256xf32> to vector<16x256xbf16>
    %cst_33 = arith.constant dense<0.000000e+00> : vector<72x256xf32>
    %100 = tpu.matmul %97, %99, %cst_33 {dimension_numbers = #tpu.dot_dimension_numbers<[1], [0], [0], [1], [0, 0, 1, 1], [], []>} : vector<72x16xbf16>, vector<16x256xbf16>, vector<72x256xf32> -> vector<72x256xf32>
    %101 = arith.addf %96, %100 : vector<72x256xf32>
    %c8_34 = arith.constant 8 : index
    %c0_35 = arith.constant 0 : index
    %102 = vector.load %arg3[%c8_34, %c0_35] : memref<16x256xf32, #tpu.memory_space<vmem>>, vector<1x256xf32>
    %103 = vector.broadcast %102 : vector<1x256xf32> to vector<72x256xf32>
    %104 = arith.addf %101, %103 : vector<72x256xf32>
    %c120 = arith.constant 120 : index
    %c0_36 = arith.constant 0 : index
    %105 = vector.load %arg2[%c120, %c0_36] : memref<536x256xf32, #tpu.memory_space<vmem>>, vector<64x256xf32>
    %cst_37 = arith.constant 0.000000e+00 : f32
    %106 = vector.broadcast %cst_37 : f32 to vector<8x64xf32>
    %cst_38 = arith.constant 0.000000e+00 : f32
    %107 = vector.broadcast %cst_38 : f32 to vector<8x32xf32>
    %cst_39 = arith.constant 0.000000e+00 : f32
    %108 = vector.broadcast %cst_39 : f32 to vector<8x32xf32>
    %109 = vector.extract_strided_slice %104 {offsets = [0, 0], sizes = [8, 128], strides = [1, 1]} : vector<72x256xf32> to vector<8x128xf32>
    %110 = vector.extract_strided_slice %104 {offsets = [64, 128], sizes = [8, 128], strides = [1, 1]} : vector<72x256xf32> to vector<8x128xf32>
    %111 = tpu.concatenate %109, %110 in 1 : vector<8x128xf32>, vector<8x128xf32> -> vector<8x256xf32>
    %cst_40 = arith.constant dense<0.000000e+00> : vector<8x256xf32>
    %112 = tpu.matmul %106, %105, %cst_40 {dimension_numbers = #tpu.dot_dimension_numbers<[1], [0], [0], [1], [0, 0, 1, 1], [], []>} : vector<8x64xf32>, vector<64x256xf32>, vector<8x256xf32> -> vector<8x256xf32>
    %113 = arith.addf %111, %112 : vector<8x256xf32>
    %114 = arith.negf %113 : vector<8x256xf32>
    %115 = math.exp %114 : vector<8x256xf32>
    %cst_41 = arith.constant 1.000000e+00 : f32
    %116 = vector.broadcast %cst_41 : f32 to vector<8x256xf32>
    %117 = arith.addf %116, %115 : vector<8x256xf32>
    %118 = arith.divf %116, %117 : vector<8x256xf32>
    %119 = vector.extract_strided_slice %118 {offsets = [0, 0], sizes = [8, 32], strides = [1, 1]} : vector<8x256xf32> to vector<8x32xf32>
    %120 = vector.extract_strided_slice %118 {offsets = [0, 32], sizes = [8, 32], strides = [1, 1]} : vector<8x256xf32> to vector<8x32xf32>
    %121 = vector.extract_strided_slice %118 {offsets = [0, 64], sizes = [8, 32], strides = [1, 1]} : vector<8x256xf32> to vector<8x32xf32>
    %122 = vector.extract_strided_slice %118 {offsets = [0, 96], sizes = [8, 32], strides = [1, 1]} : vector<8x256xf32> to vector<8x32xf32>
    %cst_42 = arith.constant 2.000000e+00 : f32
    %123 = vector.broadcast %cst_42 : f32 to vector<8x32xf32>
    %124 = arith.mulf %123, %122 : vector<8x32xf32>
    %cst_43 = arith.constant 1.000000e+00 : f32
    %125 = vector.broadcast %cst_43 : f32 to vector<8x32xf32>
    %126 = arith.subf %124, %125 : vector<8x32xf32>
    %127 = vector.extract_strided_slice %118 {offsets = [0, 128], sizes = [8, 32], strides = [1, 1]} : vector<8x256xf32> to vector<8x32xf32>
    %128 = vector.extract_strided_slice %118 {offsets = [0, 160], sizes = [8, 32], strides = [1, 1]} : vector<8x256xf32> to vector<8x32xf32>
    %129 = vector.extract_strided_slice %118 {offsets = [0, 192], sizes = [8, 32], strides = [1, 1]} : vector<8x256xf32> to vector<8x32xf32>
    %130 = vector.extract_strided_slice %118 {offsets = [0, 224], sizes = [8, 32], strides = [1, 1]} : vector<8x256xf32> to vector<8x32xf32>
    %cst_44 = arith.constant 2.000000e+00 : f32
    %131 = vector.broadcast %cst_44 : f32 to vector<8x32xf32>
    %132 = arith.mulf %131, %130 : vector<8x32xf32>
    %cst_45 = arith.constant 1.000000e+00 : f32
    %133 = vector.broadcast %cst_45 : f32 to vector<8x32xf32>
    %134 = arith.subf %132, %133 : vector<8x32xf32>
    %135 = arith.mulf %120, %107 : vector<8x32xf32>
    %136 = arith.mulf %119, %126 : vector<8x32xf32>
    %137 = arith.addf %135, %136 : vector<8x32xf32>
    %138 = arith.mulf %128, %108 : vector<8x32xf32>
    %139 = arith.mulf %127, %134 : vector<8x32xf32>
    %140 = arith.addf %138, %139 : vector<8x32xf32>
    %141 = tpu.concatenate %121, %129 in 1 : vector<8x32xf32>, vector<8x32xf32> -> vector<8x64xf32>
    %142 = tpu.concatenate %137, %140 in 1 : vector<8x32xf32>, vector<8x32xf32> -> vector<8x64xf32>
    %143 = math.tanh %142 : vector<8x64xf32>
    %144 = arith.mulf %141, %143 : vector<8x64xf32>
    %145 = vector.extract_strided_slice %144 {offsets = [0, 0], sizes = [8, 32], strides = [1, 1]} : vector<8x64xf32> to vector<8x32xf32>
    %c0_46 = arith.constant 0 : index
    %c0_47 = arith.constant 0 : index
    %146 = vector.load %arg5[%c0_46, %c0_47] : memref<72x64xf32, #tpu.memory_space<vmem>>, vector<8x32xf32>
    tpu.vector_store %arg5[%c0_46, %c0_47], %145 {strides = array<i32>} : memref<72x64xf32, #tpu.memory_space<vmem>>, vector<8x32xf32>,
    %147 = vector.extract_strided_slice %144 {offsets = [0, 32], sizes = [8, 32], strides = [1, 1]} : vector<8x64xf32> to vector<8x32xf32>
    %c64_48 = arith.constant 64 : index
    %c32 = arith.constant 32 : index
    %148 = vector.load %arg5[%c64_48, %c32] : memref<72x64xf32, #tpu.memory_space<vmem>>, vector<8x32xf32>
    tpu.vector_store %arg5[%c64_48, %c32], %147 {strides = array<i32>} : memref<72x64xf32, #tpu.memory_space<vmem>>, vector<8x32xf32>,
    %149 = vector.extract_strided_slice %104 {offsets = [8, 0], sizes = [8, 128], strides = [1, 1]} : vector<72x256xf32> to vector<8x128xf32>
    %150 = vector.extract_strided_slice %104 {offsets = [56, 128], sizes = [8, 128], strides = [1, 1]} : vector<72x256xf32> to vector<8x128xf32>
    %151 = tpu.concatenate %149, %150 in 1 : vector<8x128xf32>, vector<8x128xf32> -> vector<8x256xf32>
    %cst_49 = arith.constant dense<0.000000e+00> : vector<8x256xf32>
    %152 = tpu.matmul %144, %105, %cst_49 {dimension_numbers = #tpu.dot_dimension_numbers<[1], [0], [0], [1], [0, 0, 1, 1], [], []>} : vector<8x64xf32>, vector<64x256xf32>, vector<8x256xf32> -> vector<8x256xf32>
    %153 = arith.addf %151, %152 : vector<8x256xf32>
    %154 = arith.negf %153 : vector<8x256xf32>
    %155 = math.exp %154 : vector<8x256xf32>
    %cst_50 = arith.constant 1.000000e+00 : f32
    %156 = vector.broadcast %cst_50 : f32 to vector<8x256xf32>
    %157 = arith.addf %156, %155 : vector<8x256xf32>
    %158 = arith.divf %156, %157 : vector<8x256xf32>
    %159 = vector.extract_strided_slice %158 {offsets = [0, 0], sizes = [8, 32], strides = [1, 1]} : vector<8x256xf32> to vector<8x32xf32>
    %160 = vector.extract_strided_slice %158 {offsets = [0, 32], sizes = [8, 32], strides = [1, 1]} : vector<8x256xf32> to vector<8x32xf32>
    %161 = vector.extract_strided_slice %158 {offsets = [0, 64], sizes = [8, 32], strides = [1, 1]} : vector<8x256xf32> to vector<8x32xf32>
    %162 = vector.extract_strided_slice %158 {offsets = [0, 96], sizes = [8, 32], strides = [1, 1]} : vector<8x256xf32> to vector<8x32xf32>
    %cst_51 = arith.constant 2.000000e+00 : f32
    %163 = vector.broadcast %cst_51 : f32 to vector<8x32xf32>
    %164 = arith.mulf %163, %162 : vector<8x32xf32>
    %cst_52 = arith.constant 1.000000e+00 : f32
    %165 = vector.broadcast %cst_52 : f32 to vector<8x32xf32>
    %166 = arith.subf %164, %165 : vector<8x32xf32>
    %167 = vector.extract_strided_slice %158 {offsets = [0, 128], sizes = [8, 32], strides = [1, 1]} : vector<8x256xf32> to vector<8x32xf32>
    %168 = vector.extract_strided_slice %158 {offsets = [0, 160], sizes = [8, 32], strides = [1, 1]} : vector<8x256xf32> to vector<8x32xf32>
    %169 = vector.extract_strided_slice %158 {offsets = [0, 192], sizes = [8, 32], strides = [1, 1]} : vector<8x256xf32> to vector<8x32xf32>
    %170 = vector.extract_strided_slice %158 {offsets = [0, 224], sizes = [8, 32], strides = [1, 1]} : vector<8x256xf32> to vector<8x32xf32>
    %cst_53 = arith.constant 2.000000e+00 : f32
    %171 = vector.broadcast %cst_53 : f32 to vector<8x32xf32>
    %172 = arith.mulf %171, %170 : vector<8x32xf32>
    %cst_54 = arith.constant 1.000000e+00 : f32
    %173 = vector.broadcast %cst_54 : f32 to vector<8x32xf32>
    %174 = arith.subf %172, %173 : vector<8x32xf32>
    %175 = arith.mulf %160, %137 : vector<8x32xf32>
    %176 = arith.mulf %159, %166 : vector<8x32xf32>
    %177 = arith.addf %175, %176 : vector<8x32xf32>
    %178 = arith.mulf %168, %140 : vector<8x32xf32>
    %179 = arith.mulf %167, %174 : vector<8x32xf32>
    %180 = arith.addf %178, %179 : vector<8x32xf32>
    %181 = tpu.concatenate %161, %169 in 1 : vector<8x32xf32>, vector<8x32xf32> -> vector<8x64xf32>
    %182 = tpu.concatenate %177, %180 in 1 : vector<8x32xf32>, vector<8x32xf32> -> vector<8x64xf32>
    %183 = math.tanh %182 : vector<8x64xf32>
    %184 = arith.mulf %181, %183 : vector<8x64xf32>
    %185 = vector.extract_strided_slice %184 {offsets = [0, 0], sizes = [8, 32], strides = [1, 1]} : vector<8x64xf32> to vector<8x32xf32>
    %c8_55 = arith.constant 8 : index
    %c0_56 = arith.constant 0 : index
    %186 = vector.load %arg5[%c8_55, %c0_56] : memref<72x64xf32, #tpu.memory_space<vmem>>, vector<8x32xf32>
    tpu.vector_store %arg5[%c8_55, %c0_56], %185 {strides = array<i32>} : memref<72x64xf32, #tpu.memory_space<vmem>>, vector<8x32xf32>,
    %187 = vector.extract_strided_slice %184 {offsets = [0, 32], sizes = [8, 32], strides = [1, 1]} : vector<8x64xf32> to vector<8x32xf32>
    %c56_57 = arith.constant 56 : index
    %c32_58 = arith.constant 32 : index
    %188 = vector.load %arg5[%c56_57, %c32_58] : memref<72x64xf32, #tpu.memory_space<vmem>>, vector<8x32xf32>
    tpu.vector_store %arg5[%c56_57, %c32_58], %187 {strides = array<i32>} : memref<72x64xf32, #tpu.memory_space<vmem>>, vector<8x32xf32>,
    %189 = vector.extract_strided_slice %104 {offsets = [16, 0], sizes = [8, 128], strides = [1, 1]} : vector<72x256xf32> to vector<8x128xf32>
    %190 = vector.extract_strided_slice %104 {offsets = [48, 128], sizes = [8, 128], strides = [1, 1]} : vector<72x256xf32> to vector<8x128xf32>
    %191 = tpu.concatenate %189, %190 in 1 : vector<8x128xf32>, vector<8x128xf32> -> vector<8x256xf32>
    %cst_59 = arith.constant dense<0.000000e+00> : vector<8x256xf32>
    %192 = tpu.matmul %184, %105, %cst_59 {dimension_numbers = #tpu.dot_dimension_numbers<[1], [0], [0], [1], [0, 0, 1, 1], [], []>} : vector<8x64xf32>, vector<64x256xf32>, vector<8x256xf32> -> vector<8x256xf32>
    %193 = arith.addf %191, %192 : vector<8x256xf32>
    %194 = arith.negf %193 : vector<8x256xf32>
    %195 = math.exp %194 : vector<8x256xf32>
    %cst_60 = arith.constant 1.000000e+00 : f32
    %196 = vector.broadcast %cst_60 : f32 to vector<8x256xf32>
    %197 = arith.addf %196, %195 : vector<8x256xf32>
    %198 = arith.divf %196, %197 : vector<8x256xf32>
    %199 = vector.extract_strided_slice %198 {offsets = [0, 0], sizes = [8, 32], strides = [1, 1]} : vector<8x256xf32> to vector<8x32xf32>
    %200 = vector.extract_strided_slice %198 {offsets = [0, 32], sizes = [8, 32], strides = [1, 1]} : vector<8x256xf32> to vector<8x32xf32>
    %201 = vector.extract_strided_slice %198 {offsets = [0, 64], sizes = [8, 32], strides = [1, 1]} : vector<8x256xf32> to vector<8x32xf32>
    %202 = vector.extract_strided_slice %198 {offsets = [0, 96], sizes = [8, 32], strides = [1, 1]} : vector<8x256xf32> to vector<8x32xf32>
    %cst_61 = arith.constant 2.000000e+00 : f32
    %203 = vector.broadcast %cst_61 : f32 to vector<8x32xf32>
    %204 = arith.mulf %203, %202 : vector<8x32xf32>
    %cst_62 = arith.constant 1.000000e+00 : f32
    %205 = vector.broadcast %cst_62 : f32 to vector<8x32xf32>
    %206 = arith.subf %204, %205 : vector<8x32xf32>
    %207 = vector.extract_strided_slice %198 {offsets = [0, 128], sizes = [8, 32], strides = [1, 1]} : vector<8x256xf32> to vector<8x32xf32>
    %208 = vector.extract_strided_slice %198 {offsets = [0, 160], sizes = [8, 32], strides = [1, 1]} : vector<8x256xf32> to vector<8x32xf32>
    %209 = vector.extract_strided_slice %198 {offsets = [0, 192], sizes = [8, 32], strides = [1, 1]} : vector<8x256xf32> to vector<8x32xf32>
    %210 = vector.extract_strided_slice %198 {offsets = [0, 224], sizes = [8, 32], strides = [1, 1]} : vector<8x256xf32> to vector<8x32xf32>
    %cst_63 = arith.constant 2.000000e+00 : f32
    %211 = vector.broadcast %cst_63 : f32 to vector<8x32xf32>
    %212 = arith.mulf %211, %210 : vector<8x32xf32>
    %cst_64 = arith.constant 1.000000e+00 : f32
    %213 = vector.broadcast %cst_64 : f32 to vector<8x32xf32>
    %214 = arith.subf %212, %213 : vector<8x32xf32>
    %215 = arith.mulf %200, %177 : vector<8x32xf32>
    %216 = arith.mulf %199, %206 : vector<8x32xf32>
    %217 = arith.addf %215, %216 : vector<8x32xf32>
    %218 = arith.mulf %208, %180 : vector<8x32xf32>
    %219 = arith.mulf %207, %214 : vector<8x32xf32>
    %220 = arith.addf %218, %219 : vector<8x32xf32>
    %221 = tpu.concatenate %201, %209 in 1 : vector<8x32xf32>, vector<8x32xf32> -> vector<8x64xf32>
    %222 = tpu.concatenate %217, %220 in 1 : vector<8x32xf32>, vector<8x32xf32> -> vector<8x64xf32>
    %223 = math.tanh %222 : vector<8x64xf32>
    %224 = arith.mulf %221, %223 : vector<8x64xf32>
    %225 = vector.extract_strided_slice %224 {offsets = [0, 0], sizes = [8, 32], strides = [1, 1]} : vector<8x64xf32> to vector<8x32xf32>
    %c16 = arith.constant 16 : index
    %c0_65 = arith.constant 0 : index
    %226 = vector.load %arg5[%c16, %c0_65] : memref<72x64xf32, #tpu.memory_space<vmem>>, vector<8x32xf32>
    tpu.vector_store %arg5[%c16, %c0_65], %225 {strides = array<i32>} : memref<72x64xf32, #tpu.memory_space<vmem>>, vector<8x32xf32>,
    %227 = vector.extract_strided_slice %224 {offsets = [0, 32], sizes = [8, 32], strides = [1, 1]} : vector<8x64xf32> to vector<8x32xf32>
    %c48 = arith.constant 48 : index
    %c32_66 = arith.constant 32 : index
    %228 = vector.load %arg5[%c48, %c32_66] : memref<72x64xf32, #tpu.memory_space<vmem>>, vector<8x32xf32>
    tpu.vector_store %arg5[%c48, %c32_66], %227 {strides = array<i32>} : memref<72x64xf32, #tpu.memory_space<vmem>>, vector<8x32xf32>,
    %229 = vector.extract_strided_slice %104 {offsets = [24, 0], sizes = [8, 128], strides = [1, 1]} : vector<72x256xf32> to vector<8x128xf32>
    %230 = vector.extract_strided_slice %104 {offsets = [40, 128], sizes = [8, 128], strides = [1, 1]} : vector<72x256xf32> to vector<8x128xf32>
    %231 = tpu.concatenate %229, %230 in 1 : vector<8x128xf32>, vector<8x128xf32> -> vector<8x256xf32>
    %cst_67 = arith.constant dense<0.000000e+00> : vector<8x256xf32>
    %232 = tpu.matmul %224, %105, %cst_67 {dimension_numbers = #tpu.dot_dimension_numbers<[1], [0], [0], [1], [0, 0, 1, 1], [], []>} : vector<8x64xf32>, vector<64x256xf32>, vector<8x256xf32> -> vector<8x256xf32>
    %233 = arith.addf %231, %232 : vector<8x256xf32>
    %234 = arith.negf %233 : vector<8x256xf32>
    %235 = math.exp %234 : vector<8x256xf32>
    %cst_68 = arith.constant 1.000000e+00 : f32
    %236 = vector.broadcast %cst_68 : f32 to vector<8x256xf32>
    %237 = arith.addf %236, %235 : vector<8x256xf32>
    %238 = arith.divf %236, %237 : vector<8x256xf32>
    %239 = vector.extract_strided_slice %238 {offsets = [0, 0], sizes = [8, 32], strides = [1, 1]} : vector<8x256xf32> to vector<8x32xf32>
    %240 = vector.extract_strided_slice %238 {offsets = [0, 32], sizes = [8, 32], strides = [1, 1]} : vector<8x256xf32> to vector<8x32xf32>
    %241 = vector.extract_strided_slice %238 {offsets = [0, 64], sizes = [8, 32], strides = [1, 1]} : vector<8x256xf32> to vector<8x32xf32>
    %242 = vector.extract_strided_slice %238 {offsets = [0, 96], sizes = [8, 32], strides = [1, 1]} : vector<8x256xf32> to vector<8x32xf32>
    %cst_69 = arith.constant 2.000000e+00 : f32
    %243 = vector.broadcast %cst_69 : f32 to vector<8x32xf32>
    %244 = arith.mulf %243, %242 : vector<8x32xf32>
    %cst_70 = arith.constant 1.000000e+00 : f32
    %245 = vector.broadcast %cst_70 : f32 to vector<8x32xf32>
    %246 = arith.subf %244, %245 : vector<8x32xf32>
    %247 = vector.extract_strided_slice %238 {offsets = [0, 128], sizes = [8, 32], strides = [1, 1]} : vector<8x256xf32> to vector<8x32xf32>
    %248 = vector.extract_strided_slice %238 {offsets = [0, 160], sizes = [8, 32], strides = [1, 1]} : vector<8x256xf32> to vector<8x32xf32>
    %249 = vector.extract_strided_slice %238 {offsets = [0, 192], sizes = [8, 32], strides = [1, 1]} : vector<8x256xf32> to vector<8x32xf32>
    %250 = vector.extract_strided_slice %238 {offsets = [0, 224], sizes = [8, 32], strides = [1, 1]} : vector<8x256xf32> to vector<8x32xf32>
    %cst_71 = arith.constant 2.000000e+00 : f32
    %251 = vector.broadcast %cst_71 : f32 to vector<8x32xf32>
    %252 = arith.mulf %251, %250 : vector<8x32xf32>
    %cst_72 = arith.constant 1.000000e+00 : f32
    %253 = vector.broadcast %cst_72 : f32 to vector<8x32xf32>
    %254 = arith.subf %252, %253 : vector<8x32xf32>
    %255 = arith.mulf %240, %217 : vector<8x32xf32>
    %256 = arith.mulf %239, %246 : vector<8x32xf32>
    %257 = arith.addf %255, %256 : vector<8x32xf32>
    %258 = arith.mulf %248, %220 : vector<8x32xf32>
    %259 = arith.mulf %247, %254 : vector<8x32xf32>
    %260 = arith.addf %258, %259 : vector<8x32xf32>
    %261 = tpu.concatenate %241, %249 in 1 : vector<8x32xf32>, vector<8x32xf32> -> vector<8x64xf32>
    %262 = tpu.concatenate %257, %260 in 1 : vector<8x32xf32>, vector<8x32xf32> -> vector<8x64xf32>
    %263 = math.tanh %262 : vector<8x64xf32>
    %264 = arith.mulf %261, %263 : vector<8x64xf32>
    %265 = vector.extract_strided_slice %264 {offsets = [0, 0], sizes = [8, 32], strides = [1, 1]} : vector<8x64xf32> to vector<8x32xf32>
    %c24_73 = arith.constant 24 : index
    %c0_74 = arith.constant 0 : index
    %266 = vector.load %arg5[%c24_73, %c0_74] : memref<72x64xf32, #tpu.memory_space<vmem>>, vector<8x32xf32>
    tpu.vector_store %arg5[%c24_73, %c0_74], %265 {strides = array<i32>} : memref<72x64xf32, #tpu.memory_space<vmem>>, vector<8x32xf32>,
    %267 = vector.extract_strided_slice %264 {offsets = [0, 32], sizes = [8, 32], strides = [1, 1]} : vector<8x64xf32> to vector<8x32xf32>
    %c40_75 = arith.constant 40 : index
    %c32_76 = arith.constant 32 : index
    %268 = vector.load %arg5[%c40_75, %c32_76] : memref<72x64xf32, #tpu.memory_space<vmem>>, vector<8x32xf32>
    tpu.vector_store %arg5[%c40_75, %c32_76], %267 {strides = array<i32>} : memref<72x64xf32, #tpu.memory_space<vmem>>, vector<8x32xf32>,
    %269 = vector.extract_strided_slice %104 {offsets = [32, 0], sizes = [8, 128], strides = [1, 1]} : vector<72x256xf32> to vector<8x128xf32>
    %270 = vector.extract_strided_slice %104 {offsets = [32, 128], sizes = [8, 128], strides = [1, 1]} : vector<72x256xf32> to vector<8x128xf32>
    %271 = tpu.concatenate %269, %270 in 1 : vector<8x128xf32>, vector<8x128xf32> -> vector<8x256xf32>
    %cst_77 = arith.constant dense<0.000000e+00> : vector<8x256xf32>
    %272 = tpu.matmul %264, %105, %cst_77 {dimension_numbers = #tpu.dot_dimension_numbers<[1], [0], [0], [1], [0, 0, 1, 1], [], []>} : vector<8x64xf32>, vector<64x256xf32>, vector<8x256xf32> -> vector<8x256xf32>
    %273 = arith.addf %271, %272 : vector<8x256xf32>
    %274 = arith.negf %273 : vector<8x256xf32>
    %275 = math.exp %274 : vector<8x256xf32>
    %cst_78 = arith.constant 1.000000e+00 : f32
    %276 = vector.broadcast %cst_78 : f32 to vector<8x256xf32>
    %277 = arith.addf %276, %275 : vector<8x256xf32>
    %278 = arith.divf %276, %277 : vector<8x256xf32>
    %279 = vector.extract_strided_slice %278 {offsets = [0, 0], sizes = [8, 32], strides = [1, 1]} : vector<8x256xf32> to vector<8x32xf32>
    %280 = vector.extract_strided_slice %278 {offsets = [0, 32], sizes = [8, 32], strides = [1, 1]} : vector<8x256xf32> to vector<8x32xf32>
    %281 = vector.extract_strided_slice %278 {offsets = [0, 64], sizes = [8, 32], strides = [1, 1]} : vector<8x256xf32> to vector<8x32xf32>
    %282 = vector.extract_strided_slice %278 {offsets = [0, 96], sizes = [8, 32], strides = [1, 1]} : vector<8x256xf32> to vector<8x32xf32>
    %cst_79 = arith.constant 2.000000e+00 : f32
    %283 = vector.broadcast %cst_79 : f32 to vector<8x32xf32>
    %284 = arith.mulf %283, %282 : vector<8x32xf32>
    %cst_80 = arith.constant 1.000000e+00 : f32
    %285 = vector.broadcast %cst_80 : f32 to vector<8x32xf32>
    %286 = arith.subf %284, %285 : vector<8x32xf32>
    %287 = vector.extract_strided_slice %278 {offsets = [0, 128], sizes = [8, 32], strides = [1, 1]} : vector<8x256xf32> to vector<8x32xf32>
    %288 = vector.extract_strided_slice %278 {offsets = [0, 160], sizes = [8, 32], strides = [1, 1]} : vector<8x256xf32> to vector<8x32xf32>
    %289 = vector.extract_strided_slice %278 {offsets = [0, 192], sizes = [8, 32], strides = [1, 1]} : vector<8x256xf32> to vector<8x32xf32>
    %290 = vector.extract_strided_slice %278 {offsets = [0, 224], sizes = [8, 32], strides = [1, 1]} : vector<8x256xf32> to vector<8x32xf32>
    %cst_81 = arith.constant 2.000000e+00 : f32
    %291 = vector.broadcast %cst_81 : f32 to vector<8x32xf32>
    %292 = arith.mulf %291, %290 : vector<8x32xf32>
    %cst_82 = arith.constant 1.000000e+00 : f32
    %293 = vector.broadcast %cst_82 : f32 to vector<8x32xf32>
    %294 = arith.subf %292, %293 : vector<8x32xf32>
    %295 = arith.mulf %280, %257 : vector<8x32xf32>
    %296 = arith.mulf %279, %286 : vector<8x32xf32>
    %297 = arith.addf %295, %296 : vector<8x32xf32>
    %298 = arith.mulf %288, %260 : vector<8x32xf32>
    %299 = arith.mulf %287, %294 : vector<8x32xf32>
    %300 = arith.addf %298, %299 : vector<8x32xf32>
    %301 = tpu.concatenate %281, %289 in 1 : vector<8x32xf32>, vector<8x32xf32> -> vector<8x64xf32>
    %302 = tpu.concatenate %297, %300 in 1 : vector<8x32xf32>, vector<8x32xf32> -> vector<8x64xf32>
    %303 = math.tanh %302 : vector<8x64xf32>
    %304 = arith.mulf %301, %303 : vector<8x64xf32>
    %305 = vector.extract_strided_slice %304 {offsets = [0, 0], sizes = [8, 32], strides = [1, 1]} : vector<8x64xf32> to vector<8x32xf32>
    %c32_83 = arith.constant 32 : index
    %c0_84 = arith.constant 0 : index
    %306 = vector.load %arg5[%c32_83, %c0_84] : memref<72x64xf32, #tpu.memory_space<vmem>>, vector<8x32xf32>
    tpu.vector_store %arg5[%c32_83, %c0_84], %305 {strides = array<i32>} : memref<72x64xf32, #tpu.memory_space<vmem>>, vector<8x32xf32>,
    %307 = vector.extract_strided_slice %304 {offsets = [0, 32], sizes = [8, 32], strides = [1, 1]} : vector<8x64xf32> to vector<8x32xf32>
    %c32_85 = arith.constant 32 : index
    %c32_86 = arith.constant 32 : index
    %308 = vector.load %arg5[%c32_85, %c32_86] : memref<72x64xf32, #tpu.memory_space<vmem>>, vector<8x32xf32>
    tpu.vector_store %arg5[%c32_85, %c32_86], %307 {strides = array<i32>} : memref<72x64xf32, #tpu.memory_space<vmem>>, vector<8x32xf32>,
    %309 = vector.extract_strided_slice %104 {offsets = [40, 0], sizes = [8, 128], strides = [1, 1]} : vector<72x256xf32> to vector<8x128xf32>
    %310 = vector.extract_strided_slice %104 {offsets = [24, 128], sizes = [8, 128], strides = [1, 1]} : vector<72x256xf32> to vector<8x128xf32>
    %311 = tpu.concatenate %309, %310 in 1 : vector<8x128xf32>, vector<8x128xf32> -> vector<8x256xf32>
    %cst_87 = arith.constant dense<0.000000e+00> : vector<8x256xf32>
    %312 = tpu.matmul %304, %105, %cst_87 {dimension_numbers = #tpu.dot_dimension_numbers<[1], [0], [0], [1], [0, 0, 1, 1], [], []>} : vector<8x64xf32>, vector<64x256xf32>, vector<8x256xf32> -> vector<8x256xf32>
    %313 = arith.addf %311, %312 : vector<8x256xf32>
    %314 = arith.negf %313 : vector<8x256xf32>
    %315 = math.exp %314 : vector<8x256xf32>
    %cst_88 = arith.constant 1.000000e+00 : f32
    %316 = vector.broadcast %cst_88 : f32 to vector<8x256xf32>
    %317 = arith.addf %316, %315 : vector<8x256xf32>
    %318 = arith.divf %316, %317 : vector<8x256xf32>
    %319 = vector.extract_strided_slice %318 {offsets = [0, 0], sizes = [8, 32], strides = [1, 1]} : vector<8x256xf32> to vector<8x32xf32>
    %320 = vector.extract_strided_slice %318 {offsets = [0, 32], sizes = [8, 32], strides = [1, 1]} : vector<8x256xf32> to vector<8x32xf32>
    %321 = vector.extract_strided_slice %318 {offsets = [0, 64], sizes = [8, 32], strides = [1, 1]} : vector<8x256xf32> to vector<8x32xf32>
    %322 = vector.extract_strided_slice %318 {offsets = [0, 96], sizes = [8, 32], strides = [1, 1]} : vector<8x256xf32> to vector<8x32xf32>
    %cst_89 = arith.constant 2.000000e+00 : f32
    %323 = vector.broadcast %cst_89 : f32 to vector<8x32xf32>
    %324 = arith.mulf %323, %322 : vector<8x32xf32>
    %cst_90 = arith.constant 1.000000e+00 : f32
    %325 = vector.broadcast %cst_90 : f32 to vector<8x32xf32>
    %326 = arith.subf %324, %325 : vector<8x32xf32>
    %327 = vector.extract_strided_slice %318 {offsets = [0, 128], sizes = [8, 32], strides = [1, 1]} : vector<8x256xf32> to vector<8x32xf32>
    %328 = vector.extract_strided_slice %318 {offsets = [0, 160], sizes = [8, 32], strides = [1, 1]} : vector<8x256xf32> to vector<8x32xf32>
    %329 = vector.extract_strided_slice %318 {offsets = [0, 192], sizes = [8, 32], strides = [1, 1]} : vector<8x256xf32> to vector<8x32xf32>
    %330 = vector.extract_strided_slice %318 {offsets = [0, 224], sizes = [8, 32], strides = [1, 1]} : vector<8x256xf32> to vector<8x32xf32>
    %cst_91 = arith.constant 2.000000e+00 : f32
    %331 = vector.broadcast %cst_91 : f32 to vector<8x32xf32>
    %332 = arith.mulf %331, %330 : vector<8x32xf32>
    %cst_92 = arith.constant 1.000000e+00 : f32
    %333 = vector.broadcast %cst_92 : f32 to vector<8x32xf32>
    %334 = arith.subf %332, %333 : vector<8x32xf32>
    %335 = arith.mulf %320, %297 : vector<8x32xf32>
    %336 = arith.mulf %319, %326 : vector<8x32xf32>
    %337 = arith.addf %335, %336 : vector<8x32xf32>
    %338 = arith.mulf %328, %300 : vector<8x32xf32>
    %339 = arith.mulf %327, %334 : vector<8x32xf32>
    %340 = arith.addf %338, %339 : vector<8x32xf32>
    %341 = tpu.concatenate %321, %329 in 1 : vector<8x32xf32>, vector<8x32xf32> -> vector<8x64xf32>
    %342 = tpu.concatenate %337, %340 in 1 : vector<8x32xf32>, vector<8x32xf32> -> vector<8x64xf32>
    %343 = math.tanh %342 : vector<8x64xf32>
    %344 = arith.mulf %341, %343 : vector<8x64xf32>
    %345 = vector.extract_strided_slice %344 {offsets = [0, 0], sizes = [8, 32], strides = [1, 1]} : vector<8x64xf32> to vector<8x32xf32>
    %c40_93 = arith.constant 40 : index
    %c0_94 = arith.constant 0 : index
    %346 = vector.load %arg5[%c40_93, %c0_94] : memref<72x64xf32, #tpu.memory_space<vmem>>, vector<8x32xf32>
    tpu.vector_store %arg5[%c40_93, %c0_94], %345 {strides = array<i32>} : memref<72x64xf32, #tpu.memory_space<vmem>>, vector<8x32xf32>,
    %347 = vector.extract_strided_slice %344 {offsets = [0, 32], sizes = [8, 32], strides = [1, 1]} : vector<8x64xf32> to vector<8x32xf32>
    %c24_95 = arith.constant 24 : index
    %c32_96 = arith.constant 32 : index
    %348 = vector.load %arg5[%c24_95, %c32_96] : memref<72x64xf32, #tpu.memory_space<vmem>>, vector<8x32xf32>
    tpu.vector_store %arg5[%c24_95, %c32_96], %347 {strides = array<i32>} : memref<72x64xf32, #tpu.memory_space<vmem>>, vector<8x32xf32>,
    %349 = vector.extract_strided_slice %104 {offsets = [48, 0], sizes = [8, 128], strides = [1, 1]} : vector<72x256xf32> to vector<8x128xf32>
    %350 = vector.extract_strided_slice %104 {offsets = [16, 128], sizes = [8, 128], strides = [1, 1]} : vector<72x256xf32> to vector<8x128xf32>
    %351 = tpu.concatenate %349, %350 in 1 : vector<8x128xf32>, vector<8x128xf32> -> vector<8x256xf32>
    %cst_97 = arith.constant dense<0.000000e+00> : vector<8x256xf32>
    %352 = tpu.matmul %344, %105, %cst_97 {dimension_numbers = #tpu.dot_dimension_numbers<[1], [0], [0], [1], [0, 0, 1, 1], [], []>} : vector<8x64xf32>, vector<64x256xf32>, vector<8x256xf32> -> vector<8x256xf32>
    %353 = arith.addf %351, %352 : vector<8x256xf32>
    %354 = arith.negf %353 : vector<8x256xf32>
    %355 = math.exp %354 : vector<8x256xf32>
    %cst_98 = arith.constant 1.000000e+00 : f32
    %356 = vector.broadcast %cst_98 : f32 to vector<8x256xf32>
    %357 = arith.addf %356, %355 : vector<8x256xf32>
    %358 = arith.divf %356, %357 : vector<8x256xf32>
    %359 = vector.extract_strided_slice %358 {offsets = [0, 0], sizes = [8, 32], strides = [1, 1]} : vector<8x256xf32> to vector<8x32xf32>
    %360 = vector.extract_strided_slice %358 {offsets = [0, 32], sizes = [8, 32], strides = [1, 1]} : vector<8x256xf32> to vector<8x32xf32>
    %361 = vector.extract_strided_slice %358 {offsets = [0, 64], sizes = [8, 32], strides = [1, 1]} : vector<8x256xf32> to vector<8x32xf32>
    %362 = vector.extract_strided_slice %358 {offsets = [0, 96], sizes = [8, 32], strides = [1, 1]} : vector<8x256xf32> to vector<8x32xf32>
    %cst_99 = arith.constant 2.000000e+00 : f32
    %363 = vector.broadcast %cst_99 : f32 to vector<8x32xf32>
    %364 = arith.mulf %363, %362 : vector<8x32xf32>
    %cst_100 = arith.constant 1.000000e+00 : f32
    %365 = vector.broadcast %cst_100 : f32 to vector<8x32xf32>
    %366 = arith.subf %364, %365 : vector<8x32xf32>
    %367 = vector.extract_strided_slice %358 {offsets = [0, 128], sizes = [8, 32], strides = [1, 1]} : vector<8x256xf32> to vector<8x32xf32>
    %368 = vector.extract_strided_slice %358 {offsets = [0, 160], sizes = [8, 32], strides = [1, 1]} : vector<8x256xf32> to vector<8x32xf32>
    %369 = vector.extract_strided_slice %358 {offsets = [0, 192], sizes = [8, 32], strides = [1, 1]} : vector<8x256xf32> to vector<8x32xf32>
    %370 = vector.extract_strided_slice %358 {offsets = [0, 224], sizes = [8, 32], strides = [1, 1]} : vector<8x256xf32> to vector<8x32xf32>
    %cst_101 = arith.constant 2.000000e+00 : f32
    %371 = vector.broadcast %cst_101 : f32 to vector<8x32xf32>
    %372 = arith.mulf %371, %370 : vector<8x32xf32>
    %cst_102 = arith.constant 1.000000e+00 : f32
    %373 = vector.broadcast %cst_102 : f32 to vector<8x32xf32>
    %374 = arith.subf %372, %373 : vector<8x32xf32>
    %375 = arith.mulf %360, %337 : vector<8x32xf32>
    %376 = arith.mulf %359, %366 : vector<8x32xf32>
    %377 = arith.addf %375, %376 : vector<8x32xf32>
    %378 = arith.mulf %368, %340 : vector<8x32xf32>
    %379 = arith.mulf %367, %374 : vector<8x32xf32>
    %380 = arith.addf %378, %379 : vector<8x32xf32>
    %381 = tpu.concatenate %361, %369 in 1 : vector<8x32xf32>, vector<8x32xf32> -> vector<8x64xf32>
    %382 = tpu.concatenate %377, %380 in 1 : vector<8x32xf32>, vector<8x32xf32> -> vector<8x64xf32>
    %383 = math.tanh %382 : vector<8x64xf32>
    %384 = arith.mulf %381, %383 : vector<8x64xf32>
    %385 = vector.extract_strided_slice %384 {offsets = [0, 0], sizes = [8, 32], strides = [1, 1]} : vector<8x64xf32> to vector<8x32xf32>
    %c48_103 = arith.constant 48 : index
    %c0_104 = arith.constant 0 : index
    %386 = vector.load %arg5[%c48_103, %c0_104] : memref<72x64xf32, #tpu.memory_space<vmem>>, vector<8x32xf32>
    tpu.vector_store %arg5[%c48_103, %c0_104], %385 {strides = array<i32>} : memref<72x64xf32, #tpu.memory_space<vmem>>, vector<8x32xf32>,
    %387 = vector.extract_strided_slice %384 {offsets = [0, 32], sizes = [8, 32], strides = [1, 1]} : vector<8x64xf32> to vector<8x32xf32>
    %c16_105 = arith.constant 16 : index
    %c32_106 = arith.constant 32 : index
    %388 = vector.load %arg5[%c16_105, %c32_106] : memref<72x64xf32, #tpu.memory_space<vmem>>, vector<8x32xf32>
    tpu.vector_store %arg5[%c16_105, %c32_106], %387 {strides = array<i32>} : memref<72x64xf32, #tpu.memory_space<vmem>>, vector<8x32xf32>,
    %389 = vector.extract_strided_slice %104 {offsets = [56, 0], sizes = [8, 128], strides = [1, 1]} : vector<72x256xf32> to vector<8x128xf32>
    %390 = vector.extract_strided_slice %104 {offsets = [8, 128], sizes = [8, 128], strides = [1, 1]} : vector<72x256xf32> to vector<8x128xf32>
    %391 = tpu.concatenate %389, %390 in 1 : vector<8x128xf32>, vector<8x128xf32> -> vector<8x256xf32>
    %cst_107 = arith.constant dense<0.000000e+00> : vector<8x256xf32>
    %392 = tpu.matmul %384, %105, %cst_107 {dimension_numbers = #tpu.dot_dimension_numbers<[1], [0], [0], [1], [0, 0, 1, 1], [], []>} : vector<8x64xf32>, vector<64x256xf32>, vector<8x256xf32> -> vector<8x256xf32>
    %393 = arith.addf %391, %392 : vector<8x256xf32>
    %394 = arith.negf %393 : vector<8x256xf32>
    %395 = math.exp %394 : vector<8x256xf32>
    %cst_108 = arith.constant 1.000000e+00 : f32
    %396 = vector.broadcast %cst_108 : f32 to vector<8x256xf32>
    %397 = arith.addf %396, %395 : vector<8x256xf32>
    %398 = arith.divf %396, %397 : vector<8x256xf32>
    %399 = vector.extract_strided_slice %398 {offsets = [0, 0], sizes = [8, 32], strides = [1, 1]} : vector<8x256xf32> to vector<8x32xf32>
    %400 = vector.extract_strided_slice %398 {offsets = [0, 32], sizes = [8, 32], strides = [1, 1]} : vector<8x256xf32> to vector<8x32xf32>
    %401 = vector.extract_strided_slice %398 {offsets = [0, 64], sizes = [8, 32], strides = [1, 1]} : vector<8x256xf32> to vector<8x32xf32>
    %402 = vector.extract_strided_slice %398 {offsets = [0, 96], sizes = [8, 32], strides = [1, 1]} : vector<8x256xf32> to vector<8x32xf32>
    %cst_109 = arith.constant 2.000000e+00 : f32
    %403 = vector.broadcast %cst_109 : f32 to vector<8x32xf32>
    %404 = arith.mulf %403, %402 : vector<8x32xf32>
    %cst_110 = arith.constant 1.000000e+00 : f32
    %405 = vector.broadcast %cst_110 : f32 to vector<8x32xf32>
    %406 = arith.subf %404, %405 : vector<8x32xf32>
    %407 = vector.extract_strided_slice %398 {offsets = [0, 128], sizes = [8, 32], strides = [1, 1]} : vector<8x256xf32> to vector<8x32xf32>
    %408 = vector.extract_strided_slice %398 {offsets = [0, 160], sizes = [8, 32], strides = [1, 1]} : vector<8x256xf32> to vector<8x32xf32>
    %409 = vector.extract_strided_slice %398 {offsets = [0, 192], sizes = [8, 32], strides = [1, 1]} : vector<8x256xf32> to vector<8x32xf32>
    %410 = vector.extract_strided_slice %398 {offsets = [0, 224], sizes = [8, 32], strides = [1, 1]} : vector<8x256xf32> to vector<8x32xf32>
    %cst_111 = arith.constant 2.000000e+00 : f32
    %411 = vector.broadcast %cst_111 : f32 to vector<8x32xf32>
    %412 = arith.mulf %411, %410 : vector<8x32xf32>
    %cst_112 = arith.constant 1.000000e+00 : f32
    %413 = vector.broadcast %cst_112 : f32 to vector<8x32xf32>
    %414 = arith.subf %412, %413 : vector<8x32xf32>
    %415 = arith.mulf %400, %377 : vector<8x32xf32>
    %416 = arith.mulf %399, %406 : vector<8x32xf32>
    %417 = arith.addf %415, %416 : vector<8x32xf32>
    %418 = arith.mulf %408, %380 : vector<8x32xf32>
    %419 = arith.mulf %407, %414 : vector<8x32xf32>
    %420 = arith.addf %418, %419 : vector<8x32xf32>
    %421 = tpu.concatenate %401, %409 in 1 : vector<8x32xf32>, vector<8x32xf32> -> vector<8x64xf32>
    %422 = tpu.concatenate %417, %420 in 1 : vector<8x32xf32>, vector<8x32xf32> -> vector<8x64xf32>
    %423 = math.tanh %422 : vector<8x64xf32>
    %424 = arith.mulf %421, %423 : vector<8x64xf32>
    %425 = vector.extract_strided_slice %424 {offsets = [0, 0], sizes = [8, 32], strides = [1, 1]} : vector<8x64xf32> to vector<8x32xf32>
    %c56_113 = arith.constant 56 : index
    %c0_114 = arith.constant 0 : index
    %426 = vector.load %arg5[%c56_113, %c0_114] : memref<72x64xf32, #tpu.memory_space<vmem>>, vector<8x32xf32>
    tpu.vector_store %arg5[%c56_113, %c0_114], %425 {strides = array<i32>} : memref<72x64xf32, #tpu.memory_space<vmem>>, vector<8x32xf32>,
    %427 = vector.extract_strided_slice %424 {offsets = [0, 32], sizes = [8, 32], strides = [1, 1]} : vector<8x64xf32> to vector<8x32xf32>
    %c8_115 = arith.constant 8 : index
    %c32_116 = arith.constant 32 : index
    %428 = vector.load %arg5[%c8_115, %c32_116] : memref<72x64xf32, #tpu.memory_space<vmem>>, vector<8x32xf32>
    tpu.vector_store %arg5[%c8_115, %c32_116], %427 {strides = array<i32>} : memref<72x64xf32, #tpu.memory_space<vmem>>, vector<8x32xf32>,
    %429 = vector.extract_strided_slice %104 {offsets = [64, 0], sizes = [8, 128], strides = [1, 1]} : vector<72x256xf32> to vector<8x128xf32>
    %430 = vector.extract_strided_slice %104 {offsets = [0, 128], sizes = [8, 128], strides = [1, 1]} : vector<72x256xf32> to vector<8x128xf32>
    %431 = tpu.concatenate %429, %430 in 1 : vector<8x128xf32>, vector<8x128xf32> -> vector<8x256xf32>
    %cst_117 = arith.constant dense<0.000000e+00> : vector<8x256xf32>
    %432 = tpu.matmul %424, %105, %cst_117 {dimension_numbers = #tpu.dot_dimension_numbers<[1], [0], [0], [1], [0, 0, 1, 1], [], []>} : vector<8x64xf32>, vector<64x256xf32>, vector<8x256xf32> -> vector<8x256xf32>
    %433 = arith.addf %431, %432 : vector<8x256xf32>
    %434 = arith.negf %433 : vector<8x256xf32>
    %435 = math.exp %434 : vector<8x256xf32>
    %cst_118 = arith.constant 1.000000e+00 : f32
    %436 = vector.broadcast %cst_118 : f32 to vector<8x256xf32>
    %437 = arith.addf %436, %435 : vector<8x256xf32>
    %438 = arith.divf %436, %437 : vector<8x256xf32>
    %439 = vector.extract_strided_slice %438 {offsets = [0, 0], sizes = [8, 32], strides = [1, 1]} : vector<8x256xf32> to vector<8x32xf32>
    %440 = vector.extract_strided_slice %438 {offsets = [0, 32], sizes = [8, 32], strides = [1, 1]} : vector<8x256xf32> to vector<8x32xf32>
    %441 = vector.extract_strided_slice %438 {offsets = [0, 64], sizes = [8, 32], strides = [1, 1]} : vector<8x256xf32> to vector<8x32xf32>
    %442 = vector.extract_strided_slice %438 {offsets = [0, 96], sizes = [8, 32], strides = [1, 1]} : vector<8x256xf32> to vector<8x32xf32>
    %cst_119 = arith.constant 2.000000e+00 : f32
    %443 = vector.broadcast %cst_119 : f32 to vector<8x32xf32>
    %444 = arith.mulf %443, %442 : vector<8x32xf32>
    %cst_120 = arith.constant 1.000000e+00 : f32
    %445 = vector.broadcast %cst_120 : f32 to vector<8x32xf32>
    %446 = arith.subf %444, %445 : vector<8x32xf32>
    %447 = vector.extract_strided_slice %438 {offsets = [0, 128], sizes = [8, 32], strides = [1, 1]} : vector<8x256xf32> to vector<8x32xf32>
    %448 = vector.extract_strided_slice %438 {offsets = [0, 160], sizes = [8, 32], strides = [1, 1]} : vector<8x256xf32> to vector<8x32xf32>
    %449 = vector.extract_strided_slice %438 {offsets = [0, 192], sizes = [8, 32], strides = [1, 1]} : vector<8x256xf32> to vector<8x32xf32>
    %450 = vector.extract_strided_slice %438 {offsets = [0, 224], sizes = [8, 32], strides = [1, 1]} : vector<8x256xf32> to vector<8x32xf32>
    %cst_121 = arith.constant 2.000000e+00 : f32
    %451 = vector.broadcast %cst_121 : f32 to vector<8x32xf32>
    %452 = arith.mulf %451, %450 : vector<8x32xf32>
    %cst_122 = arith.constant 1.000000e+00 : f32
    %453 = vector.broadcast %cst_122 : f32 to vector<8x32xf32>
    %454 = arith.subf %452, %453 : vector<8x32xf32>
    %455 = arith.mulf %440, %417 : vector<8x32xf32>
    %456 = arith.mulf %439, %446 : vector<8x32xf32>
    %457 = arith.addf %455, %456 : vector<8x32xf32>
    %458 = arith.mulf %448, %420 : vector<8x32xf32>
    %459 = arith.mulf %447, %454 : vector<8x32xf32>
    %460 = arith.addf %458, %459 : vector<8x32xf32>
    %461 = tpu.concatenate %441, %449 in 1 : vector<8x32xf32>, vector<8x32xf32> -> vector<8x64xf32>
    %462 = tpu.concatenate %457, %460 in 1 : vector<8x32xf32>, vector<8x32xf32> -> vector<8x64xf32>
    %463 = math.tanh %462 : vector<8x64xf32>
    %464 = arith.mulf %461, %463 : vector<8x64xf32>
    %465 = vector.extract_strided_slice %464 {offsets = [0, 0], sizes = [8, 32], strides = [1, 1]} : vector<8x64xf32> to vector<8x32xf32>
    %c64_123 = arith.constant 64 : index
    %c0_124 = arith.constant 0 : index
    %466 = vector.load %arg5[%c64_123, %c0_124] : memref<72x64xf32, #tpu.memory_space<vmem>>, vector<8x32xf32>
    tpu.vector_store %arg5[%c64_123, %c0_124], %465 {strides = array<i32>} : memref<72x64xf32, #tpu.memory_space<vmem>>, vector<8x32xf32>,
    %467 = vector.extract_strided_slice %464 {offsets = [0, 32], sizes = [8, 32], strides = [1, 1]} : vector<8x64xf32> to vector<8x32xf32>
    %c0_125 = arith.constant 0 : index
    %c32_126 = arith.constant 32 : index
    %468 = vector.load %arg5[%c0_125, %c32_126] : memref<72x64xf32, #tpu.memory_space<vmem>>, vector<8x32xf32>
    tpu.vector_store %arg5[%c0_125, %c32_126], %467 {strides = array<i32>} : memref<72x64xf32, #tpu.memory_space<vmem>>, vector<8x32xf32>,
    %c0_127 = arith.constant 0 : index
    %c0_128 = arith.constant 0 : index
    %469 = vector.load %arg5[%c0_127, %c0_128] : memref<72x64xf32, #tpu.memory_space<vmem>>, vector<72x64xf32>
    %470 = arith.truncf %469 : vector<72x64xf32> to vector<72x64xbf16>
    %c184 = arith.constant 184 : index
    %c0_129 = arith.constant 0 : index
    %471 = vector.load %arg2[%c184, %c0_129] : memref<536x256xf32, #tpu.memory_space<vmem>>, vector<64x256xf32>
    %472 = arith.truncf %471 : vector<64x256xf32> to vector<64x256xbf16>
    %cst_130 = arith.constant dense<0.000000e+00> : vector<72x256xf32>
    %473 = tpu.matmul %470, %472, %cst_130 {dimension_numbers = #tpu.dot_dimension_numbers<[1], [0], [0], [1], [0, 0, 1, 1], [], []>} : vector<72x64xbf16>, vector<64x256xbf16>, vector<72x256xf32> -> vector<72x256xf32>
    %c9 = arith.constant 9 : index
    %c0_131 = arith.constant 0 : index
    %474 = vector.load %arg3[%c9, %c0_131] : memref<16x256xf32, #tpu.memory_space<vmem>>, vector<1x256xf32>
    %475 = vector.broadcast %474 : vector<1x256xf32> to vector<72x256xf32>
    %476 = arith.addf %473, %475 : vector<72x256xf32>
    %c248 = arith.constant 248 : index
    %c0_132 = arith.constant 0 : index
    %477 = vector.load %arg2[%c248, %c0_132] : memref<536x256xf32, #tpu.memory_space<vmem>>, vector<64x256xf32>
    %cst_133 = arith.constant 0.000000e+00 : f32
    %478 = vector.broadcast %cst_133 : f32 to vector<8x64xf32>
    %cst_134 = arith.constant 0.000000e+00 : f32
    %479 = vector.broadcast %cst_134 : f32 to vector<8x32xf32>
    %cst_135 = arith.constant 0.000000e+00 : f32
    %480 = vector.broadcast %cst_135 : f32 to vector<8x32xf32>
    %481 = vector.extract_strided_slice %476 {offsets = [0, 0], sizes = [8, 128], strides = [1, 1]} : vector<72x256xf32> to vector<8x128xf32>
    %482 = vector.extract_strided_slice %476 {offsets = [64, 128], sizes = [8, 128], strides = [1, 1]} : vector<72x256xf32> to vector<8x128xf32>
    %483 = tpu.concatenate %481, %482 in 1 : vector<8x128xf32>, vector<8x128xf32> -> vector<8x256xf32>
    %cst_136 = arith.constant dense<0.000000e+00> : vector<8x256xf32>
    %484 = tpu.matmul %478, %477, %cst_136 {dimension_numbers = #tpu.dot_dimension_numbers<[1], [0], [0], [1], [0, 0, 1, 1], [], []>} : vector<8x64xf32>, vector<64x256xf32>, vector<8x256xf32> -> vector<8x256xf32>
    %485 = arith.addf %483, %484 : vector<8x256xf32>
    %486 = arith.negf %485 : vector<8x256xf32>
    %487 = math.exp %486 : vector<8x256xf32>
    %cst_137 = arith.constant 1.000000e+00 : f32
    %488 = vector.broadcast %cst_137 : f32 to vector<8x256xf32>
    %489 = arith.addf %488, %487 : vector<8x256xf32>
    %490 = arith.divf %488, %489 : vector<8x256xf32>
    %491 = vector.extract_strided_slice %490 {offsets = [0, 0], sizes = [8, 32], strides = [1, 1]} : vector<8x256xf32> to vector<8x32xf32>
    %492 = vector.extract_strided_slice %490 {offsets = [0, 32], sizes = [8, 32], strides = [1, 1]} : vector<8x256xf32> to vector<8x32xf32>
    %493 = vector.extract_strided_slice %490 {offsets = [0, 64], sizes = [8, 32], strides = [1, 1]} : vector<8x256xf32> to vector<8x32xf32>
    %494 = vector.extract_strided_slice %490 {offsets = [0, 96], sizes = [8, 32], strides = [1, 1]} : vector<8x256xf32> to vector<8x32xf32>
    %cst_138 = arith.constant 2.000000e+00 : f32
    %495 = vector.broadcast %cst_138 : f32 to vector<8x32xf32>
    %496 = arith.mulf %495, %494 : vector<8x32xf32>
    %cst_139 = arith.constant 1.000000e+00 : f32
    %497 = vector.broadcast %cst_139 : f32 to vector<8x32xf32>
    %498 = arith.subf %496, %497 : vector<8x32xf32>
    %499 = vector.extract_strided_slice %490 {offsets = [0, 128], sizes = [8, 32], strides = [1, 1]} : vector<8x256xf32> to vector<8x32xf32>
    %500 = vector.extract_strided_slice %490 {offsets = [0, 160], sizes = [8, 32], strides = [1, 1]} : vector<8x256xf32> to vector<8x32xf32>
    %501 = vector.extract_strided_slice %490 {offsets = [0, 192], sizes = [8, 32], strides = [1, 1]} : vector<8x256xf32> to vector<8x32xf32>
    %502 = vector.extract_strided_slice %490 {offsets = [0, 224], sizes = [8, 32], strides = [1, 1]} : vector<8x256xf32> to vector<8x32xf32>
    %cst_140 = arith.constant 2.000000e+00 : f32
    %503 = vector.broadcast %cst_140 : f32 to vector<8x32xf32>
    %504 = arith.mulf %503, %502 : vector<8x32xf32>
    %cst_141 = arith.constant 1.000000e+00 : f32
    %505 = vector.broadcast %cst_141 : f32 to vector<8x32xf32>
    %506 = arith.subf %504, %505 : vector<8x32xf32>
    %507 = arith.mulf %492, %479 : vector<8x32xf32>
    %508 = arith.mulf %491, %498 : vector<8x32xf32>
    %509 = arith.addf %507, %508 : vector<8x32xf32>
    %510 = arith.mulf %500, %480 : vector<8x32xf32>
    %511 = arith.mulf %499, %506 : vector<8x32xf32>
    %512 = arith.addf %510, %511 : vector<8x32xf32>
    %513 = tpu.concatenate %493, %501 in 1 : vector<8x32xf32>, vector<8x32xf32> -> vector<8x64xf32>
    %514 = tpu.concatenate %509, %512 in 1 : vector<8x32xf32>, vector<8x32xf32> -> vector<8x64xf32>
    %515 = math.tanh %514 : vector<8x64xf32>
    %516 = arith.mulf %513, %515 : vector<8x64xf32>
    %517 = vector.extract_strided_slice %516 {offsets = [0, 0], sizes = [8, 32], strides = [1, 1]} : vector<8x64xf32> to vector<8x32xf32>
    %c0_142 = arith.constant 0 : index
    %c0_143 = arith.constant 0 : index
    %518 = vector.load %arg6[%c0_142, %c0_143] : memref<72x64xf32, #tpu.memory_space<vmem>>, vector<8x32xf32>
    tpu.vector_store %arg6[%c0_142, %c0_143], %517 {strides = array<i32>} : memref<72x64xf32, #tpu.memory_space<vmem>>, vector<8x32xf32>,
    %519 = vector.extract_strided_slice %516 {offsets = [0, 32], sizes = [8, 32], strides = [1, 1]} : vector<8x64xf32> to vector<8x32xf32>
    %c64_144 = arith.constant 64 : index
    %c32_145 = arith.constant 32 : index
    %520 = vector.load %arg6[%c64_144, %c32_145] : memref<72x64xf32, #tpu.memory_space<vmem>>, vector<8x32xf32>
    tpu.vector_store %arg6[%c64_144, %c32_145], %519 {strides = array<i32>} : memref<72x64xf32, #tpu.memory_space<vmem>>, vector<8x32xf32>,
    %521 = vector.extract_strided_slice %476 {offsets = [8, 0], sizes = [8, 128], strides = [1, 1]} : vector<72x256xf32> to vector<8x128xf32>
    %522 = vector.extract_strided_slice %476 {offsets = [56, 128], sizes = [8, 128], strides = [1, 1]} : vector<72x256xf32> to vector<8x128xf32>
    %523 = tpu.concatenate %521, %522 in 1 : vector<8x128xf32>, vector<8x128xf32> -> vector<8x256xf32>
    %cst_146 = arith.constant dense<0.000000e+00> : vector<8x256xf32>
    %524 = tpu.matmul %516, %477, %cst_146 {dimension_numbers = #tpu.dot_dimension_numbers<[1], [0], [0], [1], [0, 0, 1, 1], [], []>} : vector<8x64xf32>, vector<64x256xf32>, vector<8x256xf32> -> vector<8x256xf32>
    %525 = arith.addf %523, %524 : vector<8x256xf32>
    %526 = arith.negf %525 : vector<8x256xf32>
    %527 = math.exp %526 : vector<8x256xf32>
    %cst_147 = arith.constant 1.000000e+00 : f32
    %528 = vector.broadcast %cst_147 : f32 to vector<8x256xf32>
    %529 = arith.addf %528, %527 : vector<8x256xf32>
    %530 = arith.divf %528, %529 : vector<8x256xf32>
    %531 = vector.extract_strided_slice %530 {offsets = [0, 0], sizes = [8, 32], strides = [1, 1]} : vector<8x256xf32> to vector<8x32xf32>
    %532 = vector.extract_strided_slice %530 {offsets = [0, 32], sizes = [8, 32], strides = [1, 1]} : vector<8x256xf32> to vector<8x32xf32>
    %533 = vector.extract_strided_slice %530 {offsets = [0, 64], sizes = [8, 32], strides = [1, 1]} : vector<8x256xf32> to vector<8x32xf32>
    %534 = vector.extract_strided_slice %530 {offsets = [0, 96], sizes = [8, 32], strides = [1, 1]} : vector<8x256xf32> to vector<8x32xf32>
    %cst_148 = arith.constant 2.000000e+00 : f32
    %535 = vector.broadcast %cst_148 : f32 to vector<8x32xf32>
    %536 = arith.mulf %535, %534 : vector<8x32xf32>
    %cst_149 = arith.constant 1.000000e+00 : f32
    %537 = vector.broadcast %cst_149 : f32 to vector<8x32xf32>
    %538 = arith.subf %536, %537 : vector<8x32xf32>
    %539 = vector.extract_strided_slice %530 {offsets = [0, 128], sizes = [8, 32], strides = [1, 1]} : vector<8x256xf32> to vector<8x32xf32>
    %540 = vector.extract_strided_slice %530 {offsets = [0, 160], sizes = [8, 32], strides = [1, 1]} : vector<8x256xf32> to vector<8x32xf32>
    %541 = vector.extract_strided_slice %530 {offsets = [0, 192], sizes = [8, 32], strides = [1, 1]} : vector<8x256xf32> to vector<8x32xf32>
    %542 = vector.extract_strided_slice %530 {offsets = [0, 224], sizes = [8, 32], strides = [1, 1]} : vector<8x256xf32> to vector<8x32xf32>
    %cst_150 = arith.constant 2.000000e+00 : f32
    %543 = vector.broadcast %cst_150 : f32 to vector<8x32xf32>
    %544 = arith.mulf %543, %542 : vector<8x32xf32>
    %cst_151 = arith.constant 1.000000e+00 : f32
    %545 = vector.broadcast %cst_151 : f32 to vector<8x32xf32>
    %546 = arith.subf %544, %545 : vector<8x32xf32>
    %547 = arith.mulf %532, %509 : vector<8x32xf32>
    %548 = arith.mulf %531, %538 : vector<8x32xf32>
    %549 = arith.addf %547, %548 : vector<8x32xf32>
    %550 = arith.mulf %540, %512 : vector<8x32xf32>
    %551 = arith.mulf %539, %546 : vector<8x32xf32>
    %552 = arith.addf %550, %551 : vector<8x32xf32>
    %553 = tpu.concatenate %533, %541 in 1 : vector<8x32xf32>, vector<8x32xf32> -> vector<8x64xf32>
    %554 = tpu.concatenate %549, %552 in 1 : vector<8x32xf32>, vector<8x32xf32> -> vector<8x64xf32>
    %555 = math.tanh %554 : vector<8x64xf32>
    %556 = arith.mulf %553, %555 : vector<8x64xf32>
    %557 = vector.extract_strided_slice %556 {offsets = [0, 0], sizes = [8, 32], strides = [1, 1]} : vector<8x64xf32> to vector<8x32xf32>
    %c8_152 = arith.constant 8 : index
    %c0_153 = arith.constant 0 : index
    %558 = vector.load %arg6[%c8_152, %c0_153] : memref<72x64xf32, #tpu.memory_space<vmem>>, vector<8x32xf32>
    tpu.vector_store %arg6[%c8_152, %c0_153], %557 {strides = array<i32>} : memref<72x64xf32, #tpu.memory_space<vmem>>, vector<8x32xf32>,
    %559 = vector.extract_strided_slice %556 {offsets = [0, 32], sizes = [8, 32], strides = [1, 1]} : vector<8x64xf32> to vector<8x32xf32>
    %c56_154 = arith.constant 56 : index
    %c32_155 = arith.constant 32 : index
    %560 = vector.load %arg6[%c56_154, %c32_155] : memref<72x64xf32, #tpu.memory_space<vmem>>, vector<8x32xf32>
    tpu.vector_store %arg6[%c56_154, %c32_155], %559 {strides = array<i32>} : memref<72x64xf32, #tpu.memory_space<vmem>>, vector<8x32xf32>,
    %561 = vector.extract_strided_slice %476 {offsets = [16, 0], sizes = [8, 128], strides = [1, 1]} : vector<72x256xf32> to vector<8x128xf32>
    %562 = vector.extract_strided_slice %476 {offsets = [48, 128], sizes = [8, 128], strides = [1, 1]} : vector<72x256xf32> to vector<8x128xf32>
    %563 = tpu.concatenate %561, %562 in 1 : vector<8x128xf32>, vector<8x128xf32> -> vector<8x256xf32>
    %cst_156 = arith.constant dense<0.000000e+00> : vector<8x256xf32>
    %564 = tpu.matmul %556, %477, %cst_156 {dimension_numbers = #tpu.dot_dimension_numbers<[1], [0], [0], [1], [0, 0, 1, 1], [], []>} : vector<8x64xf32>, vector<64x256xf32>, vector<8x256xf32> -> vector<8x256xf32>
    %565 = arith.addf %563, %564 : vector<8x256xf32>
    %566 = arith.negf %565 : vector<8x256xf32>
    %567 = math.exp %566 : vector<8x256xf32>
    %cst_157 = arith.constant 1.000000e+00 : f32
    %568 = vector.broadcast %cst_157 : f32 to vector<8x256xf32>
    %569 = arith.addf %568, %567 : vector<8x256xf32>
    %570 = arith.divf %568, %569 : vector<8x256xf32>
    %571 = vector.extract_strided_slice %570 {offsets = [0, 0], sizes = [8, 32], strides = [1, 1]} : vector<8x256xf32> to vector<8x32xf32>
    %572 = vector.extract_strided_slice %570 {offsets = [0, 32], sizes = [8, 32], strides = [1, 1]} : vector<8x256xf32> to vector<8x32xf32>
    %573 = vector.extract_strided_slice %570 {offsets = [0, 64], sizes = [8, 32], strides = [1, 1]} : vector<8x256xf32> to vector<8x32xf32>
    %574 = vector.extract_strided_slice %570 {offsets = [0, 96], sizes = [8, 32], strides = [1, 1]} : vector<8x256xf32> to vector<8x32xf32>
    %cst_158 = arith.constant 2.000000e+00 : f32
    %575 = vector.broadcast %cst_158 : f32 to vector<8x32xf32>
    %576 = arith.mulf %575, %574 : vector<8x32xf32>
    %cst_159 = arith.constant 1.000000e+00 : f32
    %577 = vector.broadcast %cst_159 : f32 to vector<8x32xf32>
    %578 = arith.subf %576, %577 : vector<8x32xf32>
    %579 = vector.extract_strided_slice %570 {offsets = [0, 128], sizes = [8, 32], strides = [1, 1]} : vector<8x256xf32> to vector<8x32xf32>
    %580 = vector.extract_strided_slice %570 {offsets = [0, 160], sizes = [8, 32], strides = [1, 1]} : vector<8x256xf32> to vector<8x32xf32>
    %581 = vector.extract_strided_slice %570 {offsets = [0, 192], sizes = [8, 32], strides = [1, 1]} : vector<8x256xf32> to vector<8x32xf32>
    %582 = vector.extract_strided_slice %570 {offsets = [0, 224], sizes = [8, 32], strides = [1, 1]} : vector<8x256xf32> to vector<8x32xf32>
    %cst_160 = arith.constant 2.000000e+00 : f32
    %583 = vector.broadcast %cst_160 : f32 to vector<8x32xf32>
    %584 = arith.mulf %583, %582 : vector<8x32xf32>
    %cst_161 = arith.constant 1.000000e+00 : f32
    %585 = vector.broadcast %cst_161 : f32 to vector<8x32xf32>
    %586 = arith.subf %584, %585 : vector<8x32xf32>
    %587 = arith.mulf %572, %549 : vector<8x32xf32>
    %588 = arith.mulf %571, %578 : vector<8x32xf32>
    %589 = arith.addf %587, %588 : vector<8x32xf32>
    %590 = arith.mulf %580, %552 : vector<8x32xf32>
    %591 = arith.mulf %579, %586 : vector<8x32xf32>
    %592 = arith.addf %590, %591 : vector<8x32xf32>
    %593 = tpu.concatenate %573, %581 in 1 : vector<8x32xf32>, vector<8x32xf32> -> vector<8x64xf32>
    %594 = tpu.concatenate %589, %592 in 1 : vector<8x32xf32>, vector<8x32xf32> -> vector<8x64xf32>
    %595 = math.tanh %594 : vector<8x64xf32>
    %596 = arith.mulf %593, %595 : vector<8x64xf32>
    %597 = vector.extract_strided_slice %596 {offsets = [0, 0], sizes = [8, 32], strides = [1, 1]} : vector<8x64xf32> to vector<8x32xf32>
    %c16_162 = arith.constant 16 : index
    %c0_163 = arith.constant 0 : index
    %598 = vector.load %arg6[%c16_162, %c0_163] : memref<72x64xf32, #tpu.memory_space<vmem>>, vector<8x32xf32>
    tpu.vector_store %arg6[%c16_162, %c0_163], %597 {strides = array<i32>} : memref<72x64xf32, #tpu.memory_space<vmem>>, vector<8x32xf32>,
    %599 = vector.extract_strided_slice %596 {offsets = [0, 32], sizes = [8, 32], strides = [1, 1]} : vector<8x64xf32> to vector<8x32xf32>
    %c48_164 = arith.constant 48 : index
    %c32_165 = arith.constant 32 : index
    %600 = vector.load %arg6[%c48_164, %c32_165] : memref<72x64xf32, #tpu.memory_space<vmem>>, vector<8x32xf32>
    tpu.vector_store %arg6[%c48_164, %c32_165], %599 {strides = array<i32>} : memref<72x64xf32, #tpu.memory_space<vmem>>, vector<8x32xf32>,
    %601 = vector.extract_strided_slice %476 {offsets = [24, 0], sizes = [8, 128], strides = [1, 1]} : vector<72x256xf32> to vector<8x128xf32>
    %602 = vector.extract_strided_slice %476 {offsets = [40, 128], sizes = [8, 128], strides = [1, 1]} : vector<72x256xf32> to vector<8x128xf32>
    %603 = tpu.concatenate %601, %602 in 1 : vector<8x128xf32>, vector<8x128xf32> -> vector<8x256xf32>
    %cst_166 = arith.constant dense<0.000000e+00> : vector<8x256xf32>
    %604 = tpu.matmul %596, %477, %cst_166 {dimension_numbers = #tpu.dot_dimension_numbers<[1], [0], [0], [1], [0, 0, 1, 1], [], []>} : vector<8x64xf32>, vector<64x256xf32>, vector<8x256xf32> -> vector<8x256xf32>
    %605 = arith.addf %603, %604 : vector<8x256xf32>
    %606 = arith.negf %605 : vector<8x256xf32>
    %607 = math.exp %606 : vector<8x256xf32>
    %cst_167 = arith.constant 1.000000e+00 : f32
    %608 = vector.broadcast %cst_167 : f32 to vector<8x256xf32>
    %609 = arith.addf %608, %607 : vector<8x256xf32>
    %610 = arith.divf %608, %609 : vector<8x256xf32>
    %611 = vector.extract_strided_slice %610 {offsets = [0, 0], sizes = [8, 32], strides = [1, 1]} : vector<8x256xf32> to vector<8x32xf32>
    %612 = vector.extract_strided_slice %610 {offsets = [0, 32], sizes = [8, 32], strides = [1, 1]} : vector<8x256xf32> to vector<8x32xf32>
    %613 = vector.extract_strided_slice %610 {offsets = [0, 64], sizes = [8, 32], strides = [1, 1]} : vector<8x256xf32> to vector<8x32xf32>
    %614 = vector.extract_strided_slice %610 {offsets = [0, 96], sizes = [8, 32], strides = [1, 1]} : vector<8x256xf32> to vector<8x32xf32>
    %cst_168 = arith.constant 2.000000e+00 : f32
    %615 = vector.broadcast %cst_168 : f32 to vector<8x32xf32>
    %616 = arith.mulf %615, %614 : vector<8x32xf32>
    %cst_169 = arith.constant 1.000000e+00 : f32
    %617 = vector.broadcast %cst_169 : f32 to vector<8x32xf32>
    %618 = arith.subf %616, %617 : vector<8x32xf32>
    %619 = vector.extract_strided_slice %610 {offsets = [0, 128], sizes = [8, 32], strides = [1, 1]} : vector<8x256xf32> to vector<8x32xf32>
    %620 = vector.extract_strided_slice %610 {offsets = [0, 160], sizes = [8, 32], strides = [1, 1]} : vector<8x256xf32> to vector<8x32xf32>
    %621 = vector.extract_strided_slice %610 {offsets = [0, 192], sizes = [8, 32], strides = [1, 1]} : vector<8x256xf32> to vector<8x32xf32>
    %622 = vector.extract_strided_slice %610 {offsets = [0, 224], sizes = [8, 32], strides = [1, 1]} : vector<8x256xf32> to vector<8x32xf32>
    %cst_170 = arith.constant 2.000000e+00 : f32
    %623 = vector.broadcast %cst_170 : f32 to vector<8x32xf32>
    %624 = arith.mulf %623, %622 : vector<8x32xf32>
    %cst_171 = arith.constant 1.000000e+00 : f32
    %625 = vector.broadcast %cst_171 : f32 to vector<8x32xf32>
    %626 = arith.subf %624, %625 : vector<8x32xf32>
    %627 = arith.mulf %612, %589 : vector<8x32xf32>
    %628 = arith.mulf %611, %618 : vector<8x32xf32>
    %629 = arith.addf %627, %628 : vector<8x32xf32>
    %630 = arith.mulf %620, %592 : vector<8x32xf32>
    %631 = arith.mulf %619, %626 : vector<8x32xf32>
    %632 = arith.addf %630, %631 : vector<8x32xf32>
    %633 = tpu.concatenate %613, %621 in 1 : vector<8x32xf32>, vector<8x32xf32> -> vector<8x64xf32>
    %634 = tpu.concatenate %629, %632 in 1 : vector<8x32xf32>, vector<8x32xf32> -> vector<8x64xf32>
    %635 = math.tanh %634 : vector<8x64xf32>
    %636 = arith.mulf %633, %635 : vector<8x64xf32>
    %637 = vector.extract_strided_slice %636 {offsets = [0, 0], sizes = [8, 32], strides = [1, 1]} : vector<8x64xf32> to vector<8x32xf32>
    %c24_172 = arith.constant 24 : index
    %c0_173 = arith.constant 0 : index
    %638 = vector.load %arg6[%c24_172, %c0_173] : memref<72x64xf32, #tpu.memory_space<vmem>>, vector<8x32xf32>
    tpu.vector_store %arg6[%c24_172, %c0_173], %637 {strides = array<i32>} : memref<72x64xf32, #tpu.memory_space<vmem>>, vector<8x32xf32>,
    %639 = vector.extract_strided_slice %636 {offsets = [0, 32], sizes = [8, 32], strides = [1, 1]} : vector<8x64xf32> to vector<8x32xf32>
    %c40_174 = arith.constant 40 : index
    %c32_175 = arith.constant 32 : index
    %640 = vector.load %arg6[%c40_174, %c32_175] : memref<72x64xf32, #tpu.memory_space<vmem>>, vector<8x32xf32>
    tpu.vector_store %arg6[%c40_174, %c32_175], %639 {strides = array<i32>} : memref<72x64xf32, #tpu.memory_space<vmem>>, vector<8x32xf32>,
    %641 = vector.extract_strided_slice %476 {offsets = [32, 0], sizes = [8, 128], strides = [1, 1]} : vector<72x256xf32> to vector<8x128xf32>
    %642 = vector.extract_strided_slice %476 {offsets = [32, 128], sizes = [8, 128], strides = [1, 1]} : vector<72x256xf32> to vector<8x128xf32>
    %643 = tpu.concatenate %641, %642 in 1 : vector<8x128xf32>, vector<8x128xf32> -> vector<8x256xf32>
    %cst_176 = arith.constant dense<0.000000e+00> : vector<8x256xf32>
    %644 = tpu.matmul %636, %477, %cst_176 {dimension_numbers = #tpu.dot_dimension_numbers<[1], [0], [0], [1], [0, 0, 1, 1], [], []>} : vector<8x64xf32>, vector<64x256xf32>, vector<8x256xf32> -> vector<8x256xf32>
    %645 = arith.addf %643, %644 : vector<8x256xf32>
    %646 = arith.negf %645 : vector<8x256xf32>
    %647 = math.exp %646 : vector<8x256xf32>
    %cst_177 = arith.constant 1.000000e+00 : f32
    %648 = vector.broadcast %cst_177 : f32 to vector<8x256xf32>
    %649 = arith.addf %648, %647 : vector<8x256xf32>
    %650 = arith.divf %648, %649 : vector<8x256xf32>
    %651 = vector.extract_strided_slice %650 {offsets = [0, 0], sizes = [8, 32], strides = [1, 1]} : vector<8x256xf32> to vector<8x32xf32>
    %652 = vector.extract_strided_slice %650 {offsets = [0, 32], sizes = [8, 32], strides = [1, 1]} : vector<8x256xf32> to vector<8x32xf32>
    %653 = vector.extract_strided_slice %650 {offsets = [0, 64], sizes = [8, 32], strides = [1, 1]} : vector<8x256xf32> to vector<8x32xf32>
    %654 = vector.extract_strided_slice %650 {offsets = [0, 96], sizes = [8, 32], strides = [1, 1]} : vector<8x256xf32> to vector<8x32xf32>
    %cst_178 = arith.constant 2.000000e+00 : f32
    %655 = vector.broadcast %cst_178 : f32 to vector<8x32xf32>
    %656 = arith.mulf %655, %654 : vector<8x32xf32>
    %cst_179 = arith.constant 1.000000e+00 : f32
    %657 = vector.broadcast %cst_179 : f32 to vector<8x32xf32>
    %658 = arith.subf %656, %657 : vector<8x32xf32>
    %659 = vector.extract_strided_slice %650 {offsets = [0, 128], sizes = [8, 32], strides = [1, 1]} : vector<8x256xf32> to vector<8x32xf32>
    %660 = vector.extract_strided_slice %650 {offsets = [0, 160], sizes = [8, 32], strides = [1, 1]} : vector<8x256xf32> to vector<8x32xf32>
    %661 = vector.extract_strided_slice %650 {offsets = [0, 192], sizes = [8, 32], strides = [1, 1]} : vector<8x256xf32> to vector<8x32xf32>
    %662 = vector.extract_strided_slice %650 {offsets = [0, 224], sizes = [8, 32], strides = [1, 1]} : vector<8x256xf32> to vector<8x32xf32>
    %cst_180 = arith.constant 2.000000e+00 : f32
    %663 = vector.broadcast %cst_180 : f32 to vector<8x32xf32>
    %664 = arith.mulf %663, %662 : vector<8x32xf32>
    %cst_181 = arith.constant 1.000000e+00 : f32
    %665 = vector.broadcast %cst_181 : f32 to vector<8x32xf32>
    %666 = arith.subf %664, %665 : vector<8x32xf32>
    %667 = arith.mulf %652, %629 : vector<8x32xf32>
    %668 = arith.mulf %651, %658 : vector<8x32xf32>
    %669 = arith.addf %667, %668 : vector<8x32xf32>
    %670 = arith.mulf %660, %632 : vector<8x32xf32>
    %671 = arith.mulf %659, %666 : vector<8x32xf32>
    %672 = arith.addf %670, %671 : vector<8x32xf32>
    %673 = tpu.concatenate %653, %661 in 1 : vector<8x32xf32>, vector<8x32xf32> -> vector<8x64xf32>
    %674 = tpu.concatenate %669, %672 in 1 : vector<8x32xf32>, vector<8x32xf32> -> vector<8x64xf32>
    %675 = math.tanh %674 : vector<8x64xf32>
    %676 = arith.mulf %673, %675 : vector<8x64xf32>
    %677 = vector.extract_strided_slice %676 {offsets = [0, 0], sizes = [8, 32], strides = [1, 1]} : vector<8x64xf32> to vector<8x32xf32>
    %c32_182 = arith.constant 32 : index
    %c0_183 = arith.constant 0 : index
    %678 = vector.load %arg6[%c32_182, %c0_183] : memref<72x64xf32, #tpu.memory_space<vmem>>, vector<8x32xf32>
    tpu.vector_store %arg6[%c32_182, %c0_183], %677 {strides = array<i32>} : memref<72x64xf32, #tpu.memory_space<vmem>>, vector<8x32xf32>,
    %679 = vector.extract_strided_slice %676 {offsets = [0, 32], sizes = [8, 32], strides = [1, 1]} : vector<8x64xf32> to vector<8x32xf32>
    %c32_184 = arith.constant 32 : index
    %c32_185 = arith.constant 32 : index
    %680 = vector.load %arg6[%c32_184, %c32_185] : memref<72x64xf32, #tpu.memory_space<vmem>>, vector<8x32xf32>
    tpu.vector_store %arg6[%c32_184, %c32_185], %679 {strides = array<i32>} : memref<72x64xf32, #tpu.memory_space<vmem>>, vector<8x32xf32>,
    %681 = vector.extract_strided_slice %476 {offsets = [40, 0], sizes = [8, 128], strides = [1, 1]} : vector<72x256xf32> to vector<8x128xf32>
    %682 = vector.extract_strided_slice %476 {offsets = [24, 128], sizes = [8, 128], strides = [1, 1]} : vector<72x256xf32> to vector<8x128xf32>
    %683 = tpu.concatenate %681, %682 in 1 : vector<8x128xf32>, vector<8x128xf32> -> vector<8x256xf32>
    %cst_186 = arith.constant dense<0.000000e+00> : vector<8x256xf32>
    %684 = tpu.matmul %676, %477, %cst_186 {dimension_numbers = #tpu.dot_dimension_numbers<[1], [0], [0], [1], [0, 0, 1, 1], [], []>} : vector<8x64xf32>, vector<64x256xf32>, vector<8x256xf32> -> vector<8x256xf32>
    %685 = arith.addf %683, %684 : vector<8x256xf32>
    %686 = arith.negf %685 : vector<8x256xf32>
    %687 = math.exp %686 : vector<8x256xf32>
    %cst_187 = arith.constant 1.000000e+00 : f32
    %688 = vector.broadcast %cst_187 : f32 to vector<8x256xf32>
    %689 = arith.addf %688, %687 : vector<8x256xf32>
    %690 = arith.divf %688, %689 : vector<8x256xf32>
    %691 = vector.extract_strided_slice %690 {offsets = [0, 0], sizes = [8, 32], strides = [1, 1]} : vector<8x256xf32> to vector<8x32xf32>
    %692 = vector.extract_strided_slice %690 {offsets = [0, 32], sizes = [8, 32], strides = [1, 1]} : vector<8x256xf32> to vector<8x32xf32>
    %693 = vector.extract_strided_slice %690 {offsets = [0, 64], sizes = [8, 32], strides = [1, 1]} : vector<8x256xf32> to vector<8x32xf32>
    %694 = vector.extract_strided_slice %690 {offsets = [0, 96], sizes = [8, 32], strides = [1, 1]} : vector<8x256xf32> to vector<8x32xf32>
    %cst_188 = arith.constant 2.000000e+00 : f32
    %695 = vector.broadcast %cst_188 : f32 to vector<8x32xf32>
    %696 = arith.mulf %695, %694 : vector<8x32xf32>
    %cst_189 = arith.constant 1.000000e+00 : f32
    %697 = vector.broadcast %cst_189 : f32 to vector<8x32xf32>
    %698 = arith.subf %696, %697 : vector<8x32xf32>
    %699 = vector.extract_strided_slice %690 {offsets = [0, 128], sizes = [8, 32], strides = [1, 1]} : vector<8x256xf32> to vector<8x32xf32>
    %700 = vector.extract_strided_slice %690 {offsets = [0, 160], sizes = [8, 32], strides = [1, 1]} : vector<8x256xf32> to vector<8x32xf32>
    %701 = vector.extract_strided_slice %690 {offsets = [0, 192], sizes = [8, 32], strides = [1, 1]} : vector<8x256xf32> to vector<8x32xf32>
    %702 = vector.extract_strided_slice %690 {offsets = [0, 224], sizes = [8, 32], strides = [1, 1]} : vector<8x256xf32> to vector<8x32xf32>
    %cst_190 = arith.constant 2.000000e+00 : f32
    %703 = vector.broadcast %cst_190 : f32 to vector<8x32xf32>
    %704 = arith.mulf %703, %702 : vector<8x32xf32>
    %cst_191 = arith.constant 1.000000e+00 : f32
    %705 = vector.broadcast %cst_191 : f32 to vector<8x32xf32>
    %706 = arith.subf %704, %705 : vector<8x32xf32>
    %707 = arith.mulf %692, %669 : vector<8x32xf32>
    %708 = arith.mulf %691, %698 : vector<8x32xf32>
    %709 = arith.addf %707, %708 : vector<8x32xf32>
    %710 = arith.mulf %700, %672 : vector<8x32xf32>
    %711 = arith.mulf %699, %706 : vector<8x32xf32>
    %712 = arith.addf %710, %711 : vector<8x32xf32>
    %713 = tpu.concatenate %693, %701 in 1 : vector<8x32xf32>, vector<8x32xf32> -> vector<8x64xf32>
    %714 = tpu.concatenate %709, %712 in 1 : vector<8x32xf32>, vector<8x32xf32> -> vector<8x64xf32>
    %715 = math.tanh %714 : vector<8x64xf32>
    %716 = arith.mulf %713, %715 : vector<8x64xf32>
    %717 = vector.extract_strided_slice %716 {offsets = [0, 0], sizes = [8, 32], strides = [1, 1]} : vector<8x64xf32> to vector<8x32xf32>
    %c40_192 = arith.constant 40 : index
    %c0_193 = arith.constant 0 : index
    %718 = vector.load %arg6[%c40_192, %c0_193] : memref<72x64xf32, #tpu.memory_space<vmem>>, vector<8x32xf32>
    tpu.vector_store %arg6[%c40_192, %c0_193], %717 {strides = array<i32>} : memref<72x64xf32, #tpu.memory_space<vmem>>, vector<8x32xf32>,
    %719 = vector.extract_strided_slice %716 {offsets = [0, 32], sizes = [8, 32], strides = [1, 1]} : vector<8x64xf32> to vector<8x32xf32>
    %c24_194 = arith.constant 24 : index
    %c32_195 = arith.constant 32 : index
    %720 = vector.load %arg6[%c24_194, %c32_195] : memref<72x64xf32, #tpu.memory_space<vmem>>, vector<8x32xf32>
    tpu.vector_store %arg6[%c24_194, %c32_195], %719 {strides = array<i32>} : memref<72x64xf32, #tpu.memory_space<vmem>>, vector<8x32xf32>,
    %721 = vector.extract_strided_slice %476 {offsets = [48, 0], sizes = [8, 128], strides = [1, 1]} : vector<72x256xf32> to vector<8x128xf32>
    %722 = vector.extract_strided_slice %476 {offsets = [16, 128], sizes = [8, 128], strides = [1, 1]} : vector<72x256xf32> to vector<8x128xf32>
    %723 = tpu.concatenate %721, %722 in 1 : vector<8x128xf32>, vector<8x128xf32> -> vector<8x256xf32>
    %cst_196 = arith.constant dense<0.000000e+00> : vector<8x256xf32>
    %724 = tpu.matmul %716, %477, %cst_196 {dimension_numbers = #tpu.dot_dimension_numbers<[1], [0], [0], [1], [0, 0, 1, 1], [], []>} : vector<8x64xf32>, vector<64x256xf32>, vector<8x256xf32> -> vector<8x256xf32>
    %725 = arith.addf %723, %724 : vector<8x256xf32>
    %726 = arith.negf %725 : vector<8x256xf32>
    %727 = math.exp %726 : vector<8x256xf32>
    %cst_197 = arith.constant 1.000000e+00 : f32
    %728 = vector.broadcast %cst_197 : f32 to vector<8x256xf32>
    %729 = arith.addf %728, %727 : vector<8x256xf32>
    %730 = arith.divf %728, %729 : vector<8x256xf32>
    %731 = vector.extract_strided_slice %730 {offsets = [0, 0], sizes = [8, 32], strides = [1, 1]} : vector<8x256xf32> to vector<8x32xf32>
    %732 = vector.extract_strided_slice %730 {offsets = [0, 32], sizes = [8, 32], strides = [1, 1]} : vector<8x256xf32> to vector<8x32xf32>
    %733 = vector.extract_strided_slice %730 {offsets = [0, 64], sizes = [8, 32], strides = [1, 1]} : vector<8x256xf32> to vector<8x32xf32>
    %734 = vector.extract_strided_slice %730 {offsets = [0, 96], sizes = [8, 32], strides = [1, 1]} : vector<8x256xf32> to vector<8x32xf32>
    %cst_198 = arith.constant 2.000000e+00 : f32
    %735 = vector.broadcast %cst_198 : f32 to vector<8x32xf32>
    %736 = arith.mulf %735, %734 : vector<8x32xf32>
    %cst_199 = arith.constant 1.000000e+00 : f32
    %737 = vector.broadcast %cst_199 : f32 to vector<8x32xf32>
    %738 = arith.subf %736, %737 : vector<8x32xf32>
    %739 = vector.extract_strided_slice %730 {offsets = [0, 128], sizes = [8, 32], strides = [1, 1]} : vector<8x256xf32> to vector<8x32xf32>
    %740 = vector.extract_strided_slice %730 {offsets = [0, 160], sizes = [8, 32], strides = [1, 1]} : vector<8x256xf32> to vector<8x32xf32>
    %741 = vector.extract_strided_slice %730 {offsets = [0, 192], sizes = [8, 32], strides = [1, 1]} : vector<8x256xf32> to vector<8x32xf32>
    %742 = vector.extract_strided_slice %730 {offsets = [0, 224], sizes = [8, 32], strides = [1, 1]} : vector<8x256xf32> to vector<8x32xf32>
    %cst_200 = arith.constant 2.000000e+00 : f32
    %743 = vector.broadcast %cst_200 : f32 to vector<8x32xf32>
    %744 = arith.mulf %743, %742 : vector<8x32xf32>
    %cst_201 = arith.constant 1.000000e+00 : f32
    %745 = vector.broadcast %cst_201 : f32 to vector<8x32xf32>
    %746 = arith.subf %744, %745 : vector<8x32xf32>
    %747 = arith.mulf %732, %709 : vector<8x32xf32>
    %748 = arith.mulf %731, %738 : vector<8x32xf32>
    %749 = arith.addf %747, %748 : vector<8x32xf32>
    %750 = arith.mulf %740, %712 : vector<8x32xf32>
    %751 = arith.mulf %739, %746 : vector<8x32xf32>
    %752 = arith.addf %750, %751 : vector<8x32xf32>
    %753 = tpu.concatenate %733, %741 in 1 : vector<8x32xf32>, vector<8x32xf32> -> vector<8x64xf32>
    %754 = tpu.concatenate %749, %752 in 1 : vector<8x32xf32>, vector<8x32xf32> -> vector<8x64xf32>
    %755 = math.tanh %754 : vector<8x64xf32>
    %756 = arith.mulf %753, %755 : vector<8x64xf32>
    %757 = vector.extract_strided_slice %756 {offsets = [0, 0], sizes = [8, 32], strides = [1, 1]} : vector<8x64xf32> to vector<8x32xf32>
    %c48_202 = arith.constant 48 : index
    %c0_203 = arith.constant 0 : index
    %758 = vector.load %arg6[%c48_202, %c0_203] : memref<72x64xf32, #tpu.memory_space<vmem>>, vector<8x32xf32>
    tpu.vector_store %arg6[%c48_202, %c0_203], %757 {strides = array<i32>} : memref<72x64xf32, #tpu.memory_space<vmem>>, vector<8x32xf32>,
    %759 = vector.extract_strided_slice %756 {offsets = [0, 32], sizes = [8, 32], strides = [1, 1]} : vector<8x64xf32> to vector<8x32xf32>
    %c16_204 = arith.constant 16 : index
    %c32_205 = arith.constant 32 : index
    %760 = vector.load %arg6[%c16_204, %c32_205] : memref<72x64xf32, #tpu.memory_space<vmem>>, vector<8x32xf32>
    tpu.vector_store %arg6[%c16_204, %c32_205], %759 {strides = array<i32>} : memref<72x64xf32, #tpu.memory_space<vmem>>, vector<8x32xf32>,
    %761 = vector.extract_strided_slice %476 {offsets = [56, 0], sizes = [8, 128], strides = [1, 1]} : vector<72x256xf32> to vector<8x128xf32>
    %762 = vector.extract_strided_slice %476 {offsets = [8, 128], sizes = [8, 128], strides = [1, 1]} : vector<72x256xf32> to vector<8x128xf32>
    %763 = tpu.concatenate %761, %762 in 1 : vector<8x128xf32>, vector<8x128xf32> -> vector<8x256xf32>
    %cst_206 = arith.constant dense<0.000000e+00> : vector<8x256xf32>
    %764 = tpu.matmul %756, %477, %cst_206 {dimension_numbers = #tpu.dot_dimension_numbers<[1], [0], [0], [1], [0, 0, 1, 1], [], []>} : vector<8x64xf32>, vector<64x256xf32>, vector<8x256xf32> -> vector<8x256xf32>
    %765 = arith.addf %763, %764 : vector<8x256xf32>
    %766 = arith.negf %765 : vector<8x256xf32>
    %767 = math.exp %766 : vector<8x256xf32>
    %cst_207 = arith.constant 1.000000e+00 : f32
    %768 = vector.broadcast %cst_207 : f32 to vector<8x256xf32>
    %769 = arith.addf %768, %767 : vector<8x256xf32>
    %770 = arith.divf %768, %769 : vector<8x256xf32>
    %771 = vector.extract_strided_slice %770 {offsets = [0, 0], sizes = [8, 32], strides = [1, 1]} : vector<8x256xf32> to vector<8x32xf32>
    %772 = vector.extract_strided_slice %770 {offsets = [0, 32], sizes = [8, 32], strides = [1, 1]} : vector<8x256xf32> to vector<8x32xf32>
    %773 = vector.extract_strided_slice %770 {offsets = [0, 64], sizes = [8, 32], strides = [1, 1]} : vector<8x256xf32> to vector<8x32xf32>
    %774 = vector.extract_strided_slice %770 {offsets = [0, 96], sizes = [8, 32], strides = [1, 1]} : vector<8x256xf32> to vector<8x32xf32>
    %cst_208 = arith.constant 2.000000e+00 : f32
    %775 = vector.broadcast %cst_208 : f32 to vector<8x32xf32>
    %776 = arith.mulf %775, %774 : vector<8x32xf32>
    %cst_209 = arith.constant 1.000000e+00 : f32
    %777 = vector.broadcast %cst_209 : f32 to vector<8x32xf32>
    %778 = arith.subf %776, %777 : vector<8x32xf32>
    %779 = vector.extract_strided_slice %770 {offsets = [0, 128], sizes = [8, 32], strides = [1, 1]} : vector<8x256xf32> to vector<8x32xf32>
    %780 = vector.extract_strided_slice %770 {offsets = [0, 160], sizes = [8, 32], strides = [1, 1]} : vector<8x256xf32> to vector<8x32xf32>
    %781 = vector.extract_strided_slice %770 {offsets = [0, 192], sizes = [8, 32], strides = [1, 1]} : vector<8x256xf32> to vector<8x32xf32>
    %782 = vector.extract_strided_slice %770 {offsets = [0, 224], sizes = [8, 32], strides = [1, 1]} : vector<8x256xf32> to vector<8x32xf32>
    %cst_210 = arith.constant 2.000000e+00 : f32
    %783 = vector.broadcast %cst_210 : f32 to vector<8x32xf32>
    %784 = arith.mulf %783, %782 : vector<8x32xf32>
    %cst_211 = arith.constant 1.000000e+00 : f32
    %785 = vector.broadcast %cst_211 : f32 to vector<8x32xf32>
    %786 = arith.subf %784, %785 : vector<8x32xf32>
    %787 = arith.mulf %772, %749 : vector<8x32xf32>
    %788 = arith.mulf %771, %778 : vector<8x32xf32>
    %789 = arith.addf %787, %788 : vector<8x32xf32>
    %790 = arith.mulf %780, %752 : vector<8x32xf32>
    %791 = arith.mulf %779, %786 : vector<8x32xf32>
    %792 = arith.addf %790, %791 : vector<8x32xf32>
    %793 = tpu.concatenate %773, %781 in 1 : vector<8x32xf32>, vector<8x32xf32> -> vector<8x64xf32>
    %794 = tpu.concatenate %789, %792 in 1 : vector<8x32xf32>, vector<8x32xf32> -> vector<8x64xf32>
    %795 = math.tanh %794 : vector<8x64xf32>
    %796 = arith.mulf %793, %795 : vector<8x64xf32>
    %797 = vector.extract_strided_slice %796 {offsets = [0, 0], sizes = [8, 32], strides = [1, 1]} : vector<8x64xf32> to vector<8x32xf32>
    %c56_212 = arith.constant 56 : index
    %c0_213 = arith.constant 0 : index
    %798 = vector.load %arg6[%c56_212, %c0_213] : memref<72x64xf32, #tpu.memory_space<vmem>>, vector<8x32xf32>
    tpu.vector_store %arg6[%c56_212, %c0_213], %797 {strides = array<i32>} : memref<72x64xf32, #tpu.memory_space<vmem>>, vector<8x32xf32>,
    %799 = vector.extract_strided_slice %796 {offsets = [0, 32], sizes = [8, 32], strides = [1, 1]} : vector<8x64xf32> to vector<8x32xf32>
    %c8_214 = arith.constant 8 : index
    %c32_215 = arith.constant 32 : index
    %800 = vector.load %arg6[%c8_214, %c32_215] : memref<72x64xf32, #tpu.memory_space<vmem>>, vector<8x32xf32>
    tpu.vector_store %arg6[%c8_214, %c32_215], %799 {strides = array<i32>} : memref<72x64xf32, #tpu.memory_space<vmem>>, vector<8x32xf32>,
    %801 = vector.extract_strided_slice %476 {offsets = [64, 0], sizes = [8, 128], strides = [1, 1]} : vector<72x256xf32> to vector<8x128xf32>
    %802 = vector.extract_strided_slice %476 {offsets = [0, 128], sizes = [8, 128], strides = [1, 1]} : vector<72x256xf32> to vector<8x128xf32>
    %803 = tpu.concatenate %801, %802 in 1 : vector<8x128xf32>, vector<8x128xf32> -> vector<8x256xf32>
    %cst_216 = arith.constant dense<0.000000e+00> : vector<8x256xf32>
    %804 = tpu.matmul %796, %477, %cst_216 {dimension_numbers = #tpu.dot_dimension_numbers<[1], [0], [0], [1], [0, 0, 1, 1], [], []>} : vector<8x64xf32>, vector<64x256xf32>, vector<8x256xf32> -> vector<8x256xf32>
    %805 = arith.addf %803, %804 : vector<8x256xf32>
    %806 = arith.negf %805 : vector<8x256xf32>
    %807 = math.exp %806 : vector<8x256xf32>
    %cst_217 = arith.constant 1.000000e+00 : f32
    %808 = vector.broadcast %cst_217 : f32 to vector<8x256xf32>
    %809 = arith.addf %808, %807 : vector<8x256xf32>
    %810 = arith.divf %808, %809 : vector<8x256xf32>
    %811 = vector.extract_strided_slice %810 {offsets = [0, 0], sizes = [8, 32], strides = [1, 1]} : vector<8x256xf32> to vector<8x32xf32>
    %812 = vector.extract_strided_slice %810 {offsets = [0, 32], sizes = [8, 32], strides = [1, 1]} : vector<8x256xf32> to vector<8x32xf32>
    %813 = vector.extract_strided_slice %810 {offsets = [0, 64], sizes = [8, 32], strides = [1, 1]} : vector<8x256xf32> to vector<8x32xf32>
    %814 = vector.extract_strided_slice %810 {offsets = [0, 96], sizes = [8, 32], strides = [1, 1]} : vector<8x256xf32> to vector<8x32xf32>
    %cst_218 = arith.constant 2.000000e+00 : f32
    %815 = vector.broadcast %cst_218 : f32 to vector<8x32xf32>
    %816 = arith.mulf %815, %814 : vector<8x32xf32>
    %cst_219 = arith.constant 1.000000e+00 : f32
    %817 = vector.broadcast %cst_219 : f32 to vector<8x32xf32>
    %818 = arith.subf %816, %817 : vector<8x32xf32>
    %819 = vector.extract_strided_slice %810 {offsets = [0, 128], sizes = [8, 32], strides = [1, 1]} : vector<8x256xf32> to vector<8x32xf32>
    %820 = vector.extract_strided_slice %810 {offsets = [0, 160], sizes = [8, 32], strides = [1, 1]} : vector<8x256xf32> to vector<8x32xf32>
    %821 = vector.extract_strided_slice %810 {offsets = [0, 192], sizes = [8, 32], strides = [1, 1]} : vector<8x256xf32> to vector<8x32xf32>
    %822 = vector.extract_strided_slice %810 {offsets = [0, 224], sizes = [8, 32], strides = [1, 1]} : vector<8x256xf32> to vector<8x32xf32>
    %cst_220 = arith.constant 2.000000e+00 : f32
    %823 = vector.broadcast %cst_220 : f32 to vector<8x32xf32>
    %824 = arith.mulf %823, %822 : vector<8x32xf32>
    %cst_221 = arith.constant 1.000000e+00 : f32
    %825 = vector.broadcast %cst_221 : f32 to vector<8x32xf32>
    %826 = arith.subf %824, %825 : vector<8x32xf32>
    %827 = arith.mulf %812, %789 : vector<8x32xf32>
    %828 = arith.mulf %811, %818 : vector<8x32xf32>
    %829 = arith.addf %827, %828 : vector<8x32xf32>
    %830 = arith.mulf %820, %792 : vector<8x32xf32>
    %831 = arith.mulf %819, %826 : vector<8x32xf32>
    %832 = arith.addf %830, %831 : vector<8x32xf32>
    %833 = tpu.concatenate %813, %821 in 1 : vector<8x32xf32>, vector<8x32xf32> -> vector<8x64xf32>
    %834 = tpu.concatenate %829, %832 in 1 : vector<8x32xf32>, vector<8x32xf32> -> vector<8x64xf32>
    %835 = math.tanh %834 : vector<8x64xf32>
    %836 = arith.mulf %833, %835 : vector<8x64xf32>
    %837 = vector.extract_strided_slice %836 {offsets = [0, 0], sizes = [8, 32], strides = [1, 1]} : vector<8x64xf32> to vector<8x32xf32>
    %c64_222 = arith.constant 64 : index
    %c0_223 = arith.constant 0 : index
    %838 = vector.load %arg6[%c64_222, %c0_223] : memref<72x64xf32, #tpu.memory_space<vmem>>, vector<8x32xf32>
    tpu.vector_store %arg6[%c64_222, %c0_223], %837 {strides = array<i32>} : memref<72x64xf32, #tpu.memory_space<vmem>>, vector<8x32xf32>,
    %839 = vector.extract_strided_slice %836 {offsets = [0, 32], sizes = [8, 32], strides = [1, 1]} : vector<8x64xf32> to vector<8x32xf32>
    %c0_224 = arith.constant 0 : index
    %c32_225 = arith.constant 32 : index
    %840 = vector.load %arg6[%c0_224, %c32_225] : memref<72x64xf32, #tpu.memory_space<vmem>>, vector<8x32xf32>
    tpu.vector_store %arg6[%c0_224, %c32_225], %839 {strides = array<i32>} : memref<72x64xf32, #tpu.memory_space<vmem>>, vector<8x32xf32>,
    %c0_226 = arith.constant 0 : index
    %c0_227 = arith.constant 0 : index
    %841 = vector.load %arg6[%c0_226, %c0_227] : memref<72x64xf32, #tpu.memory_space<vmem>>, vector<72x64xf32>
    %c312 = arith.constant 312 : index
    %c0_228 = arith.constant 0 : index
    %842 = vector.load %arg2[%c312, %c0_228] : memref<536x256xf32, #tpu.memory_space<vmem>>, vector<64x128xf32>
    %cst_229 = arith.constant dense<0.000000e+00> : vector<72x128xf32>
    %843 = tpu.matmul %841, %842, %cst_229 {dimension_numbers = #tpu.dot_dimension_numbers<[1], [0], [0], [1], [0, 0, 1, 1], [], []>} : vector<72x64xf32>, vector<64x128xf32>, vector<72x128xf32> -> vector<72x128xf32>
    %844 = vector.extract_strided_slice %843 {offsets = [0, 0], sizes = [8, 1], strides = [1, 1]} : vector<72x128xf32> to vector<8x1xf32>
    %845 = vector.extract_strided_slice %843 {offsets = [8, 0], sizes = [8, 1], strides = [1, 1]} : vector<72x128xf32> to vector<8x1xf32>
    %846 = vector.extract_strided_slice %843 {offsets = [16, 0], sizes = [8, 1], strides = [1, 1]} : vector<72x128xf32> to vector<8x1xf32>
    %847 = vector.extract_strided_slice %843 {offsets = [24, 0], sizes = [8, 1], strides = [1, 1]} : vector<72x128xf32> to vector<8x1xf32>
    %848 = vector.extract_strided_slice %843 {offsets = [32, 0], sizes = [8, 1], strides = [1, 1]} : vector<72x128xf32> to vector<8x1xf32>
    %849 = vector.extract_strided_slice %843 {offsets = [40, 0], sizes = [8, 1], strides = [1, 1]} : vector<72x128xf32> to vector<8x1xf32>
    %850 = vector.extract_strided_slice %843 {offsets = [48, 0], sizes = [8, 1], strides = [1, 1]} : vector<72x128xf32> to vector<8x1xf32>
    %851 = vector.extract_strided_slice %843 {offsets = [56, 0], sizes = [8, 1], strides = [1, 1]} : vector<72x128xf32> to vector<8x1xf32>
    %852 = vector.extract_strided_slice %843 {offsets = [64, 0], sizes = [8, 1], strides = [1, 1]} : vector<72x128xf32> to vector<8x1xf32>
    %853 = tpu.concatenate %844, %845, %846, %847, %848, %849, %850, %851, %852 in 1 : vector<8x1xf32>, vector<8x1xf32>, vector<8x1xf32>, vector<8x1xf32>, vector<8x1xf32>, vector<8x1xf32>, vector<8x1xf32>, vector<8x1xf32>, vector<8x1xf32> -> vector<8x9xf32>
    %cst_230 = arith.constant dense<0xFF800000> : vector<8xf32>
    %854 = vector.multi_reduction <maximumf>, %853, %cst_230 [1] : vector<8x9xf32> to vector<8xf32>
    %855 = vector.shape_cast %854 : vector<8xf32> to vector<8x1xf32>
    %856 = vector.broadcast %855 : vector<8x1xf32> to vector<8x9xf32>
    %857 = arith.subf %853, %856 : vector<8x9xf32>
    %858 = math.exp %857 : vector<8x9xf32>
    %cst_231 = arith.constant dense<0.000000e+00> : vector<8xf32>
    %859 = vector.multi_reduction <add>, %858, %cst_231 [1] : vector<8x9xf32> to vector<8xf32>
    %860 = vector.shape_cast %859 : vector<8xf32> to vector<8x1xf32>
    %861 = tpu.reciprocal %860 {approx = true} : vector<8x1xf32> -> vector<8x1xf32>
    %862 = vector.broadcast %861 : vector<8x1xf32> to vector<8x9xf32>
    %863 = arith.mulf %858, %862 : vector<8x9xf32>
    %cst_232 = arith.constant 0.000000e+00 : f32
    %864 = vector.broadcast %cst_232 : f32 to vector<8x64xf32>
    %865 = vector.extract_strided_slice %863 {offsets = [0, 0], sizes = [8, 1], strides = [1, 1]} : vector<8x9xf32> to vector<8x1xf32>
    %866 = vector.extract_strided_slice %841 {offsets = [0, 0], sizes = [8, 64], strides = [1, 1]} : vector<72x64xf32> to vector<8x64xf32>
    %867 = vector.broadcast %865 : vector<8x1xf32> to vector<8x64xf32>
    %868 = arith.mulf %867, %866 : vector<8x64xf32>
    %869 = arith.addf %864, %868 : vector<8x64xf32>
    %870 = vector.extract_strided_slice %863 {offsets = [0, 1], sizes = [8, 1], strides = [1, 1]} : vector<8x9xf32> to vector<8x1xf32>
    %871 = vector.extract_strided_slice %841 {offsets = [8, 0], sizes = [8, 64], strides = [1, 1]} : vector<72x64xf32> to vector<8x64xf32>
    %872 = vector.broadcast %870 : vector<8x1xf32> to vector<8x64xf32>
    %873 = arith.mulf %872, %871 : vector<8x64xf32>
    %874 = arith.addf %869, %873 : vector<8x64xf32>
    %875 = vector.extract_strided_slice %863 {offsets = [0, 2], sizes = [8, 1], strides = [1, 1]} : vector<8x9xf32> to vector<8x1xf32>
    %876 = vector.extract_strided_slice %841 {offsets = [16, 0], sizes = [8, 64], strides = [1, 1]} : vector<72x64xf32> to vector<8x64xf32>
    %877 = vector.broadcast %875 : vector<8x1xf32> to vector<8x64xf32>
    %878 = arith.mulf %877, %876 : vector<8x64xf32>
    %879 = arith.addf %874, %878 : vector<8x64xf32>
    %880 = vector.extract_strided_slice %863 {offsets = [0, 3], sizes = [8, 1], strides = [1, 1]} : vector<8x9xf32> to vector<8x1xf32>
    %881 = vector.extract_strided_slice %841 {offsets = [24, 0], sizes = [8, 64], strides = [1, 1]} : vector<72x64xf32> to vector<8x64xf32>
    %882 = vector.broadcast %880 : vector<8x1xf32> to vector<8x64xf32>
    %883 = arith.mulf %882, %881 : vector<8x64xf32>
    %884 = arith.addf %879, %883 : vector<8x64xf32>
    %885 = vector.extract_strided_slice %863 {offsets = [0, 4], sizes = [8, 1], strides = [1, 1]} : vector<8x9xf32> to vector<8x1xf32>
    %886 = vector.extract_strided_slice %841 {offsets = [32, 0], sizes = [8, 64], strides = [1, 1]} : vector<72x64xf32> to vector<8x64xf32>
    %887 = vector.broadcast %885 : vector<8x1xf32> to vector<8x64xf32>
    %888 = arith.mulf %887, %886 : vector<8x64xf32>
    %889 = arith.addf %884, %888 : vector<8x64xf32>
    %890 = vector.extract_strided_slice %863 {offsets = [0, 5], sizes = [8, 1], strides = [1, 1]} : vector<8x9xf32> to vector<8x1xf32>
    %891 = vector.extract_strided_slice %841 {offsets = [40, 0], sizes = [8, 64], strides = [1, 1]} : vector<72x64xf32> to vector<8x64xf32>
    %892 = vector.broadcast %890 : vector<8x1xf32> to vector<8x64xf32>
    %893 = arith.mulf %892, %891 : vector<8x64xf32>
    %894 = arith.addf %889, %893 : vector<8x64xf32>
    %895 = vector.extract_strided_slice %863 {offsets = [0, 6], sizes = [8, 1], strides = [1, 1]} : vector<8x9xf32> to vector<8x1xf32>
    %896 = vector.extract_strided_slice %841 {offsets = [48, 0], sizes = [8, 64], strides = [1, 1]} : vector<72x64xf32> to vector<8x64xf32>
    %897 = vector.broadcast %895 : vector<8x1xf32> to vector<8x64xf32>
    %898 = arith.mulf %897, %896 : vector<8x64xf32>
    %899 = arith.addf %894, %898 : vector<8x64xf32>
    %900 = vector.extract_strided_slice %863 {offsets = [0, 7], sizes = [8, 1], strides = [1, 1]} : vector<8x9xf32> to vector<8x1xf32>
    %901 = vector.extract_strided_slice %841 {offsets = [56, 0], sizes = [8, 64], strides = [1, 1]} : vector<72x64xf32> to vector<8x64xf32>
    %902 = vector.broadcast %900 : vector<8x1xf32> to vector<8x64xf32>
    %903 = arith.mulf %902, %901 : vector<8x64xf32>
    %904 = arith.addf %899, %903 : vector<8x64xf32>
    %905 = vector.extract_strided_slice %863 {offsets = [0, 8], sizes = [8, 1], strides = [1, 1]} : vector<8x9xf32> to vector<8x1xf32>
    %906 = vector.extract_strided_slice %841 {offsets = [64, 0], sizes = [8, 64], strides = [1, 1]} : vector<72x64xf32> to vector<8x64xf32>
    %907 = vector.broadcast %905 : vector<8x1xf32> to vector<8x64xf32>
    %908 = arith.mulf %907, %906 : vector<8x64xf32>
    %909 = arith.addf %904, %908 : vector<8x64xf32>
    %c376 = arith.constant 376 : index
    %c0_233 = arith.constant 0 : index
    %910 = vector.load %arg2[%c376, %c0_233] : memref<536x256xf32, #tpu.memory_space<vmem>>, vector<8x32xf32>
    %cst_234 = arith.constant dense<0.000000e+00> : vector<8x32xf32>
    %911 = tpu.matmul %16, %910, %cst_234 {dimension_numbers = #tpu.dot_dimension_numbers<[1], [0], [0], [1], [0, 0, 1, 1], [], []>} : vector<8x8xf32>, vector<8x32xf32>, vector<8x32xf32> -> vector<8x32xf32>
    %c10 = arith.constant 10 : index
    %c0_235 = arith.constant 0 : index
    %912 = vector.load %arg3[%c10, %c0_235] : memref<16x256xf32, #tpu.memory_space<vmem>>, vector<1x32xf32>
    %913 = vector.broadcast %912 : vector<1x32xf32> to vector<8x32xf32>
    %914 = arith.addf %911, %913 : vector<8x32xf32>
    %cst_236 = arith.constant 0.000000e+00 : f32
    %915 = vector.broadcast %cst_236 : f32 to vector<8x32xf32>
    %916 = arith.maximumf %914, %915 : vector<8x32xf32>
    %c384 = arith.constant 384 : index
    %c0_237 = arith.constant 0 : index
    %917 = vector.load %arg2[%c384, %c0_237] : memref<536x256xf32, #tpu.memory_space<vmem>>, vector<32x16xf32>
    %cst_238 = arith.constant dense<0.000000e+00> : vector<8x16xf32>
    %918 = tpu.matmul %916, %917, %cst_238 {dimension_numbers = #tpu.dot_dimension_numbers<[1], [0], [0], [1], [0, 0, 1, 1], [], []>} : vector<8x32xf32>, vector<32x16xf32>, vector<8x16xf32> -> vector<8x16xf32>
    %c11 = arith.constant 11 : index
    %c0_239 = arith.constant 0 : index
    %919 = vector.load %arg3[%c11, %c0_239] : memref<16x256xf32, #tpu.memory_space<vmem>>, vector<1x16xf32>
    %920 = vector.broadcast %919 : vector<1x16xf32> to vector<8x16xf32>
    %921 = arith.addf %918, %920 : vector<8x16xf32>
    %cst_240 = arith.constant 0.000000e+00 : f32
    %922 = vector.broadcast %cst_240 : f32 to vector<8x16xf32>
    %923 = arith.maximumf %921, %922 : vector<8x16xf32>
    %c416 = arith.constant 416 : index
    %c0_241 = arith.constant 0 : index
    %924 = vector.load %arg2[%c416, %c0_241] : memref<536x256xf32, #tpu.memory_space<vmem>>, vector<64x40xf32>
    %cst_242 = arith.constant dense<0.000000e+00> : vector<8x40xf32>
    %925 = tpu.matmul %909, %924, %cst_242 {dimension_numbers = #tpu.dot_dimension_numbers<[1], [0], [0], [1], [0, 0, 1, 1], [], []>} : vector<8x64xf32>, vector<64x40xf32>, vector<8x40xf32> -> vector<8x40xf32>
    %c480 = arith.constant 480 : index
    %c0_243 = arith.constant 0 : index
    %926 = vector.load %arg2[%c480, %c0_243] : memref<536x256xf32, #tpu.memory_space<vmem>>, vector<16x40xf32>
    %cst_244 = arith.constant dense<0.000000e+00> : vector<8x40xf32>
    %927 = tpu.matmul %923, %926, %cst_244 {dimension_numbers = #tpu.dot_dimension_numbers<[1], [0], [0], [1], [0, 0, 1, 1], [], []>} : vector<8x16xf32>, vector<16x40xf32>, vector<8x40xf32> -> vector<8x40xf32>
    %928 = arith.addf %925, %927 : vector<8x40xf32>
    %c12 = arith.constant 12 : index
    %c0_245 = arith.constant 0 : index
    %929 = vector.load %arg3[%c12, %c0_245] : memref<16x256xf32, #tpu.memory_space<vmem>>, vector<1x40xf32>
    %930 = vector.broadcast %929 : vector<1x40xf32> to vector<8x40xf32>
    %931 = arith.addf %928, %930 : vector<8x40xf32>
    %cst_246 = arith.constant 0.000000e+00 : f32
    %932 = vector.broadcast %cst_246 : f32 to vector<8x40xf32>
    %933 = arith.maximumf %931, %932 : vector<8x40xf32>
    %c496 = arith.constant 496 : index
    %c0_247 = arith.constant 0 : index
    %934 = vector.load %arg2[%c496, %c0_247] : memref<536x256xf32, #tpu.memory_space<vmem>>, vector<40x128xf32>
    %cst_248 = arith.constant dense<0.000000e+00> : vector<8x128xf32>
    %935 = tpu.matmul %933, %934, %cst_248 {dimension_numbers = #tpu.dot_dimension_numbers<[1], [0], [0], [1], [0, 0, 1, 1], [], []>} : vector<8x40xf32>, vector<40x128xf32>, vector<8x128xf32> -> vector<8x128xf32>
    %c13 = arith.constant 13 : index
    %c0_249 = arith.constant 0 : index
    %936 = vector.load %arg3[%c13, %c0_249] : memref<16x256xf32, #tpu.memory_space<vmem>>, vector<1x128xf32>
    %937 = vector.broadcast %936 : vector<1x128xf32> to vector<8x128xf32>
    %938 = arith.addf %935, %937 : vector<8x128xf32>
    %c0_250 = arith.constant 0 : index
    %c0_251 = arith.constant 0 : index
    %939 = vector.load %arg4[%c0_250, %c0_251] : memref<8x128xf32, #tpu.memory_space<vmem>>, vector<8x128xf32>
    tpu.vector_store %arg4[%c0_250, %c0_251], %938 {strides = array<i32>} : memref<8x128xf32, #tpu.memory_space<vmem>>, vector<8x128xf32>,
    return
  }
  func.func @transform_0(%arg0: i32) -> (i32, i32) {
    %c0_i32 = arith.constant 0 : i32
    %c0_i32_0 = arith.constant 0 : i32
    return %arg0, %c0_i32 : i32, i32
  }
  func.func @transform_1(%arg0: i32) -> (i32, i32) {
    %c0_i32 = arith.constant 0 : i32
    %c0_i32_0 = arith.constant 0 : i32
    %c0_i32_1 = arith.constant 0 : i32
    return %c0_i32, %c0_i32_0 : i32, i32
  }
  func.func @transform_2(%arg0: i32) -> (i32, i32) {
    %c0_i32 = arith.constant 0 : i32
    %c0_i32_0 = arith.constant 0 : i32
    %c0_i32_1 = arith.constant 0 : i32
    return %c0_i32, %c0_i32_0 : i32, i32
  }
  func.func @transform_3(%arg0: i32) -> (i32, i32) {
    %c0_i32 = arith.constant 0 : i32
    %c0_i32_0 = arith.constant 0 : i32
    return %arg0, %c0_i32 : i32, i32
  }
}

</mosaic_0001>

<llo_original>
// kernel: tpu_custom_call.1
$region0: #{tpu_custom_call.1}
  #allocation0 [shape = 'u32[]', space=smem, size = 0x4, offset = 0x4, fixed_abs, tag = 'smem constant byte address 0x4 - core index']
  #allocation1 [shape = 'u32[72,128]{1,0:T(1,128)}', space=vmem, size = 0x9000, scoped, tag = 'internal scratch']
  #allocation2 [shape = 'f32[72,64]{1,0:T(8,128)}', space=vmem, size = 0x9000, scoped, tag = 'scratch operand']
  #allocation3 [shape = 'f32[72,64]{1,0:T(8,128)}', space=vmem, size = 0x9000, scoped, tag = 'scratch operand']
  %s0 = inlined_call_operand.hbm [shape: f32[8,9], index: 0, kind: input, shape index: {}]
  %s1 = inlined_call_operand.hbm [shape: f32[536,256], index: 1, kind: input, shape index: {}]
  %s2 = inlined_call_operand.hbm [shape: f32[16,256], index: 2, kind: input, shape index: {}]
  %s3 = inlined_call_operand.hbm [shape: f32[8,128], index: 3, kind: output, shape index: {}]
  %s4 = sld [smem:[#allocation0]]
  $region34: #{tpu_custom_call.1} parent=0
    _
  %s6 = ssub.s32 1, %s4
  %s7 = scalar_select 0, %s6, %s4
  $region1: #{tpu_custom_call.1} parent=0
    #allocation4 [shape = 'u8[4096]{0}', space=vmem, size = 0x1000, scoped, tag = 'input window, operand 0, single buffered']
    #allocation5 [shape = 's32[1]{0}', space=sflag, size = 0x4, scoped, tag = 'scoped memory for tpu_custom_call.1']
    #allocation6 [shape = 's32[1]{0}', space=sflag, size = 0x4, scoped, tag = 'scoped memory for tpu_custom_call.1']
    #allocation7 [shape = 'u8[548864]{0}', space=vmem, size = 0x86000, scoped, tag = 'input window, operand 1, single buffered']
    #allocation8 [shape = 's32[1]{0}', space=sflag, size = 0x4, scoped, tag = 'scoped memory for tpu_custom_call.1']
    #allocation9 [shape = 'u8[16384]{0}', space=vmem, size = 0x4000, scoped, tag = 'input window, operand 2, single buffered']
    #allocation10 [shape = 'u8[4096]{0}', space=vmem, size = 0x1000, scoped, tag = 'output window, operand 0, single buffered']
    %8 = vsyncpa [#allocation5], 0
    %9 = vsyncpa [#allocation8], 0
    %10 = vsyncpa [#allocation6], 0
    // Predicated region
    $region2: #{tpu_custom_call.1} parent=1 // pred_check
      _
    $region3: #{tpu_custom_call.1} parent=1 // pred_check_branch
      %12 = sbr.rel (0) target = $region5
    $region4: #{tpu_custom_call.1} parent=1 // pred_region
      %14 = vsyncadd [#allocation5], 0
      %s16 = sshll.u32 %s0, 4
      %s17 = int_to_ptr.hbm [resolvable:$true] %s16
      %s18 = sshll.u32 [#allocation4], 4
      %s19 = int_to_ptr.vmem [resolvable:$true] %s18
      %21 = dma.hbm_to_vmem [thread:$0]  %s17, 128, %s19, [#allocation5]
    $region5: #{tpu_custom_call.1} parent=1 // pred_fallthru
      _
    // Predicated region
    $region6: #{tpu_custom_call.1} parent=1 // pred_check
      _
    $region7: #{tpu_custom_call.1} parent=1 // pred_check_branch
      %23 = sbr.rel (0) target = $region9
    $region8: #{tpu_custom_call.1} parent=1 // pred_region
      %25 = vsyncadd [#allocation8], 0
      %s26 = sshll.u32 %s1, 4
      %s27 = int_to_ptr.hbm [resolvable:$true] %s26
      %s28 = sshll.u32 [#allocation7], 4
      %s29 = int_to_ptr.vmem [resolvable:$true] %s28
      %34 = dma.hbm_to_vmem [thread:$0]  %s27, 17152, %s29, [#allocation8], 256, 256, 16
    $region9: #{tpu_custom_call.1} parent=1 // pred_fallthru
      _
    // Predicated region
    $region10: #{tpu_custom_call.1} parent=1 // pred_check
      _
    $region11: #{tpu_custom_call.1} parent=1 // pred_check_branch
      %36 = sbr.rel (0) target = $region13
    $region12: #{tpu_custom_call.1} parent=1 // pred_region
      %38 = vsyncadd [#allocation8], 0
      %s39 = sshll.u32 %s2, 4
      %s40 = int_to_ptr.hbm [resolvable:$true] %s39
      %s41 = sshll.u32 [#allocation9], 4
      %s42 = int_to_ptr.vmem [resolvable:$true] %s41
      %47 = dma.hbm_to_vmem [thread:$0]  %s40, 512, %s42, [#allocation8], 256, 256, 16
    $region13: #{tpu_custom_call.1} parent=1 // pred_fallthru
      _
    // Predicated region
    $region14: #{tpu_custom_call.1} parent=1 // pred_check
      _
    $region15: #{tpu_custom_call.1} parent=1 // pred_check_branch
      %49 = sbr.rel (0) target = $region17
    $region16: #{tpu_custom_call.1} parent=1 // pred_region
      %51 = dma.done [#allocation5], 128
    $region17: #{tpu_custom_call.1} parent=1 // pred_fallthru
      _
    // Predicated region
    $region18: #{tpu_custom_call.1} parent=1 // pred_check
      _
    $region19: #{tpu_custom_call.1} parent=1 // pred_check_branch
      %53 = sbr.rel (0) target = $region21
    $region20: #{tpu_custom_call.1} parent=1 // pred_region
      %55 = dma.done [#allocation8], 17152
    $region21: #{tpu_custom_call.1} parent=1 // pred_fallthru
      _
    // Predicated region
    $region22: #{tpu_custom_call.1} parent=1 // pred_check
      _
    $region23: #{tpu_custom_call.1} parent=1 // pred_check_branch
      %57 = sbr.rel (0) target = $region25
    $region24: #{tpu_custom_call.1} parent=1 // pred_region
      %59 = dma.done [#allocation8], 512
    $region25: #{tpu_custom_call.1} parent=1 // pred_fallthru
      _
    %v61 = vld [vmem:[#allocation4] sm:$0xff]
    %63 = vrot.lane.b32.xlu0 %v61, 1
    %v64 = vpop.permute.xlu0 %63
    %vm66 = vcmask 7168
    %v67 = vsel %vm66, 0.0, %v64
    %vm68 = vcmask 80896
    %v69 = vsel %vm68, %v67, 0.0
    %71 = vrot.lane.b32.xlu0 %v69, 127
    %v72 = vpop.permute.xlu0 %71
    %73 = vrot.lane.b32.xlu0 %v69, 126
    %v74 = vpop.permute.xlu0 %73
    %75 = vrot.lane.b32.xlu0 %v69, 125
    %v76 = vpop.permute.xlu0 %75
    %77 = vrot.lane.b32.xlu0 %v69, 124
    %v78 = vpop.permute.xlu0 %77
    %79 = vrot.lane.b32.xlu0 %v69, 123
    %v80 = vpop.permute.xlu0 %79
    %81 = vrot.lane.b32.xlu0 %v69, 122
    %v82 = vpop.permute.xlu0 %81
    %83 = vrot.lane.b32.xlu0 %v69, 121
    %v84 = vpop.permute.xlu0 %83
    %85 = vrot.lane.b32.xlu0 %v69, 120
    %v86 = vpop.permute.xlu0 %85
    %v87 = vsub.f32 %v61, %v64
    %v88 = vsel %vm66, 0.0, %v87
    %vm89 = vcmask 72704
    %v90 = vsel %vm89, %v88, 0.0
    %92 = vrot.lane.b32.xlu0 %v90, 127
    %v93 = vpop.permute.xlu0 %92
    %94 = vrot.lane.b32.xlu0 %v90, 126
    %v95 = vpop.permute.xlu0 %94
    %96 = vrot.lane.b32.xlu0 %v90, 125
    %v97 = vpop.permute.xlu0 %96
    %98 = vrot.lane.b32.xlu0 %v90, 124
    %v99 = vpop.permute.xlu0 %98
    %100 = vrot.lane.b32.xlu0 %v90, 123
    %v101 = vpop.permute.xlu0 %100
    %102 = vrot.lane.b32.xlu0 %v90, 122
    %v103 = vpop.permute.xlu0 %102
    %104 = vrot.lane.b32.xlu0 %v90, 121
    %v105 = vpop.permute.xlu0 %104
    %106 = vrot.lane.b32.xlu0 %v61, 127
    %v107 = vpop.permute.xlu0 %106
    %108 = vrot.lane.b32.xlu0 %v61, 126
    %v109 = vpop.permute.xlu0 %108
    %110 = vrot.lane.b32.xlu0 %v61, 125
    %v111 = vpop.permute.xlu0 %110
    %112 = vrot.lane.b32.xlu0 %v61, 124
    %v113 = vpop.permute.xlu0 %112
    %114 = vrot.lane.b32.xlu0 %v61, 123
    %v115 = vpop.permute.xlu0 %114
    %116 = vrot.lane.b32.xlu0 %v61, 122
    %v117 = vpop.permute.xlu0 %116
    %118 = vrot.lane.b32.xlu0 %v61, 121
    %v119 = vpop.permute.xlu0 %118
    %v120 = vld [vmem:[#allocation7] sm:$0x7]
    %vm121 = vcmask 23552
    %v122 = vsel %vm121, %v69, 0
    %v124 = vsel %vm121, %v72, 0
    %v126 = vsel %vm121, %v74, 0
    %v128 = vsel %vm121, %v76, 0
    %v130 = vsel %vm121, %v78, 0
    %v132 = vsel %vm121, %v80, 0
    %v134 = vsel %vm121, %v82, 0
    %v136 = vsel %vm121, %v84, 0
    %v138 = vsel %vm121, %v86, 0
    %vm140 = vcmask 1042432
    %v142 = vsel %vm140, %v120, 0
    %144 = vmatpush.msra.mxu0 0.0
    %145 = vmatpush.msra.mxu0 0.0
    %146 = vmatpush.msra.mxu0 0.0
    %147 = vmatpush.msra.mxu0 0.0
    %148 = vmatpush.msra.mxu0 0.0
    %149 = vmatpush.msra.mxu0 0.0
    %150 = vmatpush.msra.mxu0 0.0
    %151 = vmatpush.msra.mxu0 0.0
    %152 = vmatpush.msra.mxu0 0.0
    %153 = vmatpush.msra.mxu0 0.0
    %154 = vmatpush.msra.mxu0 0.0
    %155 = vmatpush.msra.mxu0 0.0
    %156 = vmatpush.msra.mxu0 0.0
    %157 = vmatpush.msra.mxu0 0.0
    %158 = vmatpush.msra.mxu0 0.0
    %159 = vmatpush.msra.mxu0 %v142
    %160 = vmatmul.f32.gmra.mxu0 %v122
    %v161 = vpop.f32.mrf.mxu0
    %v162 = vadd.f32 0.0, %v161
    %163 = vmatmul.f32.gmra.mxu0 %v124
    %v164 = vpop.f32.mrf.mxu0
    %v165 = vadd.f32 0.0, %v164
    %166 = vmatmul.f32.gmra.mxu0 %v126
    %v167 = vpop.f32.mrf.mxu0
    %v168 = vadd.f32 0.0, %v167
    %169 = vmatmul.f32.gmra.mxu0 %v128
    %v170 = vpop.f32.mrf.mxu0
    %v171 = vadd.f32 0.0, %v170
    %172 = vmatmul.f32.gmra.mxu0 %v130
    %v173 = vpop.f32.mrf.mxu0
    %v174 = vadd.f32 0.0, %v173
    %175 = vmatmul.f32.gmra.mxu0 %v132
    %v176 = vpop.f32.mrf.mxu0
    %v177 = vadd.f32 0.0, %v176
    %178 = vmatmul.f32.gmra.mxu0 %v134
    %v179 = vpop.f32.mrf.mxu0
    %v180 = vadd.f32 0.0, %v179
    %181 = vmatmul.f32.gmra.mxu0 %v136
    %v182 = vpop.f32.mrf.mxu0
    %v183 = vadd.f32 0.0, %v182
    %184 = vmatmul.f32.gmra.mxu0 %v138
    %v185 = vpop.f32.mrf.mxu0
    %v186 = vadd.f32 0.0, %v185
    %187 = vdwg.mxu0
    %v188 = vld [vmem:[#allocation9] ss:$0 sm:$0xff]
    %v189 = vmul.f32 %v162, %v188
    %v190 = vmul.f32 %v165, %v188
    %v191 = vmul.f32 %v168, %v188
    %v192 = vmul.f32 %v171, %v188
    %v193 = vmul.f32 %v174, %v188
    %v194 = vmul.f32 %v177, %v188
    %v195 = vmul.f32 %v180, %v188
    %v196 = vmul.f32 %v183, %v188
    %v197 = vmul.f32 %v186, %v188
    %v198 = vld [vmem:[#allocation9 + $0x1] ss:$0 sm:$0xff]
    %v199 = vadd.f32 %v189, %v198
    %v200 = vadd.f32 %v190, %v198
    %v201 = vadd.f32 %v191, %v198
    %v202 = vadd.f32 %v192, %v198
    %v203 = vadd.f32 %v193, %v198
    %v204 = vadd.f32 %v194, %v198
    %v205 = vadd.f32 %v195, %v198
    %v206 = vadd.f32 %v196, %v198
    %v207 = vadd.f32 %v197, %v198
    %v208 = vmax.f32 %v199, 0.0
    %v209 = vmax.f32 %v200, 0.0
    %v210 = vmax.f32 %v201, 0.0
    %v211 = vmax.f32 %v202, 0.0
    %v212 = vmax.f32 %v203, 0.0
    %v213 = vmax.f32 %v204, 0.0
    %v214 = vmax.f32 %v205, 0.0
    %v215 = vmax.f32 %v206, 0.0
    %v216 = vmax.f32 %v207, 0.0
    %v217 = vld [vmem:[#allocation7 + $0x10] sm:$0xff]
    %v218 = vld [vmem:[#allocation7 + $0x20] sm:$0xff]
    %v219 = vld [vmem:[#allocation7 + $0x30] sm:$0xff]
    %v220 = vld [vmem:[#allocation7 + $0x40] sm:$0xff]
    %vm221 = vcmask 130048
    %v223 = vsel %vm221, %v208, 0
    %v226 = vsel %vm221, %v209, 0
    %v229 = vsel %vm221, %v210, 0
    %v232 = vsel %vm221, %v211, 0
    %v235 = vsel %vm221, %v212, 0
    %v238 = vsel %vm221, %v213, 0
    %v241 = vsel %vm221, %v214, 0
    %v244 = vsel %vm221, %v215, 0
    %v247 = vsel %vm221, %v216, 0
    %249 = vmatpush.msra.mxu0 0.0
    %250 = vmatpush.msra.mxu0 0.0
    %251 = vmatpush.msra.mxu0 0.0
    %252 = vmatpush.msra.mxu0 0.0
    %253 = vmatpush.msra.mxu0 0.0
    %254 = vmatpush.msra.mxu0 0.0
    %255 = vmatpush.msra.mxu0 0.0
    %256 = vmatpush.msra.mxu0 0.0
    %257 = vmatpush.msra.mxu0 0.0
    %258 = vmatpush.msra.mxu0 0.0
    %259 = vmatpush.msra.mxu0 0.0
    %260 = vmatpush.msra.mxu0 0.0
    %261 = vmatpush.msra.mxu0 0.0
    %262 = vmatpush.msra.mxu0 0.0
    %263 = vmatpush.msra.mxu0 %v220
    %264 = vmatpush.msra.mxu0 %v219
    %265 = vmatmul.f32.gmra.mxu0 %v223
    %v266 = vpop.f32.mrf.mxu0
    %v267 = vadd.f32 0.0, %v266
    %268 = vmatmul.f32.gmra.mxu0 %v226
    %v269 = vpop.f32.mrf.mxu0
    %v270 = vadd.f32 0.0, %v269
    %271 = vmatmul.f32.gmra.mxu0 %v229
    %v272 = vpop.f32.mrf.mxu0
    %v273 = vadd.f32 0.0, %v272
    %274 = vmatmul.f32.gmra.mxu0 %v232
    %v275 = vpop.f32.mrf.mxu0
    %v276 = vadd.f32 0.0, %v275
    %277 = vmatmul.f32.gmra.mxu0 %v235
    %v278 = vpop.f32.mrf.mxu0
    %v279 = vadd.f32 0.0, %v278
    %280 = vmatmul.f32.gmra.mxu0 %v238
    %v281 = vpop.f32.mrf.mxu0
    %v282 = vadd.f32 0.0, %v281
    %283 = vmatmul.f32.gmra.mxu0 %v241
    %v284 = vpop.f32.mrf.mxu0
    %v285 = vadd.f32 0.0, %v284
    %286 = vmatmul.f32.gmra.mxu0 %v244
    %v287 = vpop.f32.mrf.mxu0
    %v288 = vadd.f32 0.0, %v287
    %289 = vmatmul.f32.gmra.mxu0 %v247
    %v290 = vpop.f32.mrf.mxu0
    %v291 = vadd.f32 0.0, %v290
    %292 = vdwg.mxu0
    %v294 = vsel %vm221, 0.0, 0
    %296 = vmatpush.msra.mxu0 0.0
    %297 = vmatpush.msra.mxu0 0.0
    %298 = vmatpush.msra.mxu0 0.0
    %299 = vmatpush.msra.mxu0 0.0
    %300 = vmatpush.msra.mxu0 0.0
    %301 = vmatpush.msra.mxu0 0.0
    %302 = vmatpush.msra.mxu0 0.0
    %303 = vmatpush.msra.mxu0 0.0
    %304 = vmatpush.msra.mxu0 0.0
    %305 = vmatpush.msra.mxu0 0.0
    %306 = vmatpush.msra.mxu0 0.0
    %307 = vmatpush.msra.mxu0 0.0
    %308 = vmatpush.msra.mxu0 0.0
    %309 = vmatpush.msra.mxu0 0.0
    %310 = vmatpush.msra.mxu0 %v218
    %311 = vmatpush.msra.mxu0 %v217
    %312 = vmatmul.f32.gmra.mxu0 %v294
    %v313 = vpop.f32.mrf.mxu0
    %v314 = vadd.f32 %v267, %v313
    %315 = vmatmul.f32.gmra.mxu0 %v223
    %v316 = vpop.f32.mrf.mxu0
    %v317 = vadd.f32 %v270, %v316
    %318 = vmatmul.f32.gmra.mxu0 %v226
    %v319 = vpop.f32.mrf.mxu0
    %v320 = vadd.f32 %v273, %v319
    %321 = vmatmul.f32.gmra.mxu0 %v229
    %v322 = vpop.f32.mrf.mxu0
    %v323 = vadd.f32 %v276, %v322
    %324 = vmatmul.f32.gmra.mxu0 %v232
    %v325 = vpop.f32.mrf.mxu0
    %v326 = vadd.f32 %v279, %v325
    %327 = vmatmul.f32.gmra.mxu0 %v235
    %v328 = vpop.f32.mrf.mxu0
    %v329 = vadd.f32 %v282, %v328
    %330 = vmatmul.f32.gmra.mxu0 %v238
    %v331 = vpop.f32.mrf.mxu0
    %v332 = vadd.f32 %v285, %v331
    %333 = vmatmul.f32.gmra.mxu0 %v241
    %v334 = vpop.f32.mrf.mxu0
    %v335 = vadd.f32 %v288, %v334
    %336 = vmatmul.f32.gmra.mxu0 %v244
    %v337 = vpop.f32.mrf.mxu0
    %v338 = vadd.f32 %v291, %v337
    %339 = vdwg.mxu0
    %v340 = vld [vmem:[#allocation7 + $0x50] sm:$0xff]
    %v341 = vld [vmem:[#allocation7 + $0x60] sm:$0xff]
    %342 = vmatpush.msra.mxu0 0.0
    %343 = vmatpush.msra.mxu0 0.0
    %344 = vmatpush.msra.mxu0 0.0
    %345 = vmatpush.msra.mxu0 0.0
    %346 = vmatpush.msra.mxu0 0.0
    %347 = vmatpush.msra.mxu0 0.0
    %348 = vmatpush.msra.mxu0 0.0
    %349 = vmatpush.msra.mxu0 0.0
    %350 = vmatpush.msra.mxu0 0.0
    %351 = vmatpush.msra.mxu0 0.0
    %352 = vmatpush.msra.mxu0 0.0
    %353 = vmatpush.msra.mxu0 0.0
    %354 = vmatpush.msra.mxu0 0.0
    %355 = vmatpush.msra.mxu0 0.0
    %356 = vmatpush.msra.mxu0 %v341
    %357 = vmatpush.msra.mxu0 %v340
    %358 = vmatmul.f32.gmra.mxu0 %v226
    %v359 = vpop.f32.mrf.mxu0
    %v360 = vadd.f32 0.0, %v359
    %361 = vmatmul.f32.gmra.mxu0 %v229
    %v362 = vpop.f32.mrf.mxu0
    %v363 = vadd.f32 0.0, %v362
    %364 = vmatmul.f32.gmra.mxu0 %v232
    %v365 = vpop.f32.mrf.mxu0
    %v366 = vadd.f32 0.0, %v365
    %367 = vmatmul.f32.gmra.mxu0 %v235
    %v368 = vpop.f32.mrf.mxu0
    %v369 = vadd.f32 0.0, %v368
    %370 = vmatmul.f32.gmra.mxu0 %v238
    %v371 = vpop.f32.mrf.mxu0
    %v372 = vadd.f32 0.0, %v371
    %373 = vmatmul.f32.gmra.mxu0 %v241
    %v374 = vpop.f32.mrf.mxu0
    %v375 = vadd.f32 0.0, %v374
    %376 = vmatmul.f32.gmra.mxu0 %v244
    %v377 = vpop.f32.mrf.mxu0
    %v378 = vadd.f32 0.0, %v377
    %379 = vmatmul.f32.gmra.mxu0 %v247
    %v380 = vpop.f32.mrf.mxu0
    %v381 = vadd.f32 0.0, %v380
    %382 = vmatmul.f32.gmra.mxu0 %v294
    %v383 = vpop.f32.mrf.mxu0
    %v384 = vadd.f32 0.0, %v383
    %385 = vdwg.mxu0
    %v386 = vadd.f32 %v314, %v360
    %v387 = vadd.f32 %v317, %v363
    %v388 = vadd.f32 %v320, %v366
    %v389 = vadd.f32 %v323, %v369
    %v390 = vadd.f32 %v326, %v372
    %v391 = vadd.f32 %v329, %v375
    %v392 = vadd.f32 %v332, %v378
    %v393 = vadd.f32 %v335, %v381
    %v394 = vadd.f32 %v338, %v384
    %v395 = vld [vmem:[#allocation9 + $0x2] ss:$0 sm:$0xff]
    %v396 = vmul.f32 %v386, %v395
    %v397 = vmul.f32 %v387, %v395
    %v398 = vmul.f32 %v388, %v395
    %v399 = vmul.f32 %v389, %v395
    %v400 = vmul.f32 %v390, %v395
    %v401 = vmul.f32 %v391, %v395
    %v402 = vmul.f32 %v392, %v395
    %v403 = vmul.f32 %v393, %v395
    %v404 = vmul.f32 %v394, %v395
    %v405 = vld [vmem:[#allocation9 + $0x3] ss:$0 sm:$0xff]
    %v406 = vadd.f32 %v396, %v405
    %v407 = vadd.f32 %v397, %v405
    %v408 = vadd.f32 %v398, %v405
    %v409 = vadd.f32 %v399, %v405
    %v410 = vadd.f32 %v400, %v405
    %v411 = vadd.f32 %v401, %v405
    %v412 = vadd.f32 %v402, %v405
    %v413 = vadd.f32 %v403, %v405
    %v414 = vadd.f32 %v404, %v405
    %v415 = vmax.f32 %v406, 0.0
    %v416 = vmax.f32 %v407, 0.0
    %v417 = vmax.f32 %v408, 0.0
    %v418 = vmax.f32 %v409, 0.0
    %v419 = vmax.f32 %v410, 0.0
    %v420 = vmax.f32 %v411, 0.0
    %v421 = vmax.f32 %v412, 0.0
    %v422 = vmax.f32 %v413, 0.0
    %v423 = vmax.f32 %v414, 0.0
    %v424 = vld [vmem:[#allocation7 + $0x70] sm:$0x7]
    %v425 = vsel %vm121, %v90, 0
    %v427 = vsel %vm121, %v93, 0
    %v429 = vsel %vm121, %v95, 0
    %v431 = vsel %vm121, %v97, 0
    %v433 = vsel %vm121, %v99, 0
    %v435 = vsel %vm121, %v101, 0
    %v437 = vsel %vm121, %v103, 0
    %v439 = vsel %vm121, %v105, 0
    %v442 = vsel %vm140, %v424, 0
    %444 = vmatpush.msra.mxu0 0.0
    %445 = vmatpush.msra.mxu0 0.0
    %446 = vmatpush.msra.mxu0 0.0
    %447 = vmatpush.msra.mxu0 0.0
    %448 = vmatpush.msra.mxu0 0.0
    %449 = vmatpush.msra.mxu0 0.0
    %450 = vmatpush.msra.mxu0 0.0
    %451 = vmatpush.msra.mxu0 0.0
    %452 = vmatpush.msra.mxu0 0.0
    %453 = vmatpush.msra.mxu0 0.0
    %454 = vmatpush.msra.mxu0 0.0
    %455 = vmatpush.msra.mxu0 0.0
    %456 = vmatpush.msra.mxu0 0.0
    %457 = vmatpush.msra.mxu0 0.0
    %458 = vmatpush.msra.mxu0 0.0
    %459 = vmatpush.msra.mxu0 %v442
    %460 = vmatmul.f32.gmra.mxu0 %v425
    %v461 = vpop.f32.mrf.mxu0
    %v462 = vadd.f32 0.0, %v461
    %463 = vmatmul.f32.gmra.mxu0 %v427
    %v464 = vpop.f32.mrf.mxu0
    %v465 = vadd.f32 0.0, %v464
    %466 = vmatmul.f32.gmra.mxu0 %v429
    %v467 = vpop.f32.mrf.mxu0
    %v468 = vadd.f32 0.0, %v467
    %469 = vmatmul.f32.gmra.mxu0 %v431
    %v470 = vpop.f32.mrf.mxu0
    %v471 = vadd.f32 0.0, %v470
    %472 = vmatmul.f32.gmra.mxu0 %v433
    %v473 = vpop.f32.mrf.mxu0
    %v474 = vadd.f32 0.0, %v473
    %475 = vmatmul.f32.gmra.mxu0 %v435
    %v476 = vpop.f32.mrf.mxu0
    %v477 = vadd.f32 0.0, %v476
    %478 = vmatmul.f32.gmra.mxu0 %v437
    %v479 = vpop.f32.mrf.mxu0
    %v480 = vadd.f32 0.0, %v479
    %481 = vmatmul.f32.gmra.mxu0 %v439
    %v482 = vpop.f32.mrf.mxu0
    %v483 = vadd.f32 0.0, %v482
    %484 = vdwg.mxu0
    %v485 = vld [vmem:[#allocation9 + $0x4] ss:$0 sm:$0xff]
    %v486 = vmul.f32 %v462, %v485
    %v487 = vmul.f32 %v465, %v485
    %v488 = vmul.f32 %v468, %v485
    %v489 = vmul.f32 %v471, %v485
    %v490 = vmul.f32 %v474, %v485
    %v491 = vmul.f32 %v477, %v485
    %v492 = vmul.f32 %v480, %v485
    %v493 = vmul.f32 %v483, %v485
    %v494 = vld [vmem:[#allocation9 + $0x5] ss:$0 sm:$0xff]
    %v495 = vadd.f32 %v486, %v494
    %v496 = vadd.f32 %v487, %v494
    %v497 = vadd.f32 %v488, %v494
    %v498 = vadd.f32 %v489, %v494
    %v499 = vadd.f32 %v490, %v494
    %v500 = vadd.f32 %v491, %v494
    %v501 = vadd.f32 %v492, %v494
    %v502 = vadd.f32 %v493, %v494
    %v503 = vmax.f32 %v495, 0.0
    %v504 = vmax.f32 %v496, 0.0
    %v505 = vmax.f32 %v497, 0.0
    %v506 = vmax.f32 %v498, 0.0
    %v507 = vmax.f32 %v499, 0.0
    %v508 = vmax.f32 %v500, 0.0
    %v509 = vmax.f32 %v501, 0.0
    %v510 = vmax.f32 %v502, 0.0
    %v511 = vld [vmem:[#allocation7 + $0x80] sm:$0x3]
    %vm512 = vcmask 15360
    %v513 = vsel %vm512, %v61, 0
    %v515 = vsel %vm512, %v107, 0
    %v517 = vsel %vm512, %v109, 0
    %v519 = vsel %vm512, %v111, 0
    %v521 = vsel %vm512, %v113, 0
    %v523 = vsel %vm512, %v115, 0
    %v525 = vsel %vm512, %v117, 0
    %v527 = vsel %vm512, %v119, 0
    %vm529 = vcmask 1041408
    %v531 = vsel %vm529, %v511, 0
    %533 = vmatpush.msra.mxu0 0.0
    %534 = vmatpush.msra.mxu0 0.0
    %535 = vmatpush.msra.mxu0 0.0
    %536 = vmatpush.msra.mxu0 0.0
    %537 = vmatpush.msra.mxu0 0.0
    %538 = vmatpush.msra.mxu0 0.0
    %539 = vmatpush.msra.mxu0 0.0
    %540 = vmatpush.msra.mxu0 0.0
    %541 = vmatpush.msra.mxu0 0.0
    %542 = vmatpush.msra.mxu0 0.0
    %543 = vmatpush.msra.mxu0 0.0
    %544 = vmatpush.msra.mxu0 0.0
    %545 = vmatpush.msra.mxu0 0.0
    %546 = vmatpush.msra.mxu0 0.0
    %547 = vmatpush.msra.mxu0 0.0
    %548 = vmatpush.msra.mxu0 %v531
    %549 = vmatmul.f32.gmra.mxu0 %v513
    %v550 = vpop.f32.mrf.mxu0
    %v551 = vadd.f32 0.0, %v550
    %552 = vmatmul.f32.gmra.mxu0 %v515
    %v553 = vpop.f32.mrf.mxu0
    %v554 = vadd.f32 0.0, %v553
    %555 = vmatmul.f32.gmra.mxu0 %v517
    %v556 = vpop.f32.mrf.mxu0
    %v557 = vadd.f32 0.0, %v556
    %558 = vmatmul.f32.gmra.mxu0 %v519
    %v559 = vpop.f32.mrf.mxu0
    %v560 = vadd.f32 0.0, %v559
    %561 = vmatmul.f32.gmra.mxu0 %v521
    %v562 = vpop.f32.mrf.mxu0
    %v563 = vadd.f32 0.0, %v562
    %564 = vmatmul.f32.gmra.mxu0 %v523
    %v565 = vpop.f32.mrf.mxu0
    %v566 = vadd.f32 0.0, %v565
    %567 = vmatmul.f32.gmra.mxu0 %v525
    %v568 = vpop.f32.mrf.mxu0
    %v569 = vadd.f32 0.0, %v568
    %570 = vmatmul.f32.gmra.mxu0 %v527
    %v571 = vpop.f32.mrf.mxu0
    %v572 = vadd.f32 0.0, %v571
    %573 = vdwg.mxu0
    %v574 = vld [vmem:[#allocation9 + $0x6] ss:$0 sm:$0xff]
    %v575 = vmul.f32 %v551, %v574
    %v576 = vmul.f32 %v554, %v574
    %v577 = vmul.f32 %v557, %v574
    %v578 = vmul.f32 %v560, %v574
    %v579 = vmul.f32 %v563, %v574
    %v580 = vmul.f32 %v566, %v574
    %v581 = vmul.f32 %v569, %v574
    %v582 = vmul.f32 %v572, %v574
    %v583 = vld [vmem:[#allocation9 + $0x7] ss:$0 sm:$0xff]
    %v584 = vadd.f32 %v575, %v583
    %v585 = vadd.f32 %v576, %v583
    %v586 = vadd.f32 %v577, %v583
    %v587 = vadd.f32 %v578, %v583
    %v588 = vadd.f32 %v579, %v583
    %v589 = vadd.f32 %v580, %v583
    %v590 = vadd.f32 %v581, %v583
    %v591 = vadd.f32 %v582, %v583
    %v592 = vmax.f32 %v584, 0.0
    %v593 = vmax.f32 %v585, 0.0
    %v594 = vmax.f32 %v586, 0.0
    %v595 = vmax.f32 %v587, 0.0
    %v596 = vmax.f32 %v588, 0.0
    %v597 = vmax.f32 %v589, 0.0
    %v598 = vmax.f32 %v590, 0.0
    %v599 = vmax.f32 %v591, 0.0
    %v600 = vpack.c.bf16 %v416, %v415
    %v601 = vpack.c.bf16 %v418, %v417
    %v602 = vpack.c.bf16 %v420, %v419
    %v603 = vpack.c.bf16 %v422, %v421
    %v604 = vpack.c.bf16 %v423, %v423
    %v605 = vld [vmem:[#allocation7 + $0x90] sm:$0xff]
    %v606 = vld [vmem:[#allocation7 + $0x98] sm:$0xff]
    %v607 = vld [vmem:[#allocation7 + $0xa0] sm:$0xff]
    %v608 = vld [vmem:[#allocation7 + $0xa8] sm:$0xff]
    %v609 = vpack.c.bf16 %v607, %v605
    %v610 = vpack.c.bf16 %v608, %v606
    %v611 = vpack.c.bf16 %v504, %v503
    %v612 = vpack.c.bf16 %v506, %v505
    %v613 = vpack.c.bf16 %v508, %v507
    %v614 = vpack.c.bf16 %v510, %v509
    %v615 = vpack.c.bf16 0.0, 0.0
    %v616 = vld [vmem:[#allocation7 + $0xb0] sm:$0xff]
    %v617 = vld [vmem:[#allocation7 + $0xb8] sm:$0xff]
    %v618 = vld [vmem:[#allocation7 + $0xc0] sm:$0xff]
    %v619 = vld [vmem:[#allocation7 + $0xc8] sm:$0xff]
    %v620 = vpack.c.bf16 %v618, %v616
    %v621 = vpack.c.bf16 %v619, %v617
    %v623 = vsel %vm221, %v611, 0
    %v626 = vsel %vm221, %v612, 0
    %v629 = vsel %vm221, %v613, 0
    %v632 = vsel %vm221, %v614, 0
    %v635 = vsel %vm221, %v615, 0
    %637 = vmatpush.bf16.msra.mxu0 0
    %638 = vmatpush.bf16.msra.mxu0 0
    %639 = vmatpush.bf16.msra.mxu0 0
    %640 = vmatpush.bf16.msra.mxu0 0
    %641 = vmatpush.bf16.msra.mxu0 0
    %642 = vmatpush.bf16.msra.mxu0 0
    %643 = vmatpush.bf16.msra.mxu0 0
    %644 = vmatpush.bf16.msra.mxu0 %v620
    %645 = vmatmul.bf16.gmra.mxu0 %v623
    %v646 = vpop.f32.mrf.mxu0
    %v647 = vadd.f32 0.0, %v646
    %v648 = vpop.f32.mrf.mxu0
    %v649 = vadd.f32 0.0, %v648
    %650 = vmatmul.bf16.gmra.mxu0 %v626
    %v651 = vpop.f32.mrf.mxu0
    %v652 = vadd.f32 0.0, %v651
    %v653 = vpop.f32.mrf.mxu0
    %v654 = vadd.f32 0.0, %v653
    %655 = vmatmul.bf16.gmra.mxu0 %v629
    %v656 = vpop.f32.mrf.mxu0
    %v657 = vadd.f32 0.0, %v656
    %v658 = vpop.f32.mrf.mxu0
    %v659 = vadd.f32 0.0, %v658
    %660 = vmatmul.bf16.gmra.mxu0 %v632
    %v661 = vpop.f32.mrf.mxu0
    %v662 = vadd.f32 0.0, %v661
    %v663 = vpop.f32.mrf.mxu0
    %v664 = vadd.f32 0.0, %v663
    %665 = vmatmul.bf16.gmra.mxu0 %v635
    %v666 = vpop.f32.mrf.mxu0
    %v667 = vadd.f32 0.0, %v666
    %v668 = vpop.f32.mrf.mxu0
    %669 = vdwg.mxu0
    %670 = vmatpush.bf16.msra.mxu0 0
    %671 = vmatpush.bf16.msra.mxu0 0
    %672 = vmatpush.bf16.msra.mxu0 0
    %673 = vmatpush.bf16.msra.mxu0 0
    %674 = vmatpush.bf16.msra.mxu0 0
    %675 = vmatpush.bf16.msra.mxu0 0
    %676 = vmatpush.bf16.msra.mxu0 0
    %677 = vmatpush.bf16.msra.mxu0 %v621
    %678 = vmatmul.bf16.gmra.mxu0 %v623
    %v679 = vpop.f32.mrf.mxu0
    %v680 = vadd.f32 0.0, %v679
    %v681 = vpop.f32.mrf.mxu0
    %v682 = vadd.f32 0.0, %v681
    %683 = vmatmul.bf16.gmra.mxu0 %v626
    %v684 = vpop.f32.mrf.mxu0
    %v685 = vadd.f32 0.0, %v684
    %v686 = vpop.f32.mrf.mxu0
    %v687 = vadd.f32 0.0, %v686
    %688 = vmatmul.bf16.gmra.mxu0 %v629
    %v689 = vpop.f32.mrf.mxu0
    %v690 = vadd.f32 0.0, %v689
    %v691 = vpop.f32.mrf.mxu0
    %v692 = vadd.f32 0.0, %v691
    %693 = vmatmul.bf16.gmra.mxu0 %v632
    %v694 = vpop.f32.mrf.mxu0
    %v695 = vadd.f32 0.0, %v694
    %v696 = vpop.f32.mrf.mxu0
    %v697 = vadd.f32 0.0, %v696
    %698 = vmatmul.bf16.gmra.mxu0 %v635
    %v699 = vpop.f32.mrf.mxu0
    %v700 = vadd.f32 0.0, %v699
    %v701 = vpop.f32.mrf.mxu0
    %702 = vdwg.mxu0
    %v704 = vsel %vm221, %v600, 0
    %v707 = vsel %vm221, %v601, 0
    %v710 = vsel %vm221, %v602, 0
    %v713 = vsel %vm221, %v603, 0
    %v716 = vsel %vm221, %v604, 0
    %718 = vmatpush.bf16.msra.mxu0 0
    %719 = vmatpush.bf16.msra.mxu0 0
    %720 = vmatpush.bf16.msra.mxu0 0
    %721 = vmatpush.bf16.msra.mxu0 0
    %722 = vmatpush.bf16.msra.mxu0 0
    %723 = vmatpush.bf16.msra.mxu0 0
    %724 = vmatpush.bf16.msra.mxu0 0
    %725 = vmatpush.bf16.msra.mxu0 %v609
    %726 = vmatmul.bf16.gmra.mxu0 %v704
    %v727 = vpop.f32.mrf.mxu0
    %v728 = vadd.f32 %v647, %v727
    %v729 = vpop.f32.mrf.mxu0
    %v730 = vadd.f32 %v649, %v729
    %731 = vmatmul.bf16.gmra.mxu0 %v707
    %v732 = vpop.f32.mrf.mxu0
    %v733 = vadd.f32 %v652, %v732
    %v734 = vpop.f32.mrf.mxu0
    %v735 = vadd.f32 %v654, %v734
    %736 = vmatmul.bf16.gmra.mxu0 %v710
    %v737 = vpop.f32.mrf.mxu0
    %v738 = vadd.f32 %v657, %v737
    %v739 = vpop.f32.mrf.mxu0
    %v740 = vadd.f32 %v659, %v739
    %741 = vmatmul.bf16.gmra.mxu0 %v713
    %v742 = vpop.f32.mrf.mxu0
    %v743 = vadd.f32 %v662, %v742
    %v744 = vpop.f32.mrf.mxu0
    %v745 = vadd.f32 %v664, %v744
    %746 = vmatmul.bf16.gmra.mxu0 %v716
    %v747 = vpop.f32.mrf.mxu0
    %v748 = vadd.f32 %v667, %v747
    %v749 = vpop.f32.mrf.mxu0
    %750 = vdwg.mxu0
    %751 = vmatpush.bf16.msra.mxu0 0
    %752 = vmatpush.bf16.msra.mxu0 0
    %753 = vmatpush.bf16.msra.mxu0 0
    %754 = vmatpush.bf16.msra.mxu0 0
    %755 = vmatpush.bf16.msra.mxu0 0
    %756 = vmatpush.bf16.msra.mxu0 0
    %757 = vmatpush.bf16.msra.mxu0 0
    %758 = vmatpush.bf16.msra.mxu0 %v610
    %759 = vmatmul.bf16.gmra.mxu0 %v704
    %v760 = vpop.f32.mrf.mxu0
    %v761 = vadd.f32 %v680, %v760
    %v762 = vpop.f32.mrf.mxu0
    %v763 = vadd.f32 %v682, %v762
    %764 = vmatmul.bf16.gmra.mxu0 %v707
    %v765 = vpop.f32.mrf.mxu0
    %v766 = vadd.f32 %v685, %v765
    %v767 = vpop.f32.mrf.mxu0
    %v768 = vadd.f32 %v687, %v767
    %769 = vmatmul.bf16.gmra.mxu0 %v710
    %v770 = vpop.f32.mrf.mxu0
    %v771 = vadd.f32 %v690, %v770
    %v772 = vpop.f32.mrf.mxu0
    %v773 = vadd.f32 %v692, %v772
    %774 = vmatmul.bf16.gmra.mxu0 %v713
    %v775 = vpop.f32.mrf.mxu0
    %v776 = vadd.f32 %v695, %v775
    %v777 = vpop.f32.mrf.mxu0
    %v778 = vadd.f32 %v697, %v777
    %779 = vmatmul.bf16.gmra.mxu0 %v716
    %v780 = vpop.f32.mrf.mxu0
    %v781 = vadd.f32 %v700, %v780
    %v782 = vpop.f32.mrf.mxu0
    %783 = vdwg.mxu0
    %v784 = vpack.c.bf16 %v593, %v592
    %v785 = vpack.c.bf16 %v595, %v594
    %v786 = vpack.c.bf16 %v597, %v596
    %v787 = vpack.c.bf16 %v599, %v598
    %v788 = vld [vmem:[#allocation7 + $0xd0] sm:$0xff]
    %v789 = vld [vmem:[#allocation7 + $0xd8] sm:$0xff]
    %v790 = vld [vmem:[#allocation7 + $0xe0] sm:$0xff]
    %v791 = vld [vmem:[#allocation7 + $0xe8] sm:$0xff]
    %v792 = vpack.c.bf16 %v790, %v788
    %v793 = vpack.c.bf16 %v791, %v789
    %v795 = vsel %vm221, %v784, 0
    %v798 = vsel %vm221, %v785, 0
    %v801 = vsel %vm221, %v786, 0
    %v804 = vsel %vm221, %v787, 0
    %806 = vmatpush.bf16.msra.mxu0 0
    %807 = vmatpush.bf16.msra.mxu0 0
    %808 = vmatpush.bf16.msra.mxu0 0
    %809 = vmatpush.bf16.msra.mxu0 0
    %810 = vmatpush.bf16.msra.mxu0 0
    %811 = vmatpush.bf16.msra.mxu0 0
    %812 = vmatpush.bf16.msra.mxu0 0
    %813 = vmatpush.bf16.msra.mxu0 %v792
    %814 = vmatmul.bf16.gmra.mxu0 %v795
    %v815 = vpop.f32.mrf.mxu0
    %v816 = vadd.f32 0.0, %v815
    %v817 = vpop.f32.mrf.mxu0
    %v818 = vadd.f32 0.0, %v817
    %819 = vmatmul.bf16.gmra.mxu0 %v798
    %v820 = vpop.f32.mrf.mxu0
    %v821 = vadd.f32 0.0, %v820
    %v822 = vpop.f32.mrf.mxu0
    %v823 = vadd.f32 0.0, %v822
    %824 = vmatmul.bf16.gmra.mxu0 %v801
    %v825 = vpop.f32.mrf.mxu0
    %v826 = vadd.f32 0.0, %v825
    %v827 = vpop.f32.mrf.mxu0
    %v828 = vadd.f32 0.0, %v827
    %829 = vmatmul.bf16.gmra.mxu0 %v804
    %v830 = vpop.f32.mrf.mxu0
    %v831 = vadd.f32 0.0, %v830
    %v832 = vpop.f32.mrf.mxu0
    %v833 = vadd.f32 0.0, %v832
    %834 = vmatmul.bf16.gmra.mxu0 %v635
    %v835 = vpop.f32.mrf.mxu0
    %v836 = vadd.f32 0.0, %v835
    %v837 = vpop.f32.mrf.mxu0
    %838 = vdwg.mxu0
    %839 = vmatpush.bf16.msra.mxu0 0
    %840 = vmatpush.bf16.msra.mxu0 0
    %841 = vmatpush.bf16.msra.mxu0 0
    %842 = vmatpush.bf16.msra.mxu0 0
    %843 = vmatpush.bf16.msra.mxu0 0
    %844 = vmatpush.bf16.msra.mxu0 0
    %845 = vmatpush.bf16.msra.mxu0 0
    %846 = vmatpush.bf16.msra.mxu0 %v793
    %847 = vmatmul.bf16.gmra.mxu0 %v795
    %v848 = vpop.f32.mrf.mxu0
    %v849 = vadd.f32 0.0, %v848
    %v850 = vpop.f32.mrf.mxu0
    %v851 = vadd.f32 0.0, %v850
    %852 = vmatmul.bf16.gmra.mxu0 %v798
    %v853 = vpop.f32.mrf.mxu0
    %v854 = vadd.f32 0.0, %v853
    %v855 = vpop.f32.mrf.mxu0
    %v856 = vadd.f32 0.0, %v855
    %857 = vmatmul.bf16.gmra.mxu0 %v801
    %v858 = vpop.f32.mrf.mxu0
    %v859 = vadd.f32 0.0, %v858
    %v860 = vpop.f32.mrf.mxu0
    %v861 = vadd.f32 0.0, %v860
    %862 = vmatmul.bf16.gmra.mxu0 %v804
    %v863 = vpop.f32.mrf.mxu0
    %v864 = vadd.f32 0.0, %v863
    %v865 = vpop.f32.mrf.mxu0
    %v866 = vadd.f32 0.0, %v865
    %867 = vmatmul.bf16.gmra.mxu0 %v635
    %v868 = vpop.f32.mrf.mxu0
    %v869 = vadd.f32 0.0, %v868
    %v870 = vpop.f32.mrf.mxu0
    %871 = vdwg.mxu0
    %v872 = vadd.f32 %v728, %v816
    %v873 = vadd.f32 %v761, %v849
    %v874 = vadd.f32 %v730, %v818
    %v875 = vadd.f32 %v763, %v851
    %v876 = vadd.f32 %v733, %v821
    %v877 = vadd.f32 %v766, %v854
    %v878 = vadd.f32 %v735, %v823
    %v879 = vadd.f32 %v768, %v856
    %v880 = vadd.f32 %v738, %v826
    %v881 = vadd.f32 %v771, %v859
    %v882 = vadd.f32 %v740, %v828
    %v883 = vadd.f32 %v773, %v861
    %v884 = vadd.f32 %v743, %v831
    %v885 = vadd.f32 %v776, %v864
    %v886 = vadd.f32 %v745, %v833
    %v887 = vadd.f32 %v778, %v866
    %v888 = vadd.f32 %v748, %v836
    %v889 = vadd.f32 %v781, %v869
    %s890 = scalar_lea.vmem [#allocation9], 16
    %v891 = vld [vmem:[%s890] ss:$8 sm:$0x3]
    %v893 = vperm.slane %v891, 0
    %v894 = vperm.slane %v891, 1
    %v897 = vadd.f32 %v872, %v893
    %v898 = vadd.f32 %v873, %v894
    %v899 = vadd.f32 %v874, %v893
    %v900 = vadd.f32 %v875, %v894
    %v901 = vadd.f32 %v876, %v893
    %v902 = vadd.f32 %v877, %v894
    %v903 = vadd.f32 %v878, %v893
    %v904 = vadd.f32 %v879, %v894
    %v905 = vadd.f32 %v880, %v893
    %v906 = vadd.f32 %v881, %v894
    %v907 = vadd.f32 %v882, %v893
    %v908 = vadd.f32 %v883, %v894
    %v909 = vadd.f32 %v884, %v893
    %v910 = vadd.f32 %v885, %v894
    %v911 = vadd.f32 %v886, %v893
    %v912 = vadd.f32 %v887, %v894
    %v913 = vadd.f32 %v888, %v893
    %v914 = vadd.f32 %v889, %v894
    %v915 = vld [vmem:[#allocation7 + $0xf0] sm:$0xff]
    %v916 = vld [vmem:[#allocation7 + $0xf8] sm:$0xff]
    %v917 = vld [vmem:[#allocation7 + $0x100] sm:$0xff]
    %v918 = vld [vmem:[#allocation7 + $0x108] sm:$0xff]
    %v919 = vld [vmem:[#allocation7 + $0x110] sm:$0xff]
    %v920 = vld [vmem:[#allocation7 + $0x118] sm:$0xff]
    %v921 = vld [vmem:[#allocation7 + $0x120] sm:$0xff]
    %v922 = vld [vmem:[#allocation7 + $0x128] sm:$0xff]
    %v923 = vld [vmem:[#allocation7 + $0x130] sm:$0xff]
    %v924 = vld [vmem:[#allocation7 + $0x138] sm:$0xff]
    %v925 = vld [vmem:[#allocation7 + $0x140] sm:$0xff]
    %v926 = vld [vmem:[#allocation7 + $0x148] sm:$0xff]
    %v927 = vld [vmem:[#allocation7 + $0x150] sm:$0xff]
    %v928 = vld [vmem:[#allocation7 + $0x158] sm:$0xff]
    %v929 = vld [vmem:[#allocation7 + $0x160] sm:$0xff]
    %v930 = vld [vmem:[#allocation7 + $0x168] sm:$0xff]
    %vm931 = vcmask 523264
    %v932 = vsel %vm931, 0.0, 0
    %934 = vmatpush.msra.mxu0 0.0
    %935 = vmatpush.msra.mxu0 0.0
    %936 = vmatpush.msra.mxu0 0.0
    %937 = vmatpush.msra.mxu0 0.0
    %938 = vmatpush.msra.mxu0 0.0
    %939 = vmatpush.msra.mxu0 0.0
    %940 = vmatpush.msra.mxu0 0.0
    %941 = vmatpush.msra.mxu0 0.0
    %942 = vmatpush.msra.mxu0 %v929
    %943 = vmatpush.msra.mxu0 %v927
    %944 = vmatpush.msra.mxu0 %v925
    %945 = vmatpush.msra.mxu0 %v923
    %946 = vmatpush.msra.mxu0 %v921
    %947 = vmatpush.msra.mxu0 %v919
    %948 = vmatpush.msra.mxu0 %v917
    %949 = vmatpush.msra.mxu0 %v915
    %950 = vmatmul.f32.gmra.mxu0 %v932
    %v951 = vpop.f32.mrf.mxu0
    %v952 = vadd.f32 0.0, %v951
    %953 = vdwg.mxu0
    %954 = vmatpush.msra.mxu0 0.0
    %955 = vmatpush.msra.mxu0 0.0
    %956 = vmatpush.msra.mxu0 0.0
    %957 = vmatpush.msra.mxu0 0.0
    %958 = vmatpush.msra.mxu0 0.0
    %959 = vmatpush.msra.mxu0 0.0
    %960 = vmatpush.msra.mxu0 0.0
    %961 = vmatpush.msra.mxu0 0.0
    %962 = vmatpush.msra.mxu0 %v930
    %963 = vmatpush.msra.mxu0 %v928
    %964 = vmatpush.msra.mxu0 %v926
    %965 = vmatpush.msra.mxu0 %v924
    %966 = vmatpush.msra.mxu0 %v922
    %967 = vmatpush.msra.mxu0 %v920
    %968 = vmatpush.msra.mxu0 %v918
    %969 = vmatpush.msra.mxu0 %v916
    %970 = vmatmul.f32.gmra.mxu0 %v932
    %v971 = vpop.f32.mrf.mxu0
    %v972 = vadd.f32 0.0, %v971
    %973 = vdwg.mxu0
    %v974 = vadd.f32 %v897, %v952
    %v975 = vadd.f32 %v914, %v972
    %v976 = vxor.u32 %v974, 2147483648
    %v977 = vxor.u32 %v975, 2147483648
    %v978 = vmul.f32 %v976, 1.442695
    %v979 = vpow.pop %v978
    %v980 = vmul.f32 %v977, 1.442695
    %v981 = vpow.pop %v980
    %v982 = vadd.f32 %v979, 1.0
    %v983 = vadd.f32 %v981, 1.0
    %v984 = vrcp.pop %v982
    %v985 = vmul.f32 %v982, %v984
    %v986 = vsub.f32 1.0, %v985
    %v987 = vmul.f32 %v984, %v986
    %v988 = vadd.f32 %v984, %v987
    %vm989 = vweird.f32 %v982
    %vm990 = vweird.f32 %v984
    %vm991 = vmor %vm989, %vm990
    %v992 = vsel %vm991, %v984, %v988
    %v993 = vand.u32 2147483647, %v982
    %vm994 = vcmp.eq.f32.partialorder %v993, 8.507059e+37
    %v995 = vand.u32 %v982, 2147483648
    %v996 = vor.u32 1.1754944e-38, %v995
    %v997 = vsel %vm994, %v996, %v992
    %v998 = vmul.f32 1.0, %v997
    %v999 = vrcp.pop %v983
    %v1000 = vmul.f32 %v983, %v999
    %v1001 = vsub.f32 1.0, %v1000
    %v1002 = vmul.f32 %v999, %v1001
    %v1003 = vadd.f32 %v999, %v1002
    %vm1004 = vweird.f32 %v983
    %vm1005 = vweird.f32 %v999
    %vm1006 = vmor %vm1004, %vm1005
    %v1007 = vsel %vm1006, %v999, %v1003
    %v1008 = vand.u32 2147483647, %v983
    %vm1009 = vcmp.eq.f32.partialorder %v1008, 8.507059e+37
    %v1010 = vand.u32 %v983, 2147483648
    %v1011 = vor.u32 1.1754944e-38, %v1010
    %v1012 = vsel %vm1009, %v1011, %v1007
    %v1013 = vmul.f32 1.0, %v1012
    %v1014 = vmul.f32 %v998, 2.0
    %v1015 = vsub.f32 %v1014, 1.0
    %v1016 = vmul.f32 %v1013, 2.0
    %v1017 = vsub.f32 %v1016, 1.0
    %v1018 = vmul.f32 %v998, 0.0
    %1020 = vrot.lane.b32.xlu0 %v1015, 32
    %v1021 = vpop.permute.xlu0 %1020
    %v1023 = vmul.f32 %v998, %v1021
    %1025 = vrot.lane.b32.xlu0 %v1023, 32
    %v1026 = vpop.permute.xlu0 %1025
    %v1028 = vadd.f32 %v1018, %v1026
    %v1029 = vmul.f32 %v1013, 0.0
    %1031 = vrot.lane.b32.xlu0 %v1017, 32
    %v1032 = vpop.permute.xlu0 %1031
    %v1034 = vmul.f32 %v1013, %v1032
    %1036 = vrot.lane.b32.xlu0 %v1034, 32
    %v1037 = vpop.permute.xlu0 %1036
    %v1039 = vadd.f32 %v1029, %v1037
    %1041 = vrot.lane.b32.xlu0 %v998, 64
    %v1042 = vpop.permute.xlu0 %1041
    %1045 = vrot.lane.b32.xlu0 %v1013, 96
    %v1046 = vpop.permute.xlu0 %1045
    %vm1048 = vcmask 261120
    %v1049 = vsel %vm1048, %v1042, %v1046
    %1051 = vrot.lane.b32.xlu0 %v1028, 96
    %v1052 = vpop.permute.xlu0 %1051
    %v1054 = vsel %vm1048, %v1052, %v1039
    %v1055 = vtanh.pop %v1054
    %v1056 = vmul.f32 %v1049, %v1055
    %1057 = vst.msk [vmem:[#allocation2] sm:$0xff] %vm1048, %v1056
    %vm1058 = vcmask 523520
    %1059 = vst.msk [vmem:[#allocation2 + $0x40] sm:$0xff] %vm1058, %v1056
    %v1061 = vsel %vm931, %v1056, 0
    %1063 = vmatpush.msra.mxu0 0.0
    %1064 = vmatpush.msra.mxu0 0.0
    %1065 = vmatpush.msra.mxu0 0.0
    %1066 = vmatpush.msra.mxu0 0.0
    %1067 = vmatpush.msra.mxu0 0.0
    %1068 = vmatpush.msra.mxu0 0.0
    %1069 = vmatpush.msra.mxu0 0.0
    %1070 = vmatpush.msra.mxu0 0.0
    %1071 = vmatpush.msra.mxu0 %v929
    %1072 = vmatpush.msra.mxu0 %v927
    %1073 = vmatpush.msra.mxu0 %v925
    %1074 = vmatpush.msra.mxu0 %v923
    %1075 = vmatpush.msra.mxu0 %v921
    %1076 = vmatpush.msra.mxu0 %v919
    %1077 = vmatpush.msra.mxu0 %v917
    %1078 = vmatpush.msra.mxu0 %v915
    %1079 = vmatmul.f32.gmra.mxu0 %v1061
    %v1080 = vpop.f32.mrf.mxu0
    %v1081 = vadd.f32 0.0, %v1080
    %1082 = vdwg.mxu0
    %1083 = vmatpush.msra.mxu0 0.0
    %1084 = vmatpush.msra.mxu0 0.0
    %1085 = vmatpush.msra.mxu0 0.0
    %1086 = vmatpush.msra.mxu0 0.0
    %1087 = vmatpush.msra.mxu0 0.0
    %1088 = vmatpush.msra.mxu0 0.0
    %1089 = vmatpush.msra.mxu0 0.0
    %1090 = vmatpush.msra.mxu0 0.0
    %1091 = vmatpush.msra.mxu0 %v930
    %1092 = vmatpush.msra.mxu0 %v928
    %1093 = vmatpush.msra.mxu0 %v926
    %1094 = vmatpush.msra.mxu0 %v924
    %1095 = vmatpush.msra.mxu0 %v922
    %1096 = vmatpush.msra.mxu0 %v920
    %1097 = vmatpush.msra.mxu0 %v918
    %1098 = vmatpush.msra.mxu0 %v916
    %1099 = vmatmul.f32.gmra.mxu0 %v1061
    %v1100 = vpop.f32.mrf.mxu0
    %v1101 = vadd.f32 0.0, %v1100
    %1102 = vdwg.mxu0
    %v1103 = vadd.f32 %v899, %v1081
    %v1104 = vadd.f32 %v912, %v1101
    %v1105 = vxor.u32 %v1103, 2147483648
    %v1106 = vxor.u32 %v1104, 2147483648
    %v1107 = vmul.f32 %v1105, 1.442695
    %v1108 = vpow.pop %v1107
    %v1109 = vmul.f32 %v1106, 1.442695
    %v1110 = vpow.pop %v1109
    %v1111 = vadd.f32 %v1108, 1.0
    %v1112 = vadd.f32 %v1110, 1.0
    %v1113 = vrcp.pop %v1111
    %v1114 = vmul.f32 %v1111, %v1113
    %v1115 = vsub.f32 1.0, %v1114
    %v1116 = vmul.f32 %v1113, %v1115
    %v1117 = vadd.f32 %v1113, %v1116
    %vm1118 = vweird.f32 %v1111
    %vm1119 = vweird.f32 %v1113
    %vm1120 = vmor %vm1118, %vm1119
    %v1121 = vsel %vm1120, %v1113, %v1117
    %v1122 = vand.u32 2147483647, %v1111
    %vm1123 = vcmp.eq.f32.partialorder %v1122, 8.507059e+37
    %v1124 = vand.u32 %v1111, 2147483648
    %v1125 = vor.u32 1.1754944e-38, %v1124
    %v1126 = vsel %vm1123, %v1125, %v1121
    %v1127 = vmul.f32 1.0, %v1126
    %v1128 = vrcp.pop %v1112
    %v1129 = vmul.f32 %v1112, %v1128
    %v1130 = vsub.f32 1.0, %v1129
    %v1131 = vmul.f32 %v1128, %v1130
    %v1132 = vadd.f32 %v1128, %v1131
    %vm1133 = vweird.f32 %v1112
    %vm1134 = vweird.f32 %v1128
    %vm1135 = vmor %vm1133, %vm1134
    %v1136 = vsel %vm1135, %v1128, %v1132
    %v1137 = vand.u32 2147483647, %v1112
    %vm1138 = vcmp.eq.f32.partialorder %v1137, 8.507059e+37
    %v1139 = vand.u32 %v1112, 2147483648
    %v1140 = vor.u32 1.1754944e-38, %v1139
    %v1141 = vsel %vm1138, %v1140, %v1136
    %v1142 = vmul.f32 1.0, %v1141
    %v1143 = vmul.f32 %v1127, 2.0
    %v1144 = vsub.f32 %v1143, 1.0
    %v1145 = vmul.f32 %v1142, 2.0
    %v1146 = vsub.f32 %v1145, 1.0
    %v1147 = vmul.f32 %v1127, %v1028
    %1149 = vrot.lane.b32.xlu0 %v1144, 32
    %v1150 = vpop.permute.xlu0 %1149
    %v1152 = vmul.f32 %v1127, %v1150
    %1154 = vrot.lane.b32.xlu0 %v1152, 32
    %v1155 = vpop.permute.xlu0 %1154
    %v1157 = vadd.f32 %v1147, %v1155
    %v1158 = vmul.f32 %v1142, %v1039
    %1160 = vrot.lane.b32.xlu0 %v1146, 32
    %v1161 = vpop.permute.xlu0 %1160
    %v1163 = vmul.f32 %v1142, %v1161
    %1165 = vrot.lane.b32.xlu0 %v1163, 32
    %v1166 = vpop.permute.xlu0 %1165
    %v1168 = vadd.f32 %v1158, %v1166
    %1170 = vrot.lane.b32.xlu0 %v1127, 64
    %v1171 = vpop.permute.xlu0 %1170
    %1174 = vrot.lane.b32.xlu0 %v1142, 96
    %v1175 = vpop.permute.xlu0 %1174
    %v1177 = vsel %vm1048, %v1171, %v1175
    %1179 = vrot.lane.b32.xlu0 %v1157, 96
    %v1180 = vpop.permute.xlu0 %1179
    %v1182 = vsel %vm1048, %v1180, %v1168
    %v1183 = vtanh.pop %v1182
    %v1184 = vmul.f32 %v1177, %v1183
    %1185 = vst.msk [vmem:[#allocation2 + $0x8] sm:$0xff] %vm1048, %v1184
    %1186 = vst.msk [vmem:[#allocation2 + $0x38] sm:$0xff] %vm1058, %v1184
    %v1188 = vsel %vm931, %v1184, 0
    %1190 = vmatpush.msra.mxu0 0.0
    %1191 = vmatpush.msra.mxu0 0.0
    %1192 = vmatpush.msra.mxu0 0.0
    %1193 = vmatpush.msra.mxu0 0.0
    %1194 = vmatpush.msra.mxu0 0.0
    %1195 = vmatpush.msra.mxu0 0.0
    %1196 = vmatpush.msra.mxu0 0.0
    %1197 = vmatpush.msra.mxu0 0.0
    %1198 = vmatpush.msra.mxu0 %v929
    %1199 = vmatpush.msra.mxu0 %v927
    %1200 = vmatpush.msra.mxu0 %v925
    %1201 = vmatpush.msra.mxu0 %v923
    %1202 = vmatpush.msra.mxu0 %v921
    %1203 = vmatpush.msra.mxu0 %v919
    %1204 = vmatpush.msra.mxu0 %v917
    %1205 = vmatpush.msra.mxu0 %v915
    %1206 = vmatmul.f32.gmra.mxu0 %v1188
    %v1207 = vpop.f32.mrf.mxu0
    %v1208 = vadd.f32 0.0, %v1207
    %1209 = vdwg.mxu0
    %1210 = vmatpush.msra.mxu0 0.0
    %1211 = vmatpush.msra.mxu0 0.0
    %1212 = vmatpush.msra.mxu0 0.0
    %1213 = vmatpush.msra.mxu0 0.0
    %1214 = vmatpush.msra.mxu0 0.0
    %1215 = vmatpush.msra.mxu0 0.0
    %1216 = vmatpush.msra.mxu0 0.0
    %1217 = vmatpush.msra.mxu0 0.0
    %1218 = vmatpush.msra.mxu0 %v930
    %1219 = vmatpush.msra.mxu0 %v928
    %1220 = vmatpush.msra.mxu0 %v926
    %1221 = vmatpush.msra.mxu0 %v924
    %1222 = vmatpush.msra.mxu0 %v922
    %1223 = vmatpush.msra.mxu0 %v920
    %1224 = vmatpush.msra.mxu0 %v918
    %1225 = vmatpush.msra.mxu0 %v916
    %1226 = vmatmul.f32.gmra.mxu0 %v1188
    %v1227 = vpop.f32.mrf.mxu0
    %v1228 = vadd.f32 0.0, %v1227
    %1229 = vdwg.mxu0
    %v1230 = vadd.f32 %v901, %v1208
    %v1231 = vadd.f32 %v910, %v1228
    %v1232 = vxor.u32 %v1230, 2147483648
    %v1233 = vxor.u32 %v1231, 2147483648
    %v1234 = vmul.f32 %v1232, 1.442695
    %v1235 = vpow.pop %v1234
    %v1236 = vmul.f32 %v1233, 1.442695
    %v1237 = vpow.pop %v1236
    %v1238 = vadd.f32 %v1235, 1.0
    %v1239 = vadd.f32 %v1237, 1.0
    %v1240 = vrcp.pop %v1238
    %v1241 = vmul.f32 %v1238, %v1240
    %v1242 = vsub.f32 1.0, %v1241
    %v1243 = vmul.f32 %v1240, %v1242
    %v1244 = vadd.f32 %v1240, %v1243
    %vm1245 = vweird.f32 %v1238
    %vm1246 = vweird.f32 %v1240
    %vm1247 = vmor %vm1245, %vm1246
    %v1248 = vsel %vm1247, %v1240, %v1244
    %v1249 = vand.u32 2147483647, %v1238
    %vm1250 = vcmp.eq.f32.partialorder %v1249, 8.507059e+37
    %v1251 = vand.u32 %v1238, 2147483648
    %v1252 = vor.u32 1.1754944e-38, %v1251
    %v1253 = vsel %vm1250, %v1252, %v1248
    %v1254 = vmul.f32 1.0, %v1253
    %v1255 = vrcp.pop %v1239
    %v1256 = vmul.f32 %v1239, %v1255
    %v1257 = vsub.f32 1.0, %v1256
    %v1258 = vmul.f32 %v1255, %v1257
    %v1259 = vadd.f32 %v1255, %v1258
    %vm1260 = vweird.f32 %v1239
    %vm1261 = vweird.f32 %v1255
    %vm1262 = vmor %vm1260, %vm1261
    %v1263 = vsel %vm1262, %v1255, %v1259
    %v1264 = vand.u32 2147483647, %v1239
    %vm1265 = vcmp.eq.f32.partialorder %v1264, 8.507059e+37
    %v1266 = vand.u32 %v1239, 2147483648
    %v1267 = vor.u32 1.1754944e-38, %v1266
    %v1268 = vsel %vm1265, %v1267, %v1263
    %v1269 = vmul.f32 1.0, %v1268
    %v1270 = vmul.f32 %v1254, 2.0
    %v1271 = vsub.f32 %v1270, 1.0
    %v1272 = vmul.f32 %v1269, 2.0
    %v1273 = vsub.f32 %v1272, 1.0
    %v1274 = vmul.f32 %v1254, %v1157
    %1276 = vrot.lane.b32.xlu0 %v1271, 32
    %v1277 = vpop.permute.xlu0 %1276
    %v1279 = vmul.f32 %v1254, %v1277
    %1281 = vrot.lane.b32.xlu0 %v1279, 32
    %v1282 = vpop.permute.xlu0 %1281
    %v1284 = vadd.f32 %v1274, %v1282
    %v1285 = vmul.f32 %v1269, %v1168
    %1287 = vrot.lane.b32.xlu0 %v1273, 32
    %v1288 = vpop.permute.xlu0 %1287
    %v1290 = vmul.f32 %v1269, %v1288
    %1292 = vrot.lane.b32.xlu0 %v1290, 32
    %v1293 = vpop.permute.xlu0 %1292
    %v1295 = vadd.f32 %v1285, %v1293
    %1297 = vrot.lane.b32.xlu0 %v1254, 64
    %v1298 = vpop.permute.xlu0 %1297
    %1301 = vrot.lane.b32.xlu0 %v1269, 96
    %v1302 = vpop.permute.xlu0 %1301
    %v1304 = vsel %vm1048, %v1298, %v1302
    %1306 = vrot.lane.b32.xlu0 %v1284, 96
    %v1307 = vpop.permute.xlu0 %1306
    %v1309 = vsel %vm1048, %v1307, %v1295
    %v1310 = vtanh.pop %v1309
    %v1311 = vmul.f32 %v1304, %v1310
    %1312 = vst.msk [vmem:[#allocation2 + $0x10] sm:$0xff] %vm1048, %v1311
    %1313 = vst.msk [vmem:[#allocation2 + $0x30] sm:$0xff] %vm1058, %v1311
    %v1315 = vsel %vm931, %v1311, 0
    %1317 = vmatpush.msra.mxu0 0.0
    %1318 = vmatpush.msra.mxu0 0.0
    %1319 = vmatpush.msra.mxu0 0.0
    %1320 = vmatpush.msra.mxu0 0.0
    %1321 = vmatpush.msra.mxu0 0.0
    %1322 = vmatpush.msra.mxu0 0.0
    %1323 = vmatpush.msra.mxu0 0.0
    %1324 = vmatpush.msra.mxu0 0.0
    %1325 = vmatpush.msra.mxu0 %v929
    %1326 = vmatpush.msra.mxu0 %v927
    %1327 = vmatpush.msra.mxu0 %v925
    %1328 = vmatpush.msra.mxu0 %v923
    %1329 = vmatpush.msra.mxu0 %v921
    %1330 = vmatpush.msra.mxu0 %v919
    %1331 = vmatpush.msra.mxu0 %v917
    %1332 = vmatpush.msra.mxu0 %v915
    %1333 = vmatmul.f32.gmra.mxu0 %v1315
    %v1334 = vpop.f32.mrf.mxu0
    %v1335 = vadd.f32 0.0, %v1334
    %1336 = vdwg.mxu0
    %1337 = vmatpush.msra.mxu0 0.0
    %1338 = vmatpush.msra.mxu0 0.0
    %1339 = vmatpush.msra.mxu0 0.0
    %1340 = vmatpush.msra.mxu0 0.0
    %1341 = vmatpush.msra.mxu0 0.0
    %1342 = vmatpush.msra.mxu0 0.0
    %1343 = vmatpush.msra.mxu0 0.0
    %1344 = vmatpush.msra.mxu0 0.0
    %1345 = vmatpush.msra.mxu0 %v930
    %1346 = vmatpush.msra.mxu0 %v928
    %1347 = vmatpush.msra.mxu0 %v926
    %1348 = vmatpush.msra.mxu0 %v924
    %1349 = vmatpush.msra.mxu0 %v922
    %1350 = vmatpush.msra.mxu0 %v920
    %1351 = vmatpush.msra.mxu0 %v918
    %1352 = vmatpush.msra.mxu0 %v916
    %1353 = vmatmul.f32.gmra.mxu0 %v1315
    %v1354 = vpop.f32.mrf.mxu0
    %v1355 = vadd.f32 0.0, %v1354
    %1356 = vdwg.mxu0
    %v1357 = vadd.f32 %v903, %v1335
    %v1358 = vadd.f32 %v908, %v1355
    %v1359 = vxor.u32 %v1357, 2147483648
    %v1360 = vxor.u32 %v1358, 2147483648
    %v1361 = vmul.f32 %v1359, 1.442695
    %v1362 = vpow.pop %v1361
    %v1363 = vmul.f32 %v1360, 1.442695
    %v1364 = vpow.pop %v1363
    %v1365 = vadd.f32 %v1362, 1.0
    %v1366 = vadd.f32 %v1364, 1.0
    %v1367 = vrcp.pop %v1365
    %v1368 = vmul.f32 %v1365, %v1367
    %v1369 = vsub.f32 1.0, %v1368
    %v1370 = vmul.f32 %v1367, %v1369
    %v1371 = vadd.f32 %v1367, %v1370
    %vm1372 = vweird.f32 %v1365
    %vm1373 = vweird.f32 %v1367
    %vm1374 = vmor %vm1372, %vm1373
    %v1375 = vsel %vm1374, %v1367, %v1371
    %v1376 = vand.u32 2147483647, %v1365
    %vm1377 = vcmp.eq.f32.partialorder %v1376, 8.507059e+37
    %v1378 = vand.u32 %v1365, 2147483648
    %v1379 = vor.u32 1.1754944e-38, %v1378
    %v1380 = vsel %vm1377, %v1379, %v1375
    %v1381 = vmul.f32 1.0, %v1380
    %v1382 = vrcp.pop %v1366
    %v1383 = vmul.f32 %v1366, %v1382
    %v1384 = vsub.f32 1.0, %v1383
    %v1385 = vmul.f32 %v1382, %v1384
    %v1386 = vadd.f32 %v1382, %v1385
    %vm1387 = vweird.f32 %v1366
    %vm1388 = vweird.f32 %v1382
    %vm1389 = vmor %vm1387, %vm1388
    %v1390 = vsel %vm1389, %v1382, %v1386
    %v1391 = vand.u32 2147483647, %v1366
    %vm1392 = vcmp.eq.f32.partialorder %v1391, 8.507059e+37
    %v1393 = vand.u32 %v1366, 2147483648
    %v1394 = vor.u32 1.1754944e-38, %v1393
    %v1395 = vsel %vm1392, %v1394, %v1390
    %v1396 = vmul.f32 1.0, %v1395
    %v1397 = vmul.f32 %v1381, 2.0
    %v1398 = vsub.f32 %v1397, 1.0
    %v1399 = vmul.f32 %v1396, 2.0
    %v1400 = vsub.f32 %v1399, 1.0
    %v1401 = vmul.f32 %v1381, %v1284
    %1403 = vrot.lane.b32.xlu0 %v1398, 32
    %v1404 = vpop.permute.xlu0 %1403
    %v1406 = vmul.f32 %v1381, %v1404
    %1408 = vrot.lane.b32.xlu0 %v1406, 32
    %v1409 = vpop.permute.xlu0 %1408
    %v1411 = vadd.f32 %v1401, %v1409
    %v1412 = vmul.f32 %v1396, %v1295
    %1414 = vrot.lane.b32.xlu0 %v1400, 32
    %v1415 = vpop.permute.xlu0 %1414
    %v1417 = vmul.f32 %v1396, %v1415
    %1419 = vrot.lane.b32.xlu0 %v1417, 32
    %v1420 = vpop.permute.xlu0 %1419
    %v1422 = vadd.f32 %v1412, %v1420
    %1424 = vrot.lane.b32.xlu0 %v1381, 64
    %v1425 = vpop.permute.xlu0 %1424
    %1428 = vrot.lane.b32.xlu0 %v1396, 96
    %v1429 = vpop.permute.xlu0 %1428
    %v1431 = vsel %vm1048, %v1425, %v1429
    %1433 = vrot.lane.b32.xlu0 %v1411, 96
    %v1434 = vpop.permute.xlu0 %1433
    %v1436 = vsel %vm1048, %v1434, %v1422
    %v1437 = vtanh.pop %v1436
    %v1438 = vmul.f32 %v1431, %v1437
    %1439 = vst.msk [vmem:[#allocation2 + $0x18] sm:$0xff] %vm1048, %v1438
    %1440 = vst.msk [vmem:[#allocation2 + $0x28] sm:$0xff] %vm1058, %v1438
    %v1442 = vsel %vm931, %v1438, 0
    %1444 = vmatpush.msra.mxu0 0.0
    %1445 = vmatpush.msra.mxu0 0.0
    %1446 = vmatpush.msra.mxu0 0.0
    %1447 = vmatpush.msra.mxu0 0.0
    %1448 = vmatpush.msra.mxu0 0.0
    %1449 = vmatpush.msra.mxu0 0.0
    %1450 = vmatpush.msra.mxu0 0.0
    %1451 = vmatpush.msra.mxu0 0.0
    %1452 = vmatpush.msra.mxu0 %v929
    %1453 = vmatpush.msra.mxu0 %v927
    %1454 = vmatpush.msra.mxu0 %v925
    %1455 = vmatpush.msra.mxu0 %v923
    %1456 = vmatpush.msra.mxu0 %v921
    %1457 = vmatpush.msra.mxu0 %v919
    %1458 = vmatpush.msra.mxu0 %v917
    %1459 = vmatpush.msra.mxu0 %v915
    %1460 = vmatmul.f32.gmra.mxu0 %v1442
    %v1461 = vpop.f32.mrf.mxu0
    %v1462 = vadd.f32 0.0, %v1461
    %1463 = vdwg.mxu0
    %1464 = vmatpush.msra.mxu0 0.0
    %1465 = vmatpush.msra.mxu0 0.0
    %1466 = vmatpush.msra.mxu0 0.0
    %1467 = vmatpush.msra.mxu0 0.0
    %1468 = vmatpush.msra.mxu0 0.0
    %1469 = vmatpush.msra.mxu0 0.0
    %1470 = vmatpush.msra.mxu0 0.0
    %1471 = vmatpush.msra.mxu0 0.0
    %1472 = vmatpush.msra.mxu0 %v930
    %1473 = vmatpush.msra.mxu0 %v928
    %1474 = vmatpush.msra.mxu0 %v926
    %1475 = vmatpush.msra.mxu0 %v924
    %1476 = vmatpush.msra.mxu0 %v922
    %1477 = vmatpush.msra.mxu0 %v920
    %1478 = vmatpush.msra.mxu0 %v918
    %1479 = vmatpush.msra.mxu0 %v916
    %1480 = vmatmul.f32.gmra.mxu0 %v1442
    %v1481 = vpop.f32.mrf.mxu0
    %v1482 = vadd.f32 0.0, %v1481
    %1483 = vdwg.mxu0
    %v1484 = vadd.f32 %v905, %v1462
    %v1485 = vadd.f32 %v906, %v1482
    %v1486 = vxor.u32 %v1484, 2147483648
    %v1487 = vxor.u32 %v1485, 2147483648
    %v1488 = vmul.f32 %v1486, 1.442695
    %v1489 = vpow.pop %v1488
    %v1490 = vmul.f32 %v1487, 1.442695
    %v1491 = vpow.pop %v1490
    %v1492 = vadd.f32 %v1489, 1.0
    %v1493 = vadd.f32 %v1491, 1.0
    %v1494 = vrcp.pop %v1492
    %v1495 = vmul.f32 %v1492, %v1494
    %v1496 = vsub.f32 1.0, %v1495
    %v1497 = vmul.f32 %v1494, %v1496
    %v1498 = vadd.f32 %v1494, %v1497
    %vm1499 = vweird.f32 %v1492
    %vm1500 = vweird.f32 %v1494
    %vm1501 = vmor %vm1499, %vm1500
    %v1502 = vsel %vm1501, %v1494, %v1498
    %v1503 = vand.u32 2147483647, %v1492
    %vm1504 = vcmp.eq.f32.partialorder %v1503, 8.507059e+37
    %v1505 = vand.u32 %v1492, 2147483648
    %v1506 = vor.u32 1.1754944e-38, %v1505
    %v1507 = vsel %vm1504, %v1506, %v1502
    %v1508 = vmul.f32 1.0, %v1507
    %v1509 = vrcp.pop %v1493
    %v1510 = vmul.f32 %v1493, %v1509
    %v1511 = vsub.f32 1.0, %v1510
    %v1512 = vmul.f32 %v1509, %v1511
    %v1513 = vadd.f32 %v1509, %v1512
    %vm1514 = vweird.f32 %v1493
    %vm1515 = vweird.f32 %v1509
    %vm1516 = vmor %vm1514, %vm1515
    %v1517 = vsel %vm1516, %v1509, %v1513
    %v1518 = vand.u32 2147483647, %v1493
    %vm1519 = vcmp.eq.f32.partialorder %v1518, 8.507059e+37
    %v1520 = vand.u32 %v1493, 2147483648
    %v1521 = vor.u32 1.1754944e-38, %v1520
    %v1522 = vsel %vm1519, %v1521, %v1517
    %v1523 = vmul.f32 1.0, %v1522
    %v1524 = vmul.f32 %v1508, 2.0
    %v1525 = vsub.f32 %v1524, 1.0
    %v1526 = vmul.f32 %v1523, 2.0
    %v1527 = vsub.f32 %v1526, 1.0
    %v1528 = vmul.f32 %v1508, %v1411
    %1530 = vrot.lane.b32.xlu0 %v1525, 32
    %v1531 = vpop.permute.xlu0 %1530
    %v1533 = vmul.f32 %v1508, %v1531
    %1535 = vrot.lane.b32.xlu0 %v1533, 32
    %v1536 = vpop.permute.xlu0 %1535
    %v1538 = vadd.f32 %v1528, %v1536
    %v1539 = vmul.f32 %v1523, %v1422
    %1541 = vrot.lane.b32.xlu0 %v1527, 32
    %v1542 = vpop.permute.xlu0 %1541
    %v1544 = vmul.f32 %v1523, %v1542
    %1546 = vrot.lane.b32.xlu0 %v1544, 32
    %v1547 = vpop.permute.xlu0 %1546
    %v1549 = vadd.f32 %v1539, %v1547
    %1551 = vrot.lane.b32.xlu0 %v1508, 64
    %v1552 = vpop.permute.xlu0 %1551
    %1555 = vrot.lane.b32.xlu0 %v1523, 96
    %v1556 = vpop.permute.xlu0 %1555
    %v1558 = vsel %vm1048, %v1552, %v1556
    %1560 = vrot.lane.b32.xlu0 %v1538, 96
    %v1561 = vpop.permute.xlu0 %1560
    %v1563 = vsel %vm1048, %v1561, %v1549
    %v1564 = vtanh.pop %v1563
    %v1565 = vmul.f32 %v1558, %v1564
    %1566 = vst.msk [vmem:[#allocation2 + $0x20] sm:$0xff] %vm1048, %v1565
    %1567 = vst.msk [vmem:[#allocation2 + $0x20] sm:$0xff] %vm1058, %v1565
    %v1569 = vsel %vm931, %v1565, 0
    %1571 = vmatpush.msra.mxu0 0.0
    %1572 = vmatpush.msra.mxu0 0.0
    %1573 = vmatpush.msra.mxu0 0.0
    %1574 = vmatpush.msra.mxu0 0.0
    %1575 = vmatpush.msra.mxu0 0.0
    %1576 = vmatpush.msra.mxu0 0.0
    %1577 = vmatpush.msra.mxu0 0.0
    %1578 = vmatpush.msra.mxu0 0.0
    %1579 = vmatpush.msra.mxu0 %v929
    %1580 = vmatpush.msra.mxu0 %v927
    %1581 = vmatpush.msra.mxu0 %v925
    %1582 = vmatpush.msra.mxu0 %v923
    %1583 = vmatpush.msra.mxu0 %v921
    %1584 = vmatpush.msra.mxu0 %v919
    %1585 = vmatpush.msra.mxu0 %v917
    %1586 = vmatpush.msra.mxu0 %v915
    %1587 = vmatmul.f32.gmra.mxu0 %v1569
    %v1588 = vpop.f32.mrf.mxu0
    %v1589 = vadd.f32 0.0, %v1588
    %1590 = vdwg.mxu0
    %1591 = vmatpush.msra.mxu0 0.0
    %1592 = vmatpush.msra.mxu0 0.0
    %1593 = vmatpush.msra.mxu0 0.0
    %1594 = vmatpush.msra.mxu0 0.0
    %1595 = vmatpush.msra.mxu0 0.0
    %1596 = vmatpush.msra.mxu0 0.0
    %1597 = vmatpush.msra.mxu0 0.0
    %1598 = vmatpush.msra.mxu0 0.0
    %1599 = vmatpush.msra.mxu0 %v930
    %1600 = vmatpush.msra.mxu0 %v928
    %1601 = vmatpush.msra.mxu0 %v926
    %1602 = vmatpush.msra.mxu0 %v924
    %1603 = vmatpush.msra.mxu0 %v922
    %1604 = vmatpush.msra.mxu0 %v920
    %1605 = vmatpush.msra.mxu0 %v918
    %1606 = vmatpush.msra.mxu0 %v916
    %1607 = vmatmul.f32.gmra.mxu0 %v1569
    %v1608 = vpop.f32.mrf.mxu0
    %v1609 = vadd.f32 0.0, %v1608
    %1610 = vdwg.mxu0
    %v1611 = vadd.f32 %v907, %v1589
    %v1612 = vadd.f32 %v904, %v1609
    %v1613 = vxor.u32 %v1611, 2147483648
    %v1614 = vxor.u32 %v1612, 2147483648
    %v1615 = vmul.f32 %v1613, 1.442695
    %v1616 = vpow.pop %v1615
    %v1617 = vmul.f32 %v1614, 1.442695
    %v1618 = vpow.pop %v1617
    %v1619 = vadd.f32 %v1616, 1.0
    %v1620 = vadd.f32 %v1618, 1.0
    %v1621 = vrcp.pop %v1619
    %v1622 = vmul.f32 %v1619, %v1621
    %v1623 = vsub.f32 1.0, %v1622
    %v1624 = vmul.f32 %v1621, %v1623
    %v1625 = vadd.f32 %v1621, %v1624
    %vm1626 = vweird.f32 %v1619
    %vm1627 = vweird.f32 %v1621
    %vm1628 = vmor %vm1626, %vm1627
    %v1629 = vsel %vm1628, %v1621, %v1625
    %v1630 = vand.u32 2147483647, %v1619
    %vm1631 = vcmp.eq.f32.partialorder %v1630, 8.507059e+37
    %v1632 = vand.u32 %v1619, 2147483648
    %v1633 = vor.u32 1.1754944e-38, %v1632
    %v1634 = vsel %vm1631, %v1633, %v1629
    %v1635 = vmul.f32 1.0, %v1634
    %v1636 = vrcp.pop %v1620
    %v1637 = vmul.f32 %v1620, %v1636
    %v1638 = vsub.f32 1.0, %v1637
    %v1639 = vmul.f32 %v1636, %v1638
    %v1640 = vadd.f32 %v1636, %v1639
    %vm1641 = vweird.f32 %v1620
    %vm1642 = vweird.f32 %v1636
    %vm1643 = vmor %vm1641, %vm1642
    %v1644 = vsel %vm1643, %v1636, %v1640
    %v1645 = vand.u32 2147483647, %v1620
    %vm1646 = vcmp.eq.f32.partialorder %v1645, 8.507059e+37
    %v1647 = vand.u32 %v1620, 2147483648
    %v1648 = vor.u32 1.1754944e-38, %v1647
    %v1649 = vsel %vm1646, %v1648, %v1644
    %v1650 = vmul.f32 1.0, %v1649
    %v1651 = vmul.f32 %v1635, 2.0
    %v1652 = vsub.f32 %v1651, 1.0
    %v1653 = vmul.f32 %v1650, 2.0
    %v1654 = vsub.f32 %v1653, 1.0
    %v1655 = vmul.f32 %v1635, %v1538
    %1657 = vrot.lane.b32.xlu0 %v1652, 32
    %v1658 = vpop.permute.xlu0 %1657
    %v1660 = vmul.f32 %v1635, %v1658
    %1662 = vrot.lane.b32.xlu0 %v1660, 32
    %v1663 = vpop.permute.xlu0 %1662
    %v1665 = vadd.f32 %v1655, %v1663
    %v1666 = vmul.f32 %v1650, %v1549
    %1668 = vrot.lane.b32.xlu0 %v1654, 32
    %v1669 = vpop.permute.xlu0 %1668
    %v1671 = vmul.f32 %v1650, %v1669
    %1673 = vrot.lane.b32.xlu0 %v1671, 32
    %v1674 = vpop.permute.xlu0 %1673
    %v1676 = vadd.f32 %v1666, %v1674
    %1678 = vrot.lane.b32.xlu0 %v1635, 64
    %v1679 = vpop.permute.xlu0 %1678
    %1682 = vrot.lane.b32.xlu0 %v1650, 96
    %v1683 = vpop.permute.xlu0 %1682
    %v1685 = vsel %vm1048, %v1679, %v1683
    %1687 = vrot.lane.b32.xlu0 %v1665, 96
    %v1688 = vpop.permute.xlu0 %1687
    %v1690 = vsel %vm1048, %v1688, %v1676
    %v1691 = vtanh.pop %v1690
    %v1692 = vmul.f32 %v1685, %v1691
    %1693 = vst.msk [vmem:[#allocation2 + $0x28] sm:$0xff] %vm1048, %v1692
    %1694 = vst.msk [vmem:[#allocation2 + $0x18] sm:$0xff] %vm1058, %v1692
    %v1696 = vsel %vm931, %v1692, 0
    %1698 = vmatpush.msra.mxu0 0.0
    %1699 = vmatpush.msra.mxu0 0.0
    %1700 = vmatpush.msra.mxu0 0.0
    %1701 = vmatpush.msra.mxu0 0.0
    %1702 = vmatpush.msra.mxu0 0.0
    %1703 = vmatpush.msra.mxu0 0.0
    %1704 = vmatpush.msra.mxu0 0.0
    %1705 = vmatpush.msra.mxu0 0.0
    %1706 = vmatpush.msra.mxu0 %v929
    %1707 = vmatpush.msra.mxu0 %v927
    %1708 = vmatpush.msra.mxu0 %v925
    %1709 = vmatpush.msra.mxu0 %v923
    %1710 = vmatpush.msra.mxu0 %v921
    %1711 = vmatpush.msra.mxu0 %v919
    %1712 = vmatpush.msra.mxu0 %v917
    %1713 = vmatpush.msra.mxu0 %v915
    %1714 = vmatmul.f32.gmra.mxu0 %v1696
    %v1715 = vpop.f32.mrf.mxu0
    %v1716 = vadd.f32 0.0, %v1715
    %1717 = vdwg.mxu0
    %1718 = vmatpush.msra.mxu0 0.0
    %1719 = vmatpush.msra.mxu0 0.0
    %1720 = vmatpush.msra.mxu0 0.0
    %1721 = vmatpush.msra.mxu0 0.0
    %1722 = vmatpush.msra.mxu0 0.0
    %1723 = vmatpush.msra.mxu0 0.0
    %1724 = vmatpush.msra.mxu0 0.0
    %1725 = vmatpush.msra.mxu0 0.0
    %1726 = vmatpush.msra.mxu0 %v930
    %1727 = vmatpush.msra.mxu0 %v928
    %1728 = vmatpush.msra.mxu0 %v926
    %1729 = vmatpush.msra.mxu0 %v924
    %1730 = vmatpush.msra.mxu0 %v922
    %1731 = vmatpush.msra.mxu0 %v920
    %1732 = vmatpush.msra.mxu0 %v918
    %1733 = vmatpush.msra.mxu0 %v916
    %1734 = vmatmul.f32.gmra.mxu0 %v1696
    %v1735 = vpop.f32.mrf.mxu0
    %v1736 = vadd.f32 0.0, %v1735
    %1737 = vdwg.mxu0
    %v1738 = vadd.f32 %v909, %v1716
    %v1739 = vadd.f32 %v902, %v1736
    %v1740 = vxor.u32 %v1738, 2147483648
    %v1741 = vxor.u32 %v1739, 2147483648
    %v1742 = vmul.f32 %v1740, 1.442695
    %v1743 = vpow.pop %v1742
    %v1744 = vmul.f32 %v1741, 1.442695
    %v1745 = vpow.pop %v1744
    %v1746 = vadd.f32 %v1743, 1.0
    %v1747 = vadd.f32 %v1745, 1.0
    %v1748 = vrcp.pop %v1746
    %v1749 = vmul.f32 %v1746, %v1748
    %v1750 = vsub.f32 1.0, %v1749
    %v1751 = vmul.f32 %v1748, %v1750
    %v1752 = vadd.f32 %v1748, %v1751
    %vm1753 = vweird.f32 %v1746
    %vm1754 = vweird.f32 %v1748
    %vm1755 = vmor %vm1753, %vm1754
    %v1756 = vsel %vm1755, %v1748, %v1752
    %v1757 = vand.u32 2147483647, %v1746
    %vm1758 = vcmp.eq.f32.partialorder %v1757, 8.507059e+37
    %v1759 = vand.u32 %v1746, 2147483648
    %v1760 = vor.u32 1.1754944e-38, %v1759
    %v1761 = vsel %vm1758, %v1760, %v1756
    %v1762 = vmul.f32 1.0, %v1761
    %v1763 = vrcp.pop %v1747
    %v1764 = vmul.f32 %v1747, %v1763
    %v1765 = vsub.f32 1.0, %v1764
    %v1766 = vmul.f32 %v1763, %v1765
    %v1767 = vadd.f32 %v1763, %v1766
    %vm1768 = vweird.f32 %v1747
    %vm1769 = vweird.f32 %v1763
    %vm1770 = vmor %vm1768, %vm1769
    %v1771 = vsel %vm1770, %v1763, %v1767
    %v1772 = vand.u32 2147483647, %v1747
    %vm1773 = vcmp.eq.f32.partialorder %v1772, 8.507059e+37
    %v1774 = vand.u32 %v1747, 2147483648
    %v1775 = vor.u32 1.1754944e-38, %v1774
    %v1776 = vsel %vm1773, %v1775, %v1771
    %v1777 = vmul.f32 1.0, %v1776
    %v1778 = vmul.f32 %v1762, 2.0
    %v1779 = vsub.f32 %v1778, 1.0
    %v1780 = vmul.f32 %v1777, 2.0
    %v1781 = vsub.f32 %v1780, 1.0
    %v1782 = vmul.f32 %v1762, %v1665
    %1784 = vrot.lane.b32.xlu0 %v1779, 32
    %v1785 = vpop.permute.xlu0 %1784
    %v1787 = vmul.f32 %v1762, %v1785
    %1789 = vrot.lane.b32.xlu0 %v1787, 32
    %v1790 = vpop.permute.xlu0 %1789
    %v1792 = vadd.f32 %v1782, %v1790
    %v1793 = vmul.f32 %v1777, %v1676
    %1795 = vrot.lane.b32.xlu0 %v1781, 32
    %v1796 = vpop.permute.xlu0 %1795
    %v1798 = vmul.f32 %v1777, %v1796
    %1800 = vrot.lane.b32.xlu0 %v1798, 32
    %v1801 = vpop.permute.xlu0 %1800
    %v1803 = vadd.f32 %v1793, %v1801
    %1805 = vrot.lane.b32.xlu0 %v1762, 64
    %v1806 = vpop.permute.xlu0 %1805
    %1809 = vrot.lane.b32.xlu0 %v1777, 96
    %v1810 = vpop.permute.xlu0 %1809
    %v1812 = vsel %vm1048, %v1806, %v1810
    %1814 = vrot.lane.b32.xlu0 %v1792, 96
    %v1815 = vpop.permute.xlu0 %1814
    %v1817 = vsel %vm1048, %v1815, %v1803
    %v1818 = vtanh.pop %v1817
    %v1819 = vmul.f32 %v1812, %v1818
    %1820 = vst.msk [vmem:[#allocation2 + $0x30] sm:$0xff] %vm1048, %v1819
    %1821 = vst.msk [vmem:[#allocation2 + $0x10] sm:$0xff] %vm1058, %v1819
    %v1823 = vsel %vm931, %v1819, 0
    %1825 = vmatpush.msra.mxu0 0.0
    %1826 = vmatpush.msra.mxu0 0.0
    %1827 = vmatpush.msra.mxu0 0.0
    %1828 = vmatpush.msra.mxu0 0.0
    %1829 = vmatpush.msra.mxu0 0.0
    %1830 = vmatpush.msra.mxu0 0.0
    %1831 = vmatpush.msra.mxu0 0.0
    %1832 = vmatpush.msra.mxu0 0.0
    %1833 = vmatpush.msra.mxu0 %v929
    %1834 = vmatpush.msra.mxu0 %v927
    %1835 = vmatpush.msra.mxu0 %v925
    %1836 = vmatpush.msra.mxu0 %v923
    %1837 = vmatpush.msra.mxu0 %v921
    %1838 = vmatpush.msra.mxu0 %v919
    %1839 = vmatpush.msra.mxu0 %v917
    %1840 = vmatpush.msra.mxu0 %v915
    %1841 = vmatmul.f32.gmra.mxu0 %v1823
    %v1842 = vpop.f32.mrf.mxu0
    %v1843 = vadd.f32 0.0, %v1842
    %1844 = vdwg.mxu0
    %1845 = vmatpush.msra.mxu0 0.0
    %1846 = vmatpush.msra.mxu0 0.0
    %1847 = vmatpush.msra.mxu0 0.0
    %1848 = vmatpush.msra.mxu0 0.0
    %1849 = vmatpush.msra.mxu0 0.0
    %1850 = vmatpush.msra.mxu0 0.0
    %1851 = vmatpush.msra.mxu0 0.0
    %1852 = vmatpush.msra.mxu0 0.0
    %1853 = vmatpush.msra.mxu0 %v930
    %1854 = vmatpush.msra.mxu0 %v928
    %1855 = vmatpush.msra.mxu0 %v926
    %1856 = vmatpush.msra.mxu0 %v924
    %1857 = vmatpush.msra.mxu0 %v922
    %1858 = vmatpush.msra.mxu0 %v920
    %1859 = vmatpush.msra.mxu0 %v918
    %1860 = vmatpush.msra.mxu0 %v916
    %1861 = vmatmul.f32.gmra.mxu0 %v1823
    %v1862 = vpop.f32.mrf.mxu0
    %v1863 = vadd.f32 0.0, %v1862
    %1864 = vdwg.mxu0
    %v1865 = vadd.f32 %v911, %v1843
    %v1866 = vadd.f32 %v900, %v1863
    %v1867 = vxor.u32 %v1865, 2147483648
    %v1868 = vxor.u32 %v1866, 2147483648
    %v1869 = vmul.f32 %v1867, 1.442695
    %v1870 = vpow.pop %v1869
    %v1871 = vmul.f32 %v1868, 1.442695
    %v1872 = vpow.pop %v1871
    %v1873 = vadd.f32 %v1870, 1.0
    %v1874 = vadd.f32 %v1872, 1.0
    %v1875 = vrcp.pop %v1873
    %v1876 = vmul.f32 %v1873, %v1875
    %v1877 = vsub.f32 1.0, %v1876
    %v1878 = vmul.f32 %v1875, %v1877
    %v1879 = vadd.f32 %v1875, %v1878
    %vm1880 = vweird.f32 %v1873
    %vm1881 = vweird.f32 %v1875
    %vm1882 = vmor %vm1880, %vm1881
    %v1883 = vsel %vm1882, %v1875, %v1879
    %v1884 = vand.u32 2147483647, %v1873
    %vm1885 = vcmp.eq.f32.partialorder %v1884, 8.507059e+37
    %v1886 = vand.u32 %v1873, 2147483648
    %v1887 = vor.u32 1.1754944e-38, %v1886
    %v1888 = vsel %vm1885, %v1887, %v1883
    %v1889 = vmul.f32 1.0, %v1888
    %v1890 = vrcp.pop %v1874
    %v1891 = vmul.f32 %v1874, %v1890
    %v1892 = vsub.f32 1.0, %v1891
    %v1893 = vmul.f32 %v1890, %v1892
    %v1894 = vadd.f32 %v1890, %v1893
    %vm1895 = vweird.f32 %v1874
    %vm1896 = vweird.f32 %v1890
    %vm1897 = vmor %vm1895, %vm1896
    %v1898 = vsel %vm1897, %v1890, %v1894
    %v1899 = vand.u32 2147483647, %v1874
    %vm1900 = vcmp.eq.f32.partialorder %v1899, 8.507059e+37
    %v1901 = vand.u32 %v1874, 2147483648
    %v1902 = vor.u32 1.1754944e-38, %v1901
    %v1903 = vsel %vm1900, %v1902, %v1898
    %v1904 = vmul.f32 1.0, %v1903
    %v1905 = vmul.f32 %v1889, 2.0
    %v1906 = vsub.f32 %v1905, 1.0
    %v1907 = vmul.f32 %v1904, 2.0
    %v1908 = vsub.f32 %v1907, 1.0
    %v1909 = vmul.f32 %v1889, %v1792
    %1911 = vrot.lane.b32.xlu0 %v1906, 32
    %v1912 = vpop.permute.xlu0 %1911
    %v1914 = vmul.f32 %v1889, %v1912
    %1916 = vrot.lane.b32.xlu0 %v1914, 32
    %v1917 = vpop.permute.xlu0 %1916
    %v1919 = vadd.f32 %v1909, %v1917
    %v1920 = vmul.f32 %v1904, %v1803
    %1922 = vrot.lane.b32.xlu0 %v1908, 32
    %v1923 = vpop.permute.xlu0 %1922
    %v1925 = vmul.f32 %v1904, %v1923
    %1927 = vrot.lane.b32.xlu0 %v1925, 32
    %v1928 = vpop.permute.xlu0 %1927
    %v1930 = vadd.f32 %v1920, %v1928
    %1932 = vrot.lane.b32.xlu0 %v1889, 64
    %v1933 = vpop.permute.xlu0 %1932
    %1936 = vrot.lane.b32.xlu0 %v1904, 96
    %v1937 = vpop.permute.xlu0 %1936
    %v1939 = vsel %vm1048, %v1933, %v1937
    %1941 = vrot.lane.b32.xlu0 %v1919, 96
    %v1942 = vpop.permute.xlu0 %1941
    %v1944 = vsel %vm1048, %v1942, %v1930
    %v1945 = vtanh.pop %v1944
    %v1946 = vmul.f32 %v1939, %v1945
    %1947 = vst.msk [vmem:[#allocation2 + $0x38] sm:$0xff] %vm1048, %v1946
    %1948 = vst.msk [vmem:[#allocation2 + $0x8] sm:$0xff] %vm1058, %v1946
    %v1950 = vsel %vm931, %v1946, 0
    %1952 = vmatpush.msra.mxu0 0.0
    %1953 = vmatpush.msra.mxu0 0.0
    %1954 = vmatpush.msra.mxu0 0.0
    %1955 = vmatpush.msra.mxu0 0.0
    %1956 = vmatpush.msra.mxu0 0.0
    %1957 = vmatpush.msra.mxu0 0.0
    %1958 = vmatpush.msra.mxu0 0.0
    %1959 = vmatpush.msra.mxu0 0.0
    %1960 = vmatpush.msra.mxu0 %v929
    %1961 = vmatpush.msra.mxu0 %v927
    %1962 = vmatpush.msra.mxu0 %v925
    %1963 = vmatpush.msra.mxu0 %v923
    %1964 = vmatpush.msra.mxu0 %v921
    %1965 = vmatpush.msra.mxu0 %v919
    %1966 = vmatpush.msra.mxu0 %v917
    %1967 = vmatpush.msra.mxu0 %v915
    %1968 = vmatmul.f32.gmra.mxu0 %v1950
    %v1969 = vpop.f32.mrf.mxu0
    %v1970 = vadd.f32 0.0, %v1969
    %1971 = vdwg.mxu0
    %1972 = vmatpush.msra.mxu0 0.0
    %1973 = vmatpush.msra.mxu0 0.0
    %1974 = vmatpush.msra.mxu0 0.0
    %1975 = vmatpush.msra.mxu0 0.0
    %1976 = vmatpush.msra.mxu0 0.0
    %1977 = vmatpush.msra.mxu0 0.0
    %1978 = vmatpush.msra.mxu0 0.0
    %1979 = vmatpush.msra.mxu0 0.0
    %1980 = vmatpush.msra.mxu0 %v930
    %1981 = vmatpush.msra.mxu0 %v928
    %1982 = vmatpush.msra.mxu0 %v926
    %1983 = vmatpush.msra.mxu0 %v924
    %1984 = vmatpush.msra.mxu0 %v922
    %1985 = vmatpush.msra.mxu0 %v920
    %1986 = vmatpush.msra.mxu0 %v918
    %1987 = vmatpush.msra.mxu0 %v916
    %1988 = vmatmul.f32.gmra.mxu0 %v1950
    %v1989 = vpop.f32.mrf.mxu0
    %v1990 = vadd.f32 0.0, %v1989
    %1991 = vdwg.mxu0
    %v1992 = vadd.f32 %v913, %v1970
    %v1993 = vadd.f32 %v898, %v1990
    %v1994 = vxor.u32 %v1992, 2147483648
    %v1995 = vxor.u32 %v1993, 2147483648
    %v1996 = vmul.f32 %v1994, 1.442695
    %v1997 = vpow.pop %v1996
    %v1998 = vmul.f32 %v1995, 1.442695
    %v1999 = vpow.pop %v1998
    %v2000 = vadd.f32 %v1997, 1.0
    %v2001 = vadd.f32 %v1999, 1.0
    %v2002 = vrcp.pop %v2000
    %v2003 = vmul.f32 %v2000, %v2002
    %v2004 = vsub.f32 1.0, %v2003
    %v2005 = vmul.f32 %v2002, %v2004
    %v2006 = vadd.f32 %v2002, %v2005
    %vm2007 = vweird.f32 %v2000
    %vm2008 = vweird.f32 %v2002
    %vm2009 = vmor %vm2007, %vm2008
    %v2010 = vsel %vm2009, %v2002, %v2006
    %v2011 = vand.u32 2147483647, %v2000
    %vm2012 = vcmp.eq.f32.partialorder %v2011, 8.507059e+37
    %v2013 = vand.u32 %v2000, 2147483648
    %v2014 = vor.u32 1.1754944e-38, %v2013
    %v2015 = vsel %vm2012, %v2014, %v2010
    %v2016 = vmul.f32 1.0, %v2015
    %v2017 = vrcp.pop %v2001
    %v2018 = vmul.f32 %v2001, %v2017
    %v2019 = vsub.f32 1.0, %v2018
    %v2020 = vmul.f32 %v2017, %v2019
    %v2021 = vadd.f32 %v2017, %v2020
    %vm2022 = vweird.f32 %v2001
    %vm2023 = vweird.f32 %v2017
    %vm2024 = vmor %vm2022, %vm2023
    %v2025 = vsel %vm2024, %v2017, %v2021
    %v2026 = vand.u32 2147483647, %v2001
    %vm2027 = vcmp.eq.f32.partialorder %v2026, 8.507059e+37
    %v2028 = vand.u32 %v2001, 2147483648
    %v2029 = vor.u32 1.1754944e-38, %v2028
    %v2030 = vsel %vm2027, %v2029, %v2025
    %v2031 = vmul.f32 1.0, %v2030
    %v2032 = vmul.f32 %v2016, 2.0
    %v2033 = vsub.f32 %v2032, 1.0
    %v2034 = vmul.f32 %v2031, 2.0
    %v2035 = vsub.f32 %v2034, 1.0
    %v2036 = vmul.f32 %v2016, %v1919
    %2038 = vrot.lane.b32.xlu0 %v2033, 32
    %v2039 = vpop.permute.xlu0 %2038
    %v2041 = vmul.f32 %v2016, %v2039
    %2043 = vrot.lane.b32.xlu0 %v2041, 32
    %v2044 = vpop.permute.xlu0 %2043
    %v2046 = vadd.f32 %v2036, %v2044
    %v2047 = vmul.f32 %v2031, %v1930
    %2049 = vrot.lane.b32.xlu0 %v2035, 32
    %v2050 = vpop.permute.xlu0 %2049
    %v2052 = vmul.f32 %v2031, %v2050
    %2054 = vrot.lane.b32.xlu0 %v2052, 32
    %v2055 = vpop.permute.xlu0 %2054
    %v2057 = vadd.f32 %v2047, %v2055
    %2059 = vrot.lane.b32.xlu0 %v2016, 64
    %v2060 = vpop.permute.xlu0 %2059
    %2063 = vrot.lane.b32.xlu0 %v2031, 96
    %v2064 = vpop.permute.xlu0 %2063
    %v2066 = vsel %vm1048, %v2060, %v2064
    %2068 = vrot.lane.b32.xlu0 %v2046, 96
    %v2069 = vpop.permute.xlu0 %2068
    %v2071 = vsel %vm1048, %v2069, %v2057
    %v2072 = vtanh.pop %v2071
    %v2073 = vmul.f32 %v2066, %v2072
    %2074 = vst.msk [vmem:[#allocation2 + $0x40] sm:$0xff] %vm1048, %v2073
    %2075 = vst.msk [vmem:[#allocation2] sm:$0xff] %vm1058, %v2073
    %v2076 = vld [vmem:[#allocation2] sm:$0xff]
    %v2077 = vld [vmem:[#allocation2 + $0x8] sm:$0xff]
    %v2078 = vld [vmem:[#allocation2 + $0x10] sm:$0xff]
    %v2079 = vld [vmem:[#allocation2 + $0x18] sm:$0xff]
    %v2080 = vld [vmem:[#allocation2 + $0x20] sm:$0xff]
    %v2081 = vld [vmem:[#allocation2 + $0x28] sm:$0xff]
    %v2082 = vld [vmem:[#allocation2 + $0x30] sm:$0xff]
    %v2083 = vld [vmem:[#allocation2 + $0x38] sm:$0xff]
    %v2084 = vld [vmem:[#allocation2 + $0x40] sm:$0xff]
    %v2085 = vpack.c.bf16 %v2077, %v2076
    %v2086 = vpack.c.bf16 %v2079, %v2078
    %v2087 = vpack.c.bf16 %v2081, %v2080
    %v2088 = vpack.c.bf16 %v2083, %v2082
    %v2089 = vpack.c.bf16 %v2084, %v2084
    %v2090 = vld [vmem:[#allocation7 + $0x170] sm:$0xff]
    %v2091 = vld [vmem:[#allocation7 + $0x178] sm:$0xff]
    %v2092 = vld [vmem:[#allocation7 + $0x180] sm:$0xff]
    %v2093 = vld [vmem:[#allocation7 + $0x188] sm:$0xff]
    %v2094 = vld [vmem:[#allocation7 + $0x190] sm:$0xff]
    %v2095 = vld [vmem:[#allocation7 + $0x198] sm:$0xff]
    %v2096 = vld [vmem:[#allocation7 + $0x1a0] sm:$0xff]
    %v2097 = vld [vmem:[#allocation7 + $0x1a8] sm:$0xff]
    %v2098 = vld [vmem:[#allocation7 + $0x1b0] sm:$0xff]
    %v2099 = vld [vmem:[#allocation7 + $0x1b8] sm:$0xff]
    %v2100 = vld [vmem:[#allocation7 + $0x1c0] sm:$0xff]
    %v2101 = vld [vmem:[#allocation7 + $0x1c8] sm:$0xff]
    %v2102 = vld [vmem:[#allocation7 + $0x1d0] sm:$0xff]
    %v2103 = vld [vmem:[#allocation7 + $0x1d8] sm:$0xff]
    %v2104 = vld [vmem:[#allocation7 + $0x1e0] sm:$0xff]
    %v2105 = vld [vmem:[#allocation7 + $0x1e8] sm:$0xff]
    %v2106 = vpack.c.bf16 %v2092, %v2090
    %v2107 = vpack.c.bf16 %v2093, %v2091
    %v2108 = vpack.c.bf16 %v2096, %v2094
    %v2109 = vpack.c.bf16 %v2097, %v2095
    %v2110 = vpack.c.bf16 %v2100, %v2098
    %v2111 = vpack.c.bf16 %v2101, %v2099
    %v2112 = vpack.c.bf16 %v2104, %v2102
    %v2113 = vpack.c.bf16 %v2105, %v2103
    %s2114 = scalar_lea.vmem [#allocation9], 17
    %v2115 = vld [vmem:[%s2114] ss:$8 sm:$0x3]
    %v2117 = vperm.slane %v2115, 0
    %v2118 = vperm.slane %v2115, 1
    %v2122 = vsel %vm931, %v2085, 0
    %v2125 = vsel %vm931, %v2086, 0
    %v2128 = vsel %vm931, %v2087, 0
    %v2131 = vsel %vm931, %v2088, 0
    %v2134 = vsel %vm931, %v2089, 0
    %2136 = vmatpush.bf16.msra.mxu0 0
    %2137 = vmatpush.bf16.msra.mxu0 0
    %2138 = vmatpush.bf16.msra.mxu0 0
    %2139 = vmatpush.bf16.msra.mxu0 0
    %2140 = vmatpush.bf16.msra.mxu0 %v2112
    %2141 = vmatpush.bf16.msra.mxu0 %v2110
    %2142 = vmatpush.bf16.msra.mxu0 %v2108
    %2143 = vmatpush.bf16.msra.mxu0 %v2106
    %2144 = vmatmul.bf16.gmra.mxu0 %v2122
    %v2145 = vpop.f32.mrf.mxu0
    %v2146 = vadd.f32 %v2117, %v2145
    %v2147 = vpop.f32.mrf.mxu0
    %v2148 = vadd.f32 %v2117, %v2147
    %2149 = vmatmul.bf16.gmra.mxu0 %v2125
    %v2150 = vpop.f32.mrf.mxu0
    %v2151 = vadd.f32 %v2117, %v2150
    %v2152 = vpop.f32.mrf.mxu0
    %v2153 = vadd.f32 %v2117, %v2152
    %2154 = vmatmul.bf16.gmra.mxu0 %v2128
    %v2155 = vpop.f32.mrf.mxu0
    %v2156 = vadd.f32 %v2117, %v2155
    %v2157 = vpop.f32.mrf.mxu0
    %v2158 = vadd.f32 %v2117, %v2157
    %2159 = vmatmul.bf16.gmra.mxu0 %v2131
    %v2160 = vpop.f32.mrf.mxu0
    %v2161 = vadd.f32 %v2117, %v2160
    %v2162 = vpop.f32.mrf.mxu0
    %v2163 = vadd.f32 %v2117, %v2162
    %2164 = vmatmul.bf16.gmra.mxu0 %v2134
    %v2165 = vpop.f32.mrf.mxu0
    %v2166 = vadd.f32 %v2117, %v2165
    %v2167 = vpop.f32.mrf.mxu0
    %2168 = vdwg.mxu0
    %2169 = vmatpush.bf16.msra.mxu0 0
    %2170 = vmatpush.bf16.msra.mxu0 0
    %2171 = vmatpush.bf16.msra.mxu0 0
    %2172 = vmatpush.bf16.msra.mxu0 0
    %2173 = vmatpush.bf16.msra.mxu0 %v2113
    %2174 = vmatpush.bf16.msra.mxu0 %v2111
    %2175 = vmatpush.bf16.msra.mxu0 %v2109
    %2176 = vmatpush.bf16.msra.mxu0 %v2107
    %2177 = vmatmul.bf16.gmra.mxu0 %v2122
    %v2178 = vpop.f32.mrf.mxu0
    %v2179 = vadd.f32 %v2118, %v2178
    %v2180 = vpop.f32.mrf.mxu0
    %v2181 = vadd.f32 %v2118, %v2180
    %2182 = vmatmul.bf16.gmra.mxu0 %v2125
    %v2183 = vpop.f32.mrf.mxu0
    %v2184 = vadd.f32 %v2118, %v2183
    %v2185 = vpop.f32.mrf.mxu0
    %v2186 = vadd.f32 %v2118, %v2185
    %2187 = vmatmul.bf16.gmra.mxu0 %v2128
    %v2188 = vpop.f32.mrf.mxu0
    %v2189 = vadd.f32 %v2118, %v2188
    %v2190 = vpop.f32.mrf.mxu0
    %v2191 = vadd.f32 %v2118, %v2190
    %2192 = vmatmul.bf16.gmra.mxu0 %v2131
    %v2193 = vpop.f32.mrf.mxu0
    %v2194 = vadd.f32 %v2118, %v2193
    %v2195 = vpop.f32.mrf.mxu0
    %v2196 = vadd.f32 %v2118, %v2195
    %2197 = vmatmul.bf16.gmra.mxu0 %v2134
    %v2198 = vpop.f32.mrf.mxu0
    %v2199 = vadd.f32 %v2118, %v2198
    %v2200 = vpop.f32.mrf.mxu0
    %2201 = vdwg.mxu0
    %v2202 = vld [vmem:[#allocation7 + $0x1f0] sm:$0xff]
    %v2203 = vld [vmem:[#allocation7 + $0x1f8] sm:$0xff]
    %v2204 = vld [vmem:[#allocation7 + $0x200] sm:$0xff]
    %v2205 = vld [vmem:[#allocation7 + $0x208] sm:$0xff]
    %v2206 = vld [vmem:[#allocation7 + $0x210] sm:$0xff]
    %v2207 = vld [vmem:[#allocation7 + $0x218] sm:$0xff]
    %v2208 = vld [vmem:[#allocation7 + $0x220] sm:$0xff]
    %v2209 = vld [vmem:[#allocation7 + $0x228] sm:$0xff]
    %v2210 = vld [vmem:[#allocation7 + $0x230] sm:$0xff]
    %v2211 = vld [vmem:[#allocation7 + $0x238] sm:$0xff]
    %v2212 = vld [vmem:[#allocation7 + $0x240] sm:$0xff]
    %v2213 = vld [vmem:[#allocation7 + $0x248] sm:$0xff]
    %v2214 = vld [vmem:[#allocation7 + $0x250] sm:$0xff]
    %v2215 = vld [vmem:[#allocation7 + $0x258] sm:$0xff]
    %v2216 = vld [vmem:[#allocation7 + $0x260] sm:$0xff]
    %v2217 = vld [vmem:[#allocation7 + $0x268] sm:$0xff]
    %2218 = vmatpush.msra.mxu0 0.0
    %2219 = vmatpush.msra.mxu0 0.0
    %2220 = vmatpush.msra.mxu0 0.0
    %2221 = vmatpush.msra.mxu0 0.0
    %2222 = vmatpush.msra.mxu0 0.0
    %2223 = vmatpush.msra.mxu0 0.0
    %2224 = vmatpush.msra.mxu0 0.0
    %2225 = vmatpush.msra.mxu0 0.0
    %2226 = vmatpush.msra.mxu0 %v2216
    %2227 = vmatpush.msra.mxu0 %v2214
    %2228 = vmatpush.msra.mxu0 %v2212
    %2229 = vmatpush.msra.mxu0 %v2210
    %2230 = vmatpush.msra.mxu0 %v2208
    %2231 = vmatpush.msra.mxu0 %v2206
    %2232 = vmatpush.msra.mxu0 %v2204
    %2233 = vmatpush.msra.mxu0 %v2202
    %2234 = vmatmul.f32.gmra.mxu0 %v932
    %v2235 = vpop.f32.mrf.mxu0
    %v2236 = vadd.f32 0.0, %v2235
    %2237 = vdwg.mxu0
    %2238 = vmatpush.msra.mxu0 0.0
    %2239 = vmatpush.msra.mxu0 0.0
    %2240 = vmatpush.msra.mxu0 0.0
    %2241 = vmatpush.msra.mxu0 0.0
    %2242 = vmatpush.msra.mxu0 0.0
    %2243 = vmatpush.msra.mxu0 0.0
    %2244 = vmatpush.msra.mxu0 0.0
    %2245 = vmatpush.msra.mxu0 0.0
    %2246 = vmatpush.msra.mxu0 %v2217
    %2247 = vmatpush.msra.mxu0 %v2215
    %2248 = vmatpush.msra.mxu0 %v2213
    %2249 = vmatpush.msra.mxu0 %v2211
    %2250 = vmatpush.msra.mxu0 %v2209
    %2251 = vmatpush.msra.mxu0 %v2207
    %2252 = vmatpush.msra.mxu0 %v2205
    %2253 = vmatpush.msra.mxu0 %v2203
    %2254 = vmatmul.f32.gmra.mxu0 %v932
    %v2255 = vpop.f32.mrf.mxu0
    %v2256 = vadd.f32 0.0, %v2255
    %2257 = vdwg.mxu0
    %v2258 = vadd.f32 %v2146, %v2236
    %v2259 = vadd.f32 %v2199, %v2256
    %v2260 = vxor.u32 %v2258, 2147483648
    %v2261 = vxor.u32 %v2259, 2147483648
    %v2262 = vmul.f32 %v2260, 1.442695
    %v2263 = vpow.pop %v2262
    %v2264 = vmul.f32 %v2261, 1.442695
    %v2265 = vpow.pop %v2264
    %v2266 = vadd.f32 %v2263, 1.0
    %v2267 = vadd.f32 %v2265, 1.0
    %v2268 = vrcp.pop %v2266
    %v2269 = vmul.f32 %v2266, %v2268
    %v2270 = vsub.f32 1.0, %v2269
    %v2271 = vmul.f32 %v2268, %v2270
    %v2272 = vadd.f32 %v2268, %v2271
    %vm2273 = vweird.f32 %v2266
    %vm2274 = vweird.f32 %v2268
    %vm2275 = vmor %vm2273, %vm2274
    %v2276 = vsel %vm2275, %v2268, %v2272
    %v2277 = vand.u32 2147483647, %v2266
    %vm2278 = vcmp.eq.f32.partialorder %v2277, 8.507059e+37
    %v2279 = vand.u32 %v2266, 2147483648
    %v2280 = vor.u32 1.1754944e-38, %v2279
    %v2281 = vsel %vm2278, %v2280, %v2276
    %v2282 = vmul.f32 1.0, %v2281
    %v2283 = vrcp.pop %v2267
    %v2284 = vmul.f32 %v2267, %v2283
    %v2285 = vsub.f32 1.0, %v2284
    %v2286 = vmul.f32 %v2283, %v2285
    %v2287 = vadd.f32 %v2283, %v2286
    %vm2288 = vweird.f32 %v2267
    %vm2289 = vweird.f32 %v2283
    %vm2290 = vmor %vm2288, %vm2289
    %v2291 = vsel %vm2290, %v2283, %v2287
    %v2292 = vand.u32 2147483647, %v2267
    %vm2293 = vcmp.eq.f32.partialorder %v2292, 8.507059e+37
    %v2294 = vand.u32 %v2267, 2147483648
    %v2295 = vor.u32 1.1754944e-38, %v2294
    %v2296 = vsel %vm2293, %v2295, %v2291
    %v2297 = vmul.f32 1.0, %v2296
    %v2298 = vmul.f32 %v2282, 2.0
    %v2299 = vsub.f32 %v2298, 1.0
    %v2300 = vmul.f32 %v2297, 2.0
    %v2301 = vsub.f32 %v2300, 1.0
    %v2302 = vmul.f32 %v2282, 0.0
    %2304 = vrot.lane.b32.xlu0 %v2299, 32
    %v2305 = vpop.permute.xlu0 %2304
    %v2307 = vmul.f32 %v2282, %v2305
    %2309 = vrot.lane.b32.xlu0 %v2307, 32
    %v2310 = vpop.permute.xlu0 %2309
    %v2312 = vadd.f32 %v2302, %v2310
    %v2313 = vmul.f32 %v2297, 0.0
    %2315 = vrot.lane.b32.xlu0 %v2301, 32
    %v2316 = vpop.permute.xlu0 %2315
    %v2318 = vmul.f32 %v2297, %v2316
    %2320 = vrot.lane.b32.xlu0 %v2318, 32
    %v2321 = vpop.permute.xlu0 %2320
    %v2323 = vadd.f32 %v2313, %v2321
    %2325 = vrot.lane.b32.xlu0 %v2282, 64
    %v2326 = vpop.permute.xlu0 %2325
    %2329 = vrot.lane.b32.xlu0 %v2297, 96
    %v2330 = vpop.permute.xlu0 %2329
    %v2332 = vsel %vm1048, %v2326, %v2330
    %2334 = vrot.lane.b32.xlu0 %v2312, 96
    %v2335 = vpop.permute.xlu0 %2334
    %v2337 = vsel %vm1048, %v2335, %v2323
    %v2338 = vtanh.pop %v2337
    %v2339 = vmul.f32 %v2332, %v2338
    %2340 = vst.msk [vmem:[#allocation3] sm:$0xff] %vm1048, %v2339
    %2341 = vst.msk [vmem:[#allocation3 + $0x40] sm:$0xff] %vm1058, %v2339
    %v2343 = vsel %vm931, %v2339, 0
    %2345 = vmatpush.msra.mxu0 0.0
    %2346 = vmatpush.msra.mxu0 0.0
    %2347 = vmatpush.msra.mxu0 0.0
    %2348 = vmatpush.msra.mxu0 0.0
    %2349 = vmatpush.msra.mxu0 0.0
    %2350 = vmatpush.msra.mxu0 0.0
    %2351 = vmatpush.msra.mxu0 0.0
    %2352 = vmatpush.msra.mxu0 0.0
    %2353 = vmatpush.msra.mxu0 %v2216
    %2354 = vmatpush.msra.mxu0 %v2214
    %2355 = vmatpush.msra.mxu0 %v2212
    %2356 = vmatpush.msra.mxu0 %v2210
    %2357 = vmatpush.msra.mxu0 %v2208
    %2358 = vmatpush.msra.mxu0 %v2206
    %2359 = vmatpush.msra.mxu0 %v2204
    %2360 = vmatpush.msra.mxu0 %v2202
    %2361 = vmatmul.f32.gmra.mxu0 %v2343
    %v2362 = vpop.f32.mrf.mxu0
    %v2363 = vadd.f32 0.0, %v2362
    %2364 = vdwg.mxu0
    %2365 = vmatpush.msra.mxu0 0.0
    %2366 = vmatpush.msra.mxu0 0.0
    %2367 = vmatpush.msra.mxu0 0.0
    %2368 = vmatpush.msra.mxu0 0.0
    %2369 = vmatpush.msra.mxu0 0.0
    %2370 = vmatpush.msra.mxu0 0.0
    %2371 = vmatpush.msra.mxu0 0.0
    %2372 = vmatpush.msra.mxu0 0.0
    %2373 = vmatpush.msra.mxu0 %v2217
    %2374 = vmatpush.msra.mxu0 %v2215
    %2375 = vmatpush.msra.mxu0 %v2213
    %2376 = vmatpush.msra.mxu0 %v2211
    %2377 = vmatpush.msra.mxu0 %v2209
    %2378 = vmatpush.msra.mxu0 %v2207
    %2379 = vmatpush.msra.mxu0 %v2205
    %2380 = vmatpush.msra.mxu0 %v2203
    %2381 = vmatmul.f32.gmra.mxu0 %v2343
    %v2382 = vpop.f32.mrf.mxu0
    %v2383 = vadd.f32 0.0, %v2382
    %2384 = vdwg.mxu0
    %v2385 = vadd.f32 %v2148, %v2363
    %v2386 = vadd.f32 %v2196, %v2383
    %v2387 = vxor.u32 %v2385, 2147483648
    %v2388 = vxor.u32 %v2386, 2147483648
    %v2389 = vmul.f32 %v2387, 1.442695
    %v2390 = vpow.pop %v2389
    %v2391 = vmul.f32 %v2388, 1.442695
    %v2392 = vpow.pop %v2391
    %v2393 = vadd.f32 %v2390, 1.0
    %v2394 = vadd.f32 %v2392, 1.0
    %v2395 = vrcp.pop %v2393
    %v2396 = vmul.f32 %v2393, %v2395
    %v2397 = vsub.f32 1.0, %v2396
    %v2398 = vmul.f32 %v2395, %v2397
    %v2399 = vadd.f32 %v2395, %v2398
    %vm2400 = vweird.f32 %v2393
    %vm2401 = vweird.f32 %v2395
    %vm2402 = vmor %vm2400, %vm2401
    %v2403 = vsel %vm2402, %v2395, %v2399
    %v2404 = vand.u32 2147483647, %v2393
    %vm2405 = vcmp.eq.f32.partialorder %v2404, 8.507059e+37
    %v2406 = vand.u32 %v2393, 2147483648
    %v2407 = vor.u32 1.1754944e-38, %v2406
    %v2408 = vsel %vm2405, %v2407, %v2403
    %v2409 = vmul.f32 1.0, %v2408
    %v2410 = vrcp.pop %v2394
    %v2411 = vmul.f32 %v2394, %v2410
    %v2412 = vsub.f32 1.0, %v2411
    %v2413 = vmul.f32 %v2410, %v2412
    %v2414 = vadd.f32 %v2410, %v2413
    %vm2415 = vweird.f32 %v2394
    %vm2416 = vweird.f32 %v2410
    %vm2417 = vmor %vm2415, %vm2416
    %v2418 = vsel %vm2417, %v2410, %v2414
    %v2419 = vand.u32 2147483647, %v2394
    %vm2420 = vcmp.eq.f32.partialorder %v2419, 8.507059e+37
    %v2421 = vand.u32 %v2394, 2147483648
    %v2422 = vor.u32 1.1754944e-38, %v2421
    %v2423 = vsel %vm2420, %v2422, %v2418
    %v2424 = vmul.f32 1.0, %v2423
    %v2425 = vmul.f32 %v2409, 2.0
    %v2426 = vsub.f32 %v2425, 1.0
    %v2427 = vmul.f32 %v2424, 2.0
    %v2428 = vsub.f32 %v2427, 1.0
    %v2429 = vmul.f32 %v2409, %v2312
    %2431 = vrot.lane.b32.xlu0 %v2426, 32
    %v2432 = vpop.permute.xlu0 %2431
    %v2434 = vmul.f32 %v2409, %v2432
    %2436 = vrot.lane.b32.xlu0 %v2434, 32
    %v2437 = vpop.permute.xlu0 %2436
    %v2439 = vadd.f32 %v2429, %v2437
    %v2440 = vmul.f32 %v2424, %v2323
    %2442 = vrot.lane.b32.xlu0 %v2428, 32
    %v2443 = vpop.permute.xlu0 %2442
    %v2445 = vmul.f32 %v2424, %v2443
    %2447 = vrot.lane.b32.xlu0 %v2445, 32
    %v2448 = vpop.permute.xlu0 %2447
    %v2450 = vadd.f32 %v2440, %v2448
    %2452 = vrot.lane.b32.xlu0 %v2409, 64
    %v2453 = vpop.permute.xlu0 %2452
    %2456 = vrot.lane.b32.xlu0 %v2424, 96
    %v2457 = vpop.permute.xlu0 %2456
    %v2459 = vsel %vm1048, %v2453, %v2457
    %2461 = vrot.lane.b32.xlu0 %v2439, 96
    %v2462 = vpop.permute.xlu0 %2461
    %v2464 = vsel %vm1048, %v2462, %v2450
    %v2465 = vtanh.pop %v2464
    %v2466 = vmul.f32 %v2459, %v2465
    %2467 = vst.msk [vmem:[#allocation3 + $0x8] sm:$0xff] %vm1048, %v2466
    %2468 = vst.msk [vmem:[#allocation3 + $0x38] sm:$0xff] %vm1058, %v2466
    %v2470 = vsel %vm931, %v2466, 0
    %2472 = vmatpush.msra.mxu0 0.0
    %2473 = vmatpush.msra.mxu0 0.0
    %2474 = vmatpush.msra.mxu0 0.0
    %2475 = vmatpush.msra.mxu0 0.0
    %2476 = vmatpush.msra.mxu0 0.0
    %2477 = vmatpush.msra.mxu0 0.0
    %2478 = vmatpush.msra.mxu0 0.0
    %2479 = vmatpush.msra.mxu0 0.0
    %2480 = vmatpush.msra.mxu0 %v2216
    %2481 = vmatpush.msra.mxu0 %v2214
    %2482 = vmatpush.msra.mxu0 %v2212
    %2483 = vmatpush.msra.mxu0 %v2210
    %2484 = vmatpush.msra.mxu0 %v2208
    %2485 = vmatpush.msra.mxu0 %v2206
    %2486 = vmatpush.msra.mxu0 %v2204
    %2487 = vmatpush.msra.mxu0 %v2202
    %2488 = vmatmul.f32.gmra.mxu0 %v2470
    %v2489 = vpop.f32.mrf.mxu0
    %v2490 = vadd.f32 0.0, %v2489
    %2491 = vdwg.mxu0
    %2492 = vmatpush.msra.mxu0 0.0
    %2493 = vmatpush.msra.mxu0 0.0
    %2494 = vmatpush.msra.mxu0 0.0
    %2495 = vmatpush.msra.mxu0 0.0
    %2496 = vmatpush.msra.mxu0 0.0
    %2497 = vmatpush.msra.mxu0 0.0
    %2498 = vmatpush.msra.mxu0 0.0
    %2499 = vmatpush.msra.mxu0 0.0
    %2500 = vmatpush.msra.mxu0 %v2217
    %2501 = vmatpush.msra.mxu0 %v2215
    %2502 = vmatpush.msra.mxu0 %v2213
    %2503 = vmatpush.msra.mxu0 %v2211
    %2504 = vmatpush.msra.mxu0 %v2209
    %2505 = vmatpush.msra.mxu0 %v2207
    %2506 = vmatpush.msra.mxu0 %v2205
    %2507 = vmatpush.msra.mxu0 %v2203
    %2508 = vmatmul.f32.gmra.mxu0 %v2470
    %v2509 = vpop.f32.mrf.mxu0
    %v2510 = vadd.f32 0.0, %v2509
    %2511 = vdwg.mxu0
    %v2512 = vadd.f32 %v2151, %v2490
    %v2513 = vadd.f32 %v2194, %v2510
    %v2514 = vxor.u32 %v2512, 2147483648
    %v2515 = vxor.u32 %v2513, 2147483648
    %v2516 = vmul.f32 %v2514, 1.442695
    %v2517 = vpow.pop %v2516
    %v2518 = vmul.f32 %v2515, 1.442695
    %v2519 = vpow.pop %v2518
    %v2520 = vadd.f32 %v2517, 1.0
    %v2521 = vadd.f32 %v2519, 1.0
    %v2522 = vrcp.pop %v2520
    %v2523 = vmul.f32 %v2520, %v2522
    %v2524 = vsub.f32 1.0, %v2523
    %v2525 = vmul.f32 %v2522, %v2524
    %v2526 = vadd.f32 %v2522, %v2525
    %vm2527 = vweird.f32 %v2520
    %vm2528 = vweird.f32 %v2522
    %vm2529 = vmor %vm2527, %vm2528
    %v2530 = vsel %vm2529, %v2522, %v2526
    %v2531 = vand.u32 2147483647, %v2520
    %vm2532 = vcmp.eq.f32.partialorder %v2531, 8.507059e+37
    %v2533 = vand.u32 %v2520, 2147483648
    %v2534 = vor.u32 1.1754944e-38, %v2533
    %v2535 = vsel %vm2532, %v2534, %v2530
    %v2536 = vmul.f32 1.0, %v2535
    %v2537 = vrcp.pop %v2521
    %v2538 = vmul.f32 %v2521, %v2537
    %v2539 = vsub.f32 1.0, %v2538
    %v2540 = vmul.f32 %v2537, %v2539
    %v2541 = vadd.f32 %v2537, %v2540
    %vm2542 = vweird.f32 %v2521
    %vm2543 = vweird.f32 %v2537
    %vm2544 = vmor %vm2542, %vm2543
    %v2545 = vsel %vm2544, %v2537, %v2541
    %v2546 = vand.u32 2147483647, %v2521
    %vm2547 = vcmp.eq.f32.partialorder %v2546, 8.507059e+37
    %v2548 = vand.u32 %v2521, 2147483648
    %v2549 = vor.u32 1.1754944e-38, %v2548
    %v2550 = vsel %vm2547, %v2549, %v2545
    %v2551 = vmul.f32 1.0, %v2550
    %v2552 = vmul.f32 %v2536, 2.0
    %v2553 = vsub.f32 %v2552, 1.0
    %v2554 = vmul.f32 %v2551, 2.0
    %v2555 = vsub.f32 %v2554, 1.0
    %v2556 = vmul.f32 %v2536, %v2439
    %2558 = vrot.lane.b32.xlu0 %v2553, 32
    %v2559 = vpop.permute.xlu0 %2558
    %v2561 = vmul.f32 %v2536, %v2559
    %2563 = vrot.lane.b32.xlu0 %v2561, 32
    %v2564 = vpop.permute.xlu0 %2563
    %v2566 = vadd.f32 %v2556, %v2564
    %v2567 = vmul.f32 %v2551, %v2450
    %2569 = vrot.lane.b32.xlu0 %v2555, 32
    %v2570 = vpop.permute.xlu0 %2569
    %v2572 = vmul.f32 %v2551, %v2570
    %2574 = vrot.lane.b32.xlu0 %v2572, 32
    %v2575 = vpop.permute.xlu0 %2574
    %v2577 = vadd.f32 %v2567, %v2575
    %2579 = vrot.lane.b32.xlu0 %v2536, 64
    %v2580 = vpop.permute.xlu0 %2579
    %2583 = vrot.lane.b32.xlu0 %v2551, 96
    %v2584 = vpop.permute.xlu0 %2583
    %v2586 = vsel %vm1048, %v2580, %v2584
    %2588 = vrot.lane.b32.xlu0 %v2566, 96
    %v2589 = vpop.permute.xlu0 %2588
    %v2591 = vsel %vm1048, %v2589, %v2577
    %v2592 = vtanh.pop %v2591
    %v2593 = vmul.f32 %v2586, %v2592
    %2594 = vst.msk [vmem:[#allocation3 + $0x10] sm:$0xff] %vm1048, %v2593
    %2595 = vst.msk [vmem:[#allocation3 + $0x30] sm:$0xff] %vm1058, %v2593
    %v2597 = vsel %vm931, %v2593, 0
    %2599 = vmatpush.msra.mxu0 0.0
    %2600 = vmatpush.msra.mxu0 0.0
    %2601 = vmatpush.msra.mxu0 0.0
    %2602 = vmatpush.msra.mxu0 0.0
    %2603 = vmatpush.msra.mxu0 0.0
    %2604 = vmatpush.msra.mxu0 0.0
    %2605 = vmatpush.msra.mxu0 0.0
    %2606 = vmatpush.msra.mxu0 0.0
    %2607 = vmatpush.msra.mxu0 %v2216
    %2608 = vmatpush.msra.mxu0 %v2214
    %2609 = vmatpush.msra.mxu0 %v2212
    %2610 = vmatpush.msra.mxu0 %v2210
    %2611 = vmatpush.msra.mxu0 %v2208
    %2612 = vmatpush.msra.mxu0 %v2206
    %2613 = vmatpush.msra.mxu0 %v2204
    %2614 = vmatpush.msra.mxu0 %v2202
    %2615 = vmatmul.f32.gmra.mxu0 %v2597
    %v2616 = vpop.f32.mrf.mxu0
    %v2617 = vadd.f32 0.0, %v2616
    %2618 = vdwg.mxu0
    %2619 = vmatpush.msra.mxu0 0.0
    %2620 = vmatpush.msra.mxu0 0.0
    %2621 = vmatpush.msra.mxu0 0.0
    %2622 = vmatpush.msra.mxu0 0.0
    %2623 = vmatpush.msra.mxu0 0.0
    %2624 = vmatpush.msra.mxu0 0.0
    %2625 = vmatpush.msra.mxu0 0.0
    %2626 = vmatpush.msra.mxu0 0.0
    %2627 = vmatpush.msra.mxu0 %v2217
    %2628 = vmatpush.msra.mxu0 %v2215
    %2629 = vmatpush.msra.mxu0 %v2213
    %2630 = vmatpush.msra.mxu0 %v2211
    %2631 = vmatpush.msra.mxu0 %v2209
    %2632 = vmatpush.msra.mxu0 %v2207
    %2633 = vmatpush.msra.mxu0 %v2205
    %2634 = vmatpush.msra.mxu0 %v2203
    %2635 = vmatmul.f32.gmra.mxu0 %v2597
    %v2636 = vpop.f32.mrf.mxu0
    %v2637 = vadd.f32 0.0, %v2636
    %2638 = vdwg.mxu0
    %v2639 = vadd.f32 %v2153, %v2617
    %v2640 = vadd.f32 %v2191, %v2637
    %v2641 = vxor.u32 %v2639, 2147483648
    %v2642 = vxor.u32 %v2640, 2147483648
    %v2643 = vmul.f32 %v2641, 1.442695
    %v2644 = vpow.pop %v2643
    %v2645 = vmul.f32 %v2642, 1.442695
    %v2646 = vpow.pop %v2645
    %v2647 = vadd.f32 %v2644, 1.0
    %v2648 = vadd.f32 %v2646, 1.0
    %v2649 = vrcp.pop %v2647
    %v2650 = vmul.f32 %v2647, %v2649
    %v2651 = vsub.f32 1.0, %v2650
    %v2652 = vmul.f32 %v2649, %v2651
    %v2653 = vadd.f32 %v2649, %v2652
    %vm2654 = vweird.f32 %v2647
    %vm2655 = vweird.f32 %v2649
    %vm2656 = vmor %vm2654, %vm2655
    %v2657 = vsel %vm2656, %v2649, %v2653
    %v2658 = vand.u32 2147483647, %v2647
    %vm2659 = vcmp.eq.f32.partialorder %v2658, 8.507059e+37
    %v2660 = vand.u32 %v2647, 2147483648
    %v2661 = vor.u32 1.1754944e-38, %v2660
    %v2662 = vsel %vm2659, %v2661, %v2657
    %v2663 = vmul.f32 1.0, %v2662
    %v2664 = vrcp.pop %v2648
    %v2665 = vmul.f32 %v2648, %v2664
    %v2666 = vsub.f32 1.0, %v2665
    %v2667 = vmul.f32 %v2664, %v2666
    %v2668 = vadd.f32 %v2664, %v2667
    %vm2669 = vweird.f32 %v2648
    %vm2670 = vweird.f32 %v2664
    %vm2671 = vmor %vm2669, %vm2670
    %v2672 = vsel %vm2671, %v2664, %v2668
    %v2673 = vand.u32 2147483647, %v2648
    %vm2674 = vcmp.eq.f32.partialorder %v2673, 8.507059e+37
    %v2675 = vand.u32 %v2648, 2147483648
    %v2676 = vor.u32 1.1754944e-38, %v2675
    %v2677 = vsel %vm2674, %v2676, %v2672
    %v2678 = vmul.f32 1.0, %v2677
    %v2679 = vmul.f32 %v2663, 2.0
    %v2680 = vsub.f32 %v2679, 1.0
    %v2681 = vmul.f32 %v2678, 2.0
    %v2682 = vsub.f32 %v2681, 1.0
    %v2683 = vmul.f32 %v2663, %v2566
    %2685 = vrot.lane.b32.xlu0 %v2680, 32
    %v2686 = vpop.permute.xlu0 %2685
    %v2688 = vmul.f32 %v2663, %v2686
    %2690 = vrot.lane.b32.xlu0 %v2688, 32
    %v2691 = vpop.permute.xlu0 %2690
    %v2693 = vadd.f32 %v2683, %v2691
    %v2694 = vmul.f32 %v2678, %v2577
    %2696 = vrot.lane.b32.xlu0 %v2682, 32
    %v2697 = vpop.permute.xlu0 %2696
    %v2699 = vmul.f32 %v2678, %v2697
    %2701 = vrot.lane.b32.xlu0 %v2699, 32
    %v2702 = vpop.permute.xlu0 %2701
    %v2704 = vadd.f32 %v2694, %v2702
    %2706 = vrot.lane.b32.xlu0 %v2663, 64
    %v2707 = vpop.permute.xlu0 %2706
    %2710 = vrot.lane.b32.xlu0 %v2678, 96
    %v2711 = vpop.permute.xlu0 %2710
    %v2713 = vsel %vm1048, %v2707, %v2711
    %2715 = vrot.lane.b32.xlu0 %v2693, 96
    %v2716 = vpop.permute.xlu0 %2715
    %v2718 = vsel %vm1048, %v2716, %v2704
    %v2719 = vtanh.pop %v2718
    %v2720 = vmul.f32 %v2713, %v2719
    %2721 = vst.msk [vmem:[#allocation3 + $0x18] sm:$0xff] %vm1048, %v2720
    %2722 = vst.msk [vmem:[#allocation3 + $0x28] sm:$0xff] %vm1058, %v2720
    %v2724 = vsel %vm931, %v2720, 0
    %2726 = vmatpush.msra.mxu0 0.0
    %2727 = vmatpush.msra.mxu0 0.0
    %2728 = vmatpush.msra.mxu0 0.0
    %2729 = vmatpush.msra.mxu0 0.0
    %2730 = vmatpush.msra.mxu0 0.0
    %2731 = vmatpush.msra.mxu0 0.0
    %2732 = vmatpush.msra.mxu0 0.0
    %2733 = vmatpush.msra.mxu0 0.0
    %2734 = vmatpush.msra.mxu0 %v2216
    %2735 = vmatpush.msra.mxu0 %v2214
    %2736 = vmatpush.msra.mxu0 %v2212
    %2737 = vmatpush.msra.mxu0 %v2210
    %2738 = vmatpush.msra.mxu0 %v2208
    %2739 = vmatpush.msra.mxu0 %v2206
    %2740 = vmatpush.msra.mxu0 %v2204
    %2741 = vmatpush.msra.mxu0 %v2202
    %2742 = vmatmul.f32.gmra.mxu0 %v2724
    %v2743 = vpop.f32.mrf.mxu0
    %v2744 = vadd.f32 0.0, %v2743
    %2745 = vdwg.mxu0
    %2746 = vmatpush.msra.mxu0 0.0
    %2747 = vmatpush.msra.mxu0 0.0
    %2748 = vmatpush.msra.mxu0 0.0
    %2749 = vmatpush.msra.mxu0 0.0
    %2750 = vmatpush.msra.mxu0 0.0
    %2751 = vmatpush.msra.mxu0 0.0
    %2752 = vmatpush.msra.mxu0 0.0
    %2753 = vmatpush.msra.mxu0 0.0
    %2754 = vmatpush.msra.mxu0 %v2217
    %2755 = vmatpush.msra.mxu0 %v2215
    %2756 = vmatpush.msra.mxu0 %v2213
    %2757 = vmatpush.msra.mxu0 %v2211
    %2758 = vmatpush.msra.mxu0 %v2209
    %2759 = vmatpush.msra.mxu0 %v2207
    %2760 = vmatpush.msra.mxu0 %v2205
    %2761 = vmatpush.msra.mxu0 %v2203
    %2762 = vmatmul.f32.gmra.mxu0 %v2724
    %v2763 = vpop.f32.mrf.mxu0
    %v2764 = vadd.f32 0.0, %v2763
    %2765 = vdwg.mxu0
    %v2766 = vadd.f32 %v2156, %v2744
    %v2767 = vadd.f32 %v2189, %v2764
    %v2768 = vxor.u32 %v2766, 2147483648
    %v2769 = vxor.u32 %v2767, 2147483648
    %v2770 = vmul.f32 %v2768, 1.442695
    %v2771 = vpow.pop %v2770
    %v2772 = vmul.f32 %v2769, 1.442695
    %v2773 = vpow.pop %v2772
    %v2774 = vadd.f32 %v2771, 1.0
    %v2775 = vadd.f32 %v2773, 1.0
    %v2776 = vrcp.pop %v2774
    %v2777 = vmul.f32 %v2774, %v2776
    %v2778 = vsub.f32 1.0, %v2777
    %v2779 = vmul.f32 %v2776, %v2778
    %v2780 = vadd.f32 %v2776, %v2779
    %vm2781 = vweird.f32 %v2774
    %vm2782 = vweird.f32 %v2776
    %vm2783 = vmor %vm2781, %vm2782
    %v2784 = vsel %vm2783, %v2776, %v2780
    %v2785 = vand.u32 2147483647, %v2774
    %vm2786 = vcmp.eq.f32.partialorder %v2785, 8.507059e+37
    %v2787 = vand.u32 %v2774, 2147483648
    %v2788 = vor.u32 1.1754944e-38, %v2787
    %v2789 = vsel %vm2786, %v2788, %v2784
    %v2790 = vmul.f32 1.0, %v2789
    %v2791 = vrcp.pop %v2775
    %v2792 = vmul.f32 %v2775, %v2791
    %v2793 = vsub.f32 1.0, %v2792
    %v2794 = vmul.f32 %v2791, %v2793
    %v2795 = vadd.f32 %v2791, %v2794
    %vm2796 = vweird.f32 %v2775
    %vm2797 = vweird.f32 %v2791
    %vm2798 = vmor %vm2796, %vm2797
    %v2799 = vsel %vm2798, %v2791, %v2795
    %v2800 = vand.u32 2147483647, %v2775
    %vm2801 = vcmp.eq.f32.partialorder %v2800, 8.507059e+37
    %v2802 = vand.u32 %v2775, 2147483648
    %v2803 = vor.u32 1.1754944e-38, %v2802
    %v2804 = vsel %vm2801, %v2803, %v2799
    %v2805 = vmul.f32 1.0, %v2804
    %v2806 = vmul.f32 %v2790, 2.0
    %v2807 = vsub.f32 %v2806, 1.0
    %v2808 = vmul.f32 %v2805, 2.0
    %v2809 = vsub.f32 %v2808, 1.0
    %v2810 = vmul.f32 %v2790, %v2693
    %2812 = vrot.lane.b32.xlu0 %v2807, 32
    %v2813 = vpop.permute.xlu0 %2812
    %v2815 = vmul.f32 %v2790, %v2813
    %2817 = vrot.lane.b32.xlu0 %v2815, 32
    %v2818 = vpop.permute.xlu0 %2817
    %v2820 = vadd.f32 %v2810, %v2818
    %v2821 = vmul.f32 %v2805, %v2704
    %2823 = vrot.lane.b32.xlu0 %v2809, 32
    %v2824 = vpop.permute.xlu0 %2823
    %v2826 = vmul.f32 %v2805, %v2824
    %2828 = vrot.lane.b32.xlu0 %v2826, 32
    %v2829 = vpop.permute.xlu0 %2828
    %v2831 = vadd.f32 %v2821, %v2829
    %2833 = vrot.lane.b32.xlu0 %v2790, 64
    %v2834 = vpop.permute.xlu0 %2833
    %2837 = vrot.lane.b32.xlu0 %v2805, 96
    %v2838 = vpop.permute.xlu0 %2837
    %v2840 = vsel %vm1048, %v2834, %v2838
    %2842 = vrot.lane.b32.xlu0 %v2820, 96
    %v2843 = vpop.permute.xlu0 %2842
    %v2845 = vsel %vm1048, %v2843, %v2831
    %v2846 = vtanh.pop %v2845
    %v2847 = vmul.f32 %v2840, %v2846
    %2848 = vst.msk [vmem:[#allocation3 + $0x20] sm:$0xff] %vm1048, %v2847
    %2849 = vst.msk [vmem:[#allocation3 + $0x20] sm:$0xff] %vm1058, %v2847
    %v2851 = vsel %vm931, %v2847, 0
    %2853 = vmatpush.msra.mxu0 0.0
    %2854 = vmatpush.msra.mxu0 0.0
    %2855 = vmatpush.msra.mxu0 0.0
    %2856 = vmatpush.msra.mxu0 0.0
    %2857 = vmatpush.msra.mxu0 0.0
    %2858 = vmatpush.msra.mxu0 0.0
    %2859 = vmatpush.msra.mxu0 0.0
    %2860 = vmatpush.msra.mxu0 0.0
    %2861 = vmatpush.msra.mxu0 %v2216
    %2862 = vmatpush.msra.mxu0 %v2214
    %2863 = vmatpush.msra.mxu0 %v2212
    %2864 = vmatpush.msra.mxu0 %v2210
    %2865 = vmatpush.msra.mxu0 %v2208
    %2866 = vmatpush.msra.mxu0 %v2206
    %2867 = vmatpush.msra.mxu0 %v2204
    %2868 = vmatpush.msra.mxu0 %v2202
    %2869 = vmatmul.f32.gmra.mxu0 %v2851
    %v2870 = vpop.f32.mrf.mxu0
    %v2871 = vadd.f32 0.0, %v2870
    %2872 = vdwg.mxu0
    %2873 = vmatpush.msra.mxu0 0.0
    %2874 = vmatpush.msra.mxu0 0.0
    %2875 = vmatpush.msra.mxu0 0.0
    %2876 = vmatpush.msra.mxu0 0.0
    %2877 = vmatpush.msra.mxu0 0.0
    %2878 = vmatpush.msra.mxu0 0.0
    %2879 = vmatpush.msra.mxu0 0.0
    %2880 = vmatpush.msra.mxu0 0.0
    %2881 = vmatpush.msra.mxu0 %v2217
    %2882 = vmatpush.msra.mxu0 %v2215
    %2883 = vmatpush.msra.mxu0 %v2213
    %2884 = vmatpush.msra.mxu0 %v2211
    %2885 = vmatpush.msra.mxu0 %v2209
    %2886 = vmatpush.msra.mxu0 %v2207
    %2887 = vmatpush.msra.mxu0 %v2205
    %2888 = vmatpush.msra.mxu0 %v2203
    %2889 = vmatmul.f32.gmra.mxu0 %v2851
    %v2890 = vpop.f32.mrf.mxu0
    %v2891 = vadd.f32 0.0, %v2890
    %2892 = vdwg.mxu0
    %v2893 = vadd.f32 %v2158, %v2871
    %v2894 = vadd.f32 %v2186, %v2891
    %v2895 = vxor.u32 %v2893, 2147483648
    %v2896 = vxor.u32 %v2894, 2147483648
    %v2897 = vmul.f32 %v2895, 1.442695
    %v2898 = vpow.pop %v2897
    %v2899 = vmul.f32 %v2896, 1.442695
    %v2900 = vpow.pop %v2899
    %v2901 = vadd.f32 %v2898, 1.0
    %v2902 = vadd.f32 %v2900, 1.0
    %v2903 = vrcp.pop %v2901
    %v2904 = vmul.f32 %v2901, %v2903
    %v2905 = vsub.f32 1.0, %v2904
    %v2906 = vmul.f32 %v2903, %v2905
    %v2907 = vadd.f32 %v2903, %v2906
    %vm2908 = vweird.f32 %v2901
    %vm2909 = vweird.f32 %v2903
    %vm2910 = vmor %vm2908, %vm2909
    %v2911 = vsel %vm2910, %v2903, %v2907
    %v2912 = vand.u32 2147483647, %v2901
    %vm2913 = vcmp.eq.f32.partialorder %v2912, 8.507059e+37
    %v2914 = vand.u32 %v2901, 2147483648
    %v2915 = vor.u32 1.1754944e-38, %v2914
    %v2916 = vsel %vm2913, %v2915, %v2911
    %v2917 = vmul.f32 1.0, %v2916
    %v2918 = vrcp.pop %v2902
    %v2919 = vmul.f32 %v2902, %v2918
    %v2920 = vsub.f32 1.0, %v2919
    %v2921 = vmul.f32 %v2918, %v2920
    %v2922 = vadd.f32 %v2918, %v2921
    %vm2923 = vweird.f32 %v2902
    %vm2924 = vweird.f32 %v2918
    %vm2925 = vmor %vm2923, %vm2924
    %v2926 = vsel %vm2925, %v2918, %v2922
    %v2927 = vand.u32 2147483647, %v2902
    %vm2928 = vcmp.eq.f32.partialorder %v2927, 8.507059e+37
    %v2929 = vand.u32 %v2902, 2147483648
    %v2930 = vor.u32 1.1754944e-38, %v2929
    %v2931 = vsel %vm2928, %v2930, %v2926
    %v2932 = vmul.f32 1.0, %v2931
    %v2933 = vmul.f32 %v2917, 2.0
    %v2934 = vsub.f32 %v2933, 1.0
    %v2935 = vmul.f32 %v2932, 2.0
    %v2936 = vsub.f32 %v2935, 1.0
    %v2937 = vmul.f32 %v2917, %v2820
    %2939 = vrot.lane.b32.xlu0 %v2934, 32
    %v2940 = vpop.permute.xlu0 %2939
    %v2942 = vmul.f32 %v2917, %v2940
    %2944 = vrot.lane.b32.xlu0 %v2942, 32
    %v2945 = vpop.permute.xlu0 %2944
    %v2947 = vadd.f32 %v2937, %v2945
    %v2948 = vmul.f32 %v2932, %v2831
    %2950 = vrot.lane.b32.xlu0 %v2936, 32
    %v2951 = vpop.permute.xlu0 %2950
    %v2953 = vmul.f32 %v2932, %v2951
    %2955 = vrot.lane.b32.xlu0 %v2953, 32
    %v2956 = vpop.permute.xlu0 %2955
    %v2958 = vadd.f32 %v2948, %v2956
    %2960 = vrot.lane.b32.xlu0 %v2917, 64
    %v2961 = vpop.permute.xlu0 %2960
    %2964 = vrot.lane.b32.xlu0 %v2932, 96
    %v2965 = vpop.permute.xlu0 %2964
    %v2967 = vsel %vm1048, %v2961, %v2965
    %2969 = vrot.lane.b32.xlu0 %v2947, 96
    %v2970 = vpop.permute.xlu0 %2969
    %v2972 = vsel %vm1048, %v2970, %v2958
    %v2973 = vtanh.pop %v2972
    %v2974 = vmul.f32 %v2967, %v2973
    %2975 = vst.msk [vmem:[#allocation3 + $0x28] sm:$0xff] %vm1048, %v2974
    %2976 = vst.msk [vmem:[#allocation3 + $0x18] sm:$0xff] %vm1058, %v2974
    %v2978 = vsel %vm931, %v2974, 0
    %2980 = vmatpush.msra.mxu0 0.0
    %2981 = vmatpush.msra.mxu0 0.0
    %2982 = vmatpush.msra.mxu0 0.0
    %2983 = vmatpush.msra.mxu0 0.0
    %2984 = vmatpush.msra.mxu0 0.0
    %2985 = vmatpush.msra.mxu0 0.0
    %2986 = vmatpush.msra.mxu0 0.0
    %2987 = vmatpush.msra.mxu0 0.0
    %2988 = vmatpush.msra.mxu0 %v2216
    %2989 = vmatpush.msra.mxu0 %v2214
    %2990 = vmatpush.msra.mxu0 %v2212
    %2991 = vmatpush.msra.mxu0 %v2210
    %2992 = vmatpush.msra.mxu0 %v2208
    %2993 = vmatpush.msra.mxu0 %v2206
    %2994 = vmatpush.msra.mxu0 %v2204
    %2995 = vmatpush.msra.mxu0 %v2202
    %2996 = vmatmul.f32.gmra.mxu0 %v2978
    %v2997 = vpop.f32.mrf.mxu0
    %v2998 = vadd.f32 0.0, %v2997
    %2999 = vdwg.mxu0
    %3000 = vmatpush.msra.mxu0 0.0
    %3001 = vmatpush.msra.mxu0 0.0
    %3002 = vmatpush.msra.mxu0 0.0
    %3003 = vmatpush.msra.mxu0 0.0
    %3004 = vmatpush.msra.mxu0 0.0
    %3005 = vmatpush.msra.mxu0 0.0
    %3006 = vmatpush.msra.mxu0 0.0
    %3007 = vmatpush.msra.mxu0 0.0
    %3008 = vmatpush.msra.mxu0 %v2217
    %3009 = vmatpush.msra.mxu0 %v2215
    %3010 = vmatpush.msra.mxu0 %v2213
    %3011 = vmatpush.msra.mxu0 %v2211
    %3012 = vmatpush.msra.mxu0 %v2209
    %3013 = vmatpush.msra.mxu0 %v2207
    %3014 = vmatpush.msra.mxu0 %v2205
    %3015 = vmatpush.msra.mxu0 %v2203
    %3016 = vmatmul.f32.gmra.mxu0 %v2978
    %v3017 = vpop.f32.mrf.mxu0
    %v3018 = vadd.f32 0.0, %v3017
    %3019 = vdwg.mxu0
    %v3020 = vadd.f32 %v2161, %v2998
    %v3021 = vadd.f32 %v2184, %v3018
    %v3022 = vxor.u32 %v3020, 2147483648
    %v3023 = vxor.u32 %v3021, 2147483648
    %v3024 = vmul.f32 %v3022, 1.442695
    %v3025 = vpow.pop %v3024
    %v3026 = vmul.f32 %v3023, 1.442695
    %v3027 = vpow.pop %v3026
    %v3028 = vadd.f32 %v3025, 1.0
    %v3029 = vadd.f32 %v3027, 1.0
    %v3030 = vrcp.pop %v3028
    %v3031 = vmul.f32 %v3028, %v3030
    %v3032 = vsub.f32 1.0, %v3031
    %v3033 = vmul.f32 %v3030, %v3032
    %v3034 = vadd.f32 %v3030, %v3033
    %vm3035 = vweird.f32 %v3028
    %vm3036 = vweird.f32 %v3030
    %vm3037 = vmor %vm3035, %vm3036
    %v3038 = vsel %vm3037, %v3030, %v3034
    %v3039 = vand.u32 2147483647, %v3028
    %vm3040 = vcmp.eq.f32.partialorder %v3039, 8.507059e+37
    %v3041 = vand.u32 %v3028, 2147483648
    %v3042 = vor.u32 1.1754944e-38, %v3041
    %v3043 = vsel %vm3040, %v3042, %v3038
    %v3044 = vmul.f32 1.0, %v3043
    %v3045 = vrcp.pop %v3029
    %v3046 = vmul.f32 %v3029, %v3045
    %v3047 = vsub.f32 1.0, %v3046
    %v3048 = vmul.f32 %v3045, %v3047
    %v3049 = vadd.f32 %v3045, %v3048
    %vm3050 = vweird.f32 %v3029
    %vm3051 = vweird.f32 %v3045
    %vm3052 = vmor %vm3050, %vm3051
    %v3053 = vsel %vm3052, %v3045, %v3049
    %v3054 = vand.u32 2147483647, %v3029
    %vm3055 = vcmp.eq.f32.partialorder %v3054, 8.507059e+37
    %v3056 = vand.u32 %v3029, 2147483648
    %v3057 = vor.u32 1.1754944e-38, %v3056
    %v3058 = vsel %vm3055, %v3057, %v3053
    %v3059 = vmul.f32 1.0, %v3058
    %v3060 = vmul.f32 %v3044, 2.0
    %v3061 = vsub.f32 %v3060, 1.0
    %v3062 = vmul.f32 %v3059, 2.0
    %v3063 = vsub.f32 %v3062, 1.0
    %v3064 = vmul.f32 %v3044, %v2947
    %3066 = vrot.lane.b32.xlu0 %v3061, 32
    %v3067 = vpop.permute.xlu0 %3066
    %v3069 = vmul.f32 %v3044, %v3067
    %3071 = vrot.lane.b32.xlu0 %v3069, 32
    %v3072 = vpop.permute.xlu0 %3071
    %v3074 = vadd.f32 %v3064, %v3072
    %v3075 = vmul.f32 %v3059, %v2958
    %3077 = vrot.lane.b32.xlu0 %v3063, 32
    %v3078 = vpop.permute.xlu0 %3077
    %v3080 = vmul.f32 %v3059, %v3078
    %3082 = vrot.lane.b32.xlu0 %v3080, 32
    %v3083 = vpop.permute.xlu0 %3082
    %v3085 = vadd.f32 %v3075, %v3083
    %3087 = vrot.lane.b32.xlu0 %v3044, 64
    %v3088 = vpop.permute.xlu0 %3087
    %3091 = vrot.lane.b32.xlu0 %v3059, 96
    %v3092 = vpop.permute.xlu0 %3091
    %v3094 = vsel %vm1048, %v3088, %v3092
    %3096 = vrot.lane.b32.xlu0 %v3074, 96
    %v3097 = vpop.permute.xlu0 %3096
    %v3099 = vsel %vm1048, %v3097, %v3085
    %v3100 = vtanh.pop %v3099
    %v3101 = vmul.f32 %v3094, %v3100
    %3102 = vst.msk [vmem:[#allocation3 + $0x30] sm:$0xff] %vm1048, %v3101
    %3103 = vst.msk [vmem:[#allocation3 + $0x10] sm:$0xff] %vm1058, %v3101
    %v3105 = vsel %vm931, %v3101, 0
    %3107 = vmatpush.msra.mxu0 0.0
    %3108 = vmatpush.msra.mxu0 0.0
    %3109 = vmatpush.msra.mxu0 0.0
    %3110 = vmatpush.msra.mxu0 0.0
    %3111 = vmatpush.msra.mxu0 0.0
    %3112 = vmatpush.msra.mxu0 0.0
    %3113 = vmatpush.msra.mxu0 0.0
    %3114 = vmatpush.msra.mxu0 0.0
    %3115 = vmatpush.msra.mxu0 %v2216
    %3116 = vmatpush.msra.mxu0 %v2214
    %3117 = vmatpush.msra.mxu0 %v2212
    %3118 = vmatpush.msra.mxu0 %v2210
    %3119 = vmatpush.msra.mxu0 %v2208
    %3120 = vmatpush.msra.mxu0 %v2206
    %3121 = vmatpush.msra.mxu0 %v2204
    %3122 = vmatpush.msra.mxu0 %v2202
    %3123 = vmatmul.f32.gmra.mxu0 %v3105
    %v3124 = vpop.f32.mrf.mxu0
    %v3125 = vadd.f32 0.0, %v3124
    %3126 = vdwg.mxu0
    %3127 = vmatpush.msra.mxu0 0.0
    %3128 = vmatpush.msra.mxu0 0.0
    %3129 = vmatpush.msra.mxu0 0.0
    %3130 = vmatpush.msra.mxu0 0.0
    %3131 = vmatpush.msra.mxu0 0.0
    %3132 = vmatpush.msra.mxu0 0.0
    %3133 = vmatpush.msra.mxu0 0.0
    %3134 = vmatpush.msra.mxu0 0.0
    %3135 = vmatpush.msra.mxu0 %v2217
    %3136 = vmatpush.msra.mxu0 %v2215
    %3137 = vmatpush.msra.mxu0 %v2213
    %3138 = vmatpush.msra.mxu0 %v2211
    %3139 = vmatpush.msra.mxu0 %v2209
    %3140 = vmatpush.msra.mxu0 %v2207
    %3141 = vmatpush.msra.mxu0 %v2205
    %3142 = vmatpush.msra.mxu0 %v2203
    %3143 = vmatmul.f32.gmra.mxu0 %v3105
    %v3144 = vpop.f32.mrf.mxu0
    %v3145 = vadd.f32 0.0, %v3144
    %3146 = vdwg.mxu0
    %v3147 = vadd.f32 %v2163, %v3125
    %v3148 = vadd.f32 %v2181, %v3145
    %v3149 = vxor.u32 %v3147, 2147483648
    %v3150 = vxor.u32 %v3148, 2147483648
    %v3151 = vmul.f32 %v3149, 1.442695
    %v3152 = vpow.pop %v3151
    %v3153 = vmul.f32 %v3150, 1.442695
    %v3154 = vpow.pop %v3153
    %v3155 = vadd.f32 %v3152, 1.0
    %v3156 = vadd.f32 %v3154, 1.0
    %v3157 = vrcp.pop %v3155
    %v3158 = vmul.f32 %v3155, %v3157
    %v3159 = vsub.f32 1.0, %v3158
    %v3160 = vmul.f32 %v3157, %v3159
    %v3161 = vadd.f32 %v3157, %v3160
    %vm3162 = vweird.f32 %v3155
    %vm3163 = vweird.f32 %v3157
    %vm3164 = vmor %vm3162, %vm3163
    %v3165 = vsel %vm3164, %v3157, %v3161
    %v3166 = vand.u32 2147483647, %v3155
    %vm3167 = vcmp.eq.f32.partialorder %v3166, 8.507059e+37
    %v3168 = vand.u32 %v3155, 2147483648
    %v3169 = vor.u32 1.1754944e-38, %v3168
    %v3170 = vsel %vm3167, %v3169, %v3165
    %v3171 = vmul.f32 1.0, %v3170
    %v3172 = vrcp.pop %v3156
    %v3173 = vmul.f32 %v3156, %v3172
    %v3174 = vsub.f32 1.0, %v3173
    %v3175 = vmul.f32 %v3172, %v3174
    %v3176 = vadd.f32 %v3172, %v3175
    %vm3177 = vweird.f32 %v3156
    %vm3178 = vweird.f32 %v3172
    %vm3179 = vmor %vm3177, %vm3178
    %v3180 = vsel %vm3179, %v3172, %v3176
    %v3181 = vand.u32 2147483647, %v3156
    %vm3182 = vcmp.eq.f32.partialorder %v3181, 8.507059e+37
    %v3183 = vand.u32 %v3156, 2147483648
    %v3184 = vor.u32 1.1754944e-38, %v3183
    %v3185 = vsel %vm3182, %v3184, %v3180
    %v3186 = vmul.f32 1.0, %v3185
    %v3187 = vmul.f32 %v3171, 2.0
    %v3188 = vsub.f32 %v3187, 1.0
    %v3189 = vmul.f32 %v3186, 2.0
    %v3190 = vsub.f32 %v3189, 1.0
    %v3191 = vmul.f32 %v3171, %v3074
    %3193 = vrot.lane.b32.xlu0 %v3188, 32
    %v3194 = vpop.permute.xlu0 %3193
    %v3196 = vmul.f32 %v3171, %v3194
    %3198 = vrot.lane.b32.xlu0 %v3196, 32
    %v3199 = vpop.permute.xlu0 %3198
    %v3201 = vadd.f32 %v3191, %v3199
    %v3202 = vmul.f32 %v3186, %v3085
    %3204 = vrot.lane.b32.xlu0 %v3190, 32
    %v3205 = vpop.permute.xlu0 %3204
    %v3207 = vmul.f32 %v3186, %v3205
    %3209 = vrot.lane.b32.xlu0 %v3207, 32
    %v3210 = vpop.permute.xlu0 %3209
    %v3212 = vadd.f32 %v3202, %v3210
    %3214 = vrot.lane.b32.xlu0 %v3171, 64
    %v3215 = vpop.permute.xlu0 %3214
    %3218 = vrot.lane.b32.xlu0 %v3186, 96
    %v3219 = vpop.permute.xlu0 %3218
    %v3221 = vsel %vm1048, %v3215, %v3219
    %3223 = vrot.lane.b32.xlu0 %v3201, 96
    %v3224 = vpop.permute.xlu0 %3223
    %v3226 = vsel %vm1048, %v3224, %v3212
    %v3227 = vtanh.pop %v3226
    %v3228 = vmul.f32 %v3221, %v3227
    %3229 = vst.msk [vmem:[#allocation3 + $0x38] sm:$0xff] %vm1048, %v3228
    %3230 = vst.msk [vmem:[#allocation3 + $0x8] sm:$0xff] %vm1058, %v3228
    %v3232 = vsel %vm931, %v3228, 0
    %3234 = vmatpush.msra.mxu0 0.0
    %3235 = vmatpush.msra.mxu0 0.0
    %3236 = vmatpush.msra.mxu0 0.0
    %3237 = vmatpush.msra.mxu0 0.0
    %3238 = vmatpush.msra.mxu0 0.0
    %3239 = vmatpush.msra.mxu0 0.0
    %3240 = vmatpush.msra.mxu0 0.0
    %3241 = vmatpush.msra.mxu0 0.0
    %3242 = vmatpush.msra.mxu0 %v2216
    %3243 = vmatpush.msra.mxu0 %v2214
    %3244 = vmatpush.msra.mxu0 %v2212
    %3245 = vmatpush.msra.mxu0 %v2210
    %3246 = vmatpush.msra.mxu0 %v2208
    %3247 = vmatpush.msra.mxu0 %v2206
    %3248 = vmatpush.msra.mxu0 %v2204
    %3249 = vmatpush.msra.mxu0 %v2202
    %3250 = vmatmul.f32.gmra.mxu0 %v3232
    %v3251 = vpop.f32.mrf.mxu0
    %v3252 = vadd.f32 0.0, %v3251
    %3253 = vdwg.mxu0
    %3254 = vmatpush.msra.mxu0 0.0
    %3255 = vmatpush.msra.mxu0 0.0
    %3256 = vmatpush.msra.mxu0 0.0
    %3257 = vmatpush.msra.mxu0 0.0
    %3258 = vmatpush.msra.mxu0 0.0
    %3259 = vmatpush.msra.mxu0 0.0
    %3260 = vmatpush.msra.mxu0 0.0
    %3261 = vmatpush.msra.mxu0 0.0
    %3262 = vmatpush.msra.mxu0 %v2217
    %3263 = vmatpush.msra.mxu0 %v2215
    %3264 = vmatpush.msra.mxu0 %v2213
    %3265 = vmatpush.msra.mxu0 %v2211
    %3266 = vmatpush.msra.mxu0 %v2209
    %3267 = vmatpush.msra.mxu0 %v2207
    %3268 = vmatpush.msra.mxu0 %v2205
    %3269 = vmatpush.msra.mxu0 %v2203
    %3270 = vmatmul.f32.gmra.mxu0 %v3232
    %v3271 = vpop.f32.mrf.mxu0
    %v3272 = vadd.f32 0.0, %v3271
    %3273 = vdwg.mxu0
    %v3274 = vadd.f32 %v2166, %v3252
    %v3275 = vadd.f32 %v2179, %v3272
    %v3276 = vxor.u32 %v3274, 2147483648
    %v3277 = vxor.u32 %v3275, 2147483648
    %v3278 = vmul.f32 %v3276, 1.442695
    %v3279 = vpow.pop %v3278
    %v3280 = vmul.f32 %v3277, 1.442695
    %v3281 = vpow.pop %v3280
    %v3282 = vadd.f32 %v3279, 1.0
    %v3283 = vadd.f32 %v3281, 1.0
    %v3284 = vrcp.pop %v3282
    %v3285 = vmul.f32 %v3282, %v3284
    %v3286 = vsub.f32 1.0, %v3285
    %v3287 = vmul.f32 %v3284, %v3286
    %v3288 = vadd.f32 %v3284, %v3287
    %vm3289 = vweird.f32 %v3282
    %vm3290 = vweird.f32 %v3284
    %vm3291 = vmor %vm3289, %vm3290
    %v3292 = vsel %vm3291, %v3284, %v3288
    %v3293 = vand.u32 2147483647, %v3282
    %vm3294 = vcmp.eq.f32.partialorder %v3293, 8.507059e+37
    %v3295 = vand.u32 %v3282, 2147483648
    %v3296 = vor.u32 1.1754944e-38, %v3295
    %v3297 = vsel %vm3294, %v3296, %v3292
    %v3298 = vmul.f32 1.0, %v3297
    %v3299 = vrcp.pop %v3283
    %v3300 = vmul.f32 %v3283, %v3299
    %v3301 = vsub.f32 1.0, %v3300
    %v3302 = vmul.f32 %v3299, %v3301
    %v3303 = vadd.f32 %v3299, %v3302
    %vm3304 = vweird.f32 %v3283
    %vm3305 = vweird.f32 %v3299
    %vm3306 = vmor %vm3304, %vm3305
    %v3307 = vsel %vm3306, %v3299, %v3303
    %v3308 = vand.u32 2147483647, %v3283
    %vm3309 = vcmp.eq.f32.partialorder %v3308, 8.507059e+37
    %v3310 = vand.u32 %v3283, 2147483648
    %v3311 = vor.u32 1.1754944e-38, %v3310
    %v3312 = vsel %vm3309, %v3311, %v3307
    %v3313 = vmul.f32 1.0, %v3312
    %v3314 = vmul.f32 %v3298, 2.0
    %v3315 = vsub.f32 %v3314, 1.0
    %v3316 = vmul.f32 %v3313, 2.0
    %v3317 = vsub.f32 %v3316, 1.0
    %v3318 = vmul.f32 %v3298, %v3201
    %3320 = vrot.lane.b32.xlu0 %v3315, 32
    %v3321 = vpop.permute.xlu0 %3320
    %v3323 = vmul.f32 %v3298, %v3321
    %3325 = vrot.lane.b32.xlu0 %v3323, 32
    %v3326 = vpop.permute.xlu0 %3325
    %v3328 = vadd.f32 %v3318, %v3326
    %v3329 = vmul.f32 %v3313, %v3212
    %3331 = vrot.lane.b32.xlu0 %v3317, 32
    %v3332 = vpop.permute.xlu0 %3331
    %v3334 = vmul.f32 %v3313, %v3332
    %3336 = vrot.lane.b32.xlu0 %v3334, 32
    %v3337 = vpop.permute.xlu0 %3336
    %v3339 = vadd.f32 %v3329, %v3337
    %3341 = vrot.lane.b32.xlu0 %v3298, 64
    %v3342 = vpop.permute.xlu0 %3341
    %3345 = vrot.lane.b32.xlu0 %v3313, 96
    %v3346 = vpop.permute.xlu0 %3345
    %v3348 = vsel %vm1048, %v3342, %v3346
    %3350 = vrot.lane.b32.xlu0 %v3328, 96
    %v3351 = vpop.permute.xlu0 %3350
    %v3353 = vsel %vm1048, %v3351, %v3339
    %v3354 = vtanh.pop %v3353
    %v3355 = vmul.f32 %v3348, %v3354
    %3356 = vst.msk [vmem:[#allocation3 + $0x40] sm:$0xff] %vm1048, %v3355
    %3357 = vst.msk [vmem:[#allocation3] sm:$0xff] %vm1058, %v3355
    %v3358 = vld [vmem:[#allocation3] sm:$0xff]
    %v3359 = vld [vmem:[#allocation3 + $0x8] sm:$0xff]
    %v3360 = vld [vmem:[#allocation3 + $0x10] sm:$0xff]
    %v3361 = vld [vmem:[#allocation3 + $0x18] sm:$0xff]
    %v3362 = vld [vmem:[#allocation3 + $0x20] sm:$0xff]
    %v3363 = vld [vmem:[#allocation3 + $0x28] sm:$0xff]
    %v3364 = vld [vmem:[#allocation3 + $0x30] sm:$0xff]
    %v3365 = vld [vmem:[#allocation3 + $0x38] sm:$0xff]
    %v3366 = vld [vmem:[#allocation3 + $0x40] sm:$0xff]
    %v3367 = vld [vmem:[#allocation7 + $0x270] sm:$0xff]
    %v3368 = vld [vmem:[#allocation7 + $0x280] sm:$0xff]
    %v3369 = vld [vmem:[#allocation7 + $0x290] sm:$0xff]
    %v3370 = vld [vmem:[#allocation7 + $0x2a0] sm:$0xff]
    %v3371 = vld [vmem:[#allocation7 + $0x2b0] sm:$0xff]
    %v3372 = vld [vmem:[#allocation7 + $0x2c0] sm:$0xff]
    %v3373 = vld [vmem:[#allocation7 + $0x2d0] sm:$0xff]
    %v3374 = vld [vmem:[#allocation7 + $0x2e0] sm:$0xff]
    %v3376 = vsel %vm931, %v3358, 0
    %v3379 = vsel %vm931, %v3359, 0
    %v3382 = vsel %vm931, %v3360, 0
    %v3385 = vsel %vm931, %v3361, 0
    %v3388 = vsel %vm931, %v3362, 0
    %v3391 = vsel %vm931, %v3363, 0
    %v3394 = vsel %vm931, %v3364, 0
    %v3397 = vsel %vm931, %v3365, 0
    %v3400 = vsel %vm931, %v3366, 0
    %3402 = vmatpush.msra.mxu0 0.0
    %3403 = vmatpush.msra.mxu0 0.0
    %3404 = vmatpush.msra.mxu0 0.0
    %3405 = vmatpush.msra.mxu0 0.0
    %3406 = vmatpush.msra.mxu0 0.0
    %3407 = vmatpush.msra.mxu0 0.0
    %3408 = vmatpush.msra.mxu0 0.0
    %3409 = vmatpush.msra.mxu0 0.0
    %3410 = vmatpush.msra.mxu0 %v3374
    %3411 = vmatpush.msra.mxu0 %v3373
    %3412 = vmatpush.msra.mxu0 %v3372
    %3413 = vmatpush.msra.mxu0 %v3371
    %3414 = vmatpush.msra.mxu0 %v3370
    %3415 = vmatpush.msra.mxu0 %v3369
    %3416 = vmatpush.msra.mxu0 %v3368
    %3417 = vmatpush.msra.mxu0 %v3367
    %3418 = vmatmul.f32.gmra.mxu0 %v3376
    %v3419 = vpop.f32.mrf.mxu0
    %v3420 = vadd.f32 0.0, %v3419
    %3421 = vmatmul.f32.gmra.mxu0 %v3379
    %v3422 = vpop.f32.mrf.mxu0
    %v3423 = vadd.f32 0.0, %v3422
    %3424 = vmatmul.f32.gmra.mxu0 %v3382
    %v3425 = vpop.f32.mrf.mxu0
    %v3426 = vadd.f32 0.0, %v3425
    %3427 = vmatmul.f32.gmra.mxu0 %v3385
    %v3428 = vpop.f32.mrf.mxu0
    %v3429 = vadd.f32 0.0, %v3428
    %3430 = vmatmul.f32.gmra.mxu0 %v3388
    %v3431 = vpop.f32.mrf.mxu0
    %v3432 = vadd.f32 0.0, %v3431
    %3433 = vmatmul.f32.gmra.mxu0 %v3391
    %v3434 = vpop.f32.mrf.mxu0
    %v3435 = vadd.f32 0.0, %v3434
    %3436 = vmatmul.f32.gmra.mxu0 %v3394
    %v3437 = vpop.f32.mrf.mxu0
    %v3438 = vadd.f32 0.0, %v3437
    %3439 = vmatmul.f32.gmra.mxu0 %v3397
    %v3440 = vpop.f32.mrf.mxu0
    %v3441 = vadd.f32 0.0, %v3440
    %3442 = vmatmul.f32.gmra.mxu0 %v3400
    %v3443 = vpop.f32.mrf.mxu0
    %v3444 = vadd.f32 0.0, %v3443
    %3445 = vdwg.mxu0
    %3447 = vrot.lane.b32.xlu0 %v3423, 1
    %v3448 = vpop.permute.xlu0 %3447
    %3451 = vrot.lane.b32.xlu0 %v3426, 2
    %v3452 = vpop.permute.xlu0 %3451
    %3455 = vrot.lane.b32.xlu0 %v3429, 3
    %v3456 = vpop.permute.xlu0 %3455
    %3459 = vrot.lane.b32.xlu0 %v3432, 4
    %v3460 = vpop.permute.xlu0 %3459
    %3463 = vrot.lane.b32.xlu0 %v3435, 5
    %v3464 = vpop.permute.xlu0 %3463
    %3467 = vrot.lane.b32.xlu0 %v3438, 6
    %v3468 = vpop.permute.xlu0 %3467
    %3471 = vrot.lane.b32.xlu0 %v3441, 7
    %v3472 = vpop.permute.xlu0 %3471
    %3475 = vrot.lane.b32.xlu0 %v3444, 8
    %v3476 = vpop.permute.xlu0 %3475
    %v3478 = vsel %vm66, %v3420, %v3448
    %v3479 = vsel %vm512, %v3478, %v3452
    %v3480 = vsel %vm121, %v3479, %v3456
    %vm3481 = vcmask 31744
    %v3482 = vsel %vm3481, %v3480, %v3460
    %vm3483 = vcmask 39936
    %v3484 = vsel %vm3483, %v3482, %v3464
    %vm3485 = vcmask 48128
    %v3486 = vsel %vm3485, %v3484, %v3468
    %vm3487 = vcmask 56320
    %v3488 = vsel %vm3487, %v3486, %v3472
    %vm3489 = vcmask 64512
    %v3490 = vsel %vm3489, %v3488, %v3476
    %v3491 = vsel %vm89, %v3490, -inf
    %3492 = vmax.xlane.f32.xlu0 %v3491
    %v3493 = vpop.xlane.xlu0 %3492
    %v3494 = vsub.f32 %v3490, %v3493
    %v3495 = vmul.f32 %v3494, 1.442695
    %v3496 = vpow.pop %v3495
    %v3497 = vsel %vm89, %v3496, 0.0
    %3498 = vadd.xlane.f32.xlu0 %v3497
    %v3499 = vpop.xlane.xlu0 %3498
    %v3500 = vrcp.pop %v3499
    %v3501 = vmul.f32 %v3496, %v3500
    %3503 = vset.pattern.permute.xlu0 0
    %3504 = vperm.xlu0 %3503, %v3501
    %v3505 = vpop.permute.xlu0 %3504
    %v3507 = vmul.f32 %v3505, %v3358
    %v3508 = vadd.f32 %v3507, 0.0
    %3509 = vset.pattern.permute.xlu0 1
    %3510 = vperm.xlu0 %3509, %v3501
    %v3511 = vpop.permute.xlu0 %3510
    %v3513 = vmul.f32 %v3511, %v3359
    %v3514 = vadd.f32 %v3508, %v3513
    %3515 = vset.pattern.permute.xlu0 2
    %3516 = vperm.xlu0 %3515, %v3501
    %v3517 = vpop.permute.xlu0 %3516
    %v3519 = vmul.f32 %v3517, %v3360
    %v3520 = vadd.f32 %v3514, %v3519
    %3521 = vset.pattern.permute.xlu0 3
    %3522 = vperm.xlu0 %3521, %v3501
    %v3523 = vpop.permute.xlu0 %3522
    %v3525 = vmul.f32 %v3523, %v3361
    %v3526 = vadd.f32 %v3520, %v3525
    %3527 = vset.pattern.permute.xlu0 4
    %3528 = vperm.xlu0 %3527, %v3501
    %v3529 = vpop.permute.xlu0 %3528
    %v3531 = vmul.f32 %v3529, %v3362
    %v3532 = vadd.f32 %v3526, %v3531
    %3533 = vset.pattern.permute.xlu0 5
    %3534 = vperm.xlu0 %3533, %v3501
    %v3535 = vpop.permute.xlu0 %3534
    %v3537 = vmul.f32 %v3535, %v3363
    %v3538 = vadd.f32 %v3532, %v3537
    %3539 = vset.pattern.permute.xlu0 6
    %3540 = vperm.xlu0 %3539, %v3501
    %v3541 = vpop.permute.xlu0 %3540
    %v3543 = vmul.f32 %v3541, %v3364
    %v3544 = vadd.f32 %v3538, %v3543
    %3545 = vset.pattern.permute.xlu0 7
    %3546 = vperm.xlu0 %3545, %v3501
    %v3547 = vpop.permute.xlu0 %3546
    %v3549 = vmul.f32 %v3547, %v3365
    %v3550 = vadd.f32 %v3544, %v3549
    %3551 = vset.pattern.permute.xlu0 8
    %3552 = vperm.xlu0 %3551, %v3501
    %v3553 = vpop.permute.xlu0 %3552
    %v3555 = vmul.f32 %v3553, %v3366
    %v3556 = vadd.f32 %v3550, %v3555
    %v3557 = vld [vmem:[#allocation7 + $0x2f0] sm:$0xff]
    %v3558 = vld [vmem:[#allocation9 + $0x12] ss:$0 sm:$0xff]
    %3560 = vrot.lane.b32.xlu0 %v87, 127
    %v3561 = vpop.permute.xlu0 %3560
    %v3562 = vsel %vm3489, %v3561, 0
    %3564 = vmatpush.msra.mxu0 0.0
    %3565 = vmatpush.msra.mxu0 0.0
    %3566 = vmatpush.msra.mxu0 0.0
    %3567 = vmatpush.msra.mxu0 0.0
    %3568 = vmatpush.msra.mxu0 0.0
    %3569 = vmatpush.msra.mxu0 0.0
    %3570 = vmatpush.msra.mxu0 0.0
    %3571 = vmatpush.msra.mxu0 0.0
    %3572 = vmatpush.msra.mxu0 0.0
    %3573 = vmatpush.msra.mxu0 0.0
    %3574 = vmatpush.msra.mxu0 0.0
    %3575 = vmatpush.msra.mxu0 0.0
    %3576 = vmatpush.msra.mxu0 0.0
    %3577 = vmatpush.msra.mxu0 0.0
    %3578 = vmatpush.msra.mxu0 0.0
    %3579 = vmatpush.msra.mxu0 %v3557
    %3580 = vmatmul.f32.gmra.mxu0 %v3562
    %v3581 = vpop.f32.mrf.mxu0
    %v3582 = vadd.f32 %v3558, %v3581
    %3583 = vdwg.mxu0
    %v3584 = vmax.f32 %v3582, 0.0
    %v3585 = vld [vmem:[#allocation7 + $0x300] sm:$0xff]
    %v3586 = vld [vmem:[#allocation7 + $0x310] sm:$0xff]
    %v3587 = vld [vmem:[#allocation7 + $0x320] sm:$0xff]
    %v3588 = vld [vmem:[#allocation7 + $0x330] sm:$0xff]
    %v3589 = vld [vmem:[#allocation9 + $0x13] ss:$0 sm:$0xff]
    %v3591 = vsel %vm1048, %v3584, 0
    %3593 = vmatpush.msra.mxu0 0.0
    %3594 = vmatpush.msra.mxu0 0.0
    %3595 = vmatpush.msra.mxu0 0.0
    %3596 = vmatpush.msra.mxu0 0.0
    %3597 = vmatpush.msra.mxu0 0.0
    %3598 = vmatpush.msra.mxu0 0.0
    %3599 = vmatpush.msra.mxu0 0.0
    %3600 = vmatpush.msra.mxu0 0.0
    %3601 = vmatpush.msra.mxu0 0.0
    %3602 = vmatpush.msra.mxu0 0.0
    %3603 = vmatpush.msra.mxu0 0.0
    %3604 = vmatpush.msra.mxu0 0.0
    %3605 = vmatpush.msra.mxu0 %v3588
    %3606 = vmatpush.msra.mxu0 %v3587
    %3607 = vmatpush.msra.mxu0 %v3586
    %3608 = vmatpush.msra.mxu0 %v3585
    %3609 = vmatmul.f32.gmra.mxu0 %v3591
    %v3610 = vpop.f32.mrf.mxu0
    %v3611 = vadd.f32 %v3589, %v3610
    %3612 = vdwg.mxu0
    %v3613 = vmax.f32 %v3611, 0.0
    %v3614 = vld [vmem:[#allocation7 + $0x340] sm:$0xff]
    %v3615 = vld [vmem:[#allocation7 + $0x350] sm:$0xff]
    %v3616 = vld [vmem:[#allocation7 + $0x360] sm:$0xff]
    %v3617 = vld [vmem:[#allocation7 + $0x370] sm:$0xff]
    %v3618 = vld [vmem:[#allocation7 + $0x380] sm:$0xff]
    %v3619 = vld [vmem:[#allocation7 + $0x390] sm:$0xff]
    %v3620 = vld [vmem:[#allocation7 + $0x3a0] sm:$0xff]
    %v3621 = vld [vmem:[#allocation7 + $0x3b0] sm:$0xff]
    %v3622 = vld [vmem:[#allocation7 + $0x3c0] sm:$0xff]
    %v3623 = vld [vmem:[#allocation7 + $0x3d0] sm:$0xff]
    %v3625 = vsel %vm221, %v3613, 0
    %3627 = vmatpush.msra.mxu0 0.0
    %3628 = vmatpush.msra.mxu0 0.0
    %3629 = vmatpush.msra.mxu0 0.0
    %3630 = vmatpush.msra.mxu0 0.0
    %3631 = vmatpush.msra.mxu0 0.0
    %3632 = vmatpush.msra.mxu0 0.0
    %3633 = vmatpush.msra.mxu0 0.0
    %3634 = vmatpush.msra.mxu0 0.0
    %3635 = vmatpush.msra.mxu0 0.0
    %3636 = vmatpush.msra.mxu0 0.0
    %3637 = vmatpush.msra.mxu0 0.0
    %3638 = vmatpush.msra.mxu0 0.0
    %3639 = vmatpush.msra.mxu0 0.0
    %3640 = vmatpush.msra.mxu0 0.0
    %3641 = vmatpush.msra.mxu0 %v3623
    %3642 = vmatpush.msra.mxu0 %v3622
    %3643 = vmatmul.f32.gmra.mxu0 %v3625
    %v3644 = vpop.f32.mrf.mxu0
    %v3645 = vadd.f32 0.0, %v3644
    %3646 = vdwg.mxu0
    %v3648 = vsel %vm931, %v3556, 0
    %3650 = vmatpush.msra.mxu0 0.0
    %3651 = vmatpush.msra.mxu0 0.0
    %3652 = vmatpush.msra.mxu0 0.0
    %3653 = vmatpush.msra.mxu0 0.0
    %3654 = vmatpush.msra.mxu0 0.0
    %3655 = vmatpush.msra.mxu0 0.0
    %3656 = vmatpush.msra.mxu0 0.0
    %3657 = vmatpush.msra.mxu0 0.0
    %3658 = vmatpush.msra.mxu0 %v3621
    %3659 = vmatpush.msra.mxu0 %v3620
    %3660 = vmatpush.msra.mxu0 %v3619
    %3661 = vmatpush.msra.mxu0 %v3618
    %3662 = vmatpush.msra.mxu0 %v3617
    %3663 = vmatpush.msra.mxu0 %v3616
    %3664 = vmatpush.msra.mxu0 %v3615
    %3665 = vmatpush.msra.mxu0 %v3614
    %3666 = vmatmul.f32.gmra.mxu0 %v3648
    %v3667 = vpop.f32.mrf.mxu0
    %v3668 = vadd.f32 %v3645, %v3667
    %3669 = vdwg.mxu0
    %v3670 = vld [vmem:[#allocation9 + $0x14] ss:$0 sm:$0xff]
    %v3671 = vadd.f32 %v3668, %v3670
    %v3672 = vmax.f32 %v3671, 0.0
    %v3673 = vld [vmem:[#allocation7 + $0x3e0] sm:$0xff]
    %v3674 = vld [vmem:[#allocation7 + $0x3f0] sm:$0xff]
    %v3675 = vld [vmem:[#allocation7 + $0x400] sm:$0xff]
    %v3676 = vld [vmem:[#allocation7 + $0x410] sm:$0xff]
    %v3677 = vld [vmem:[#allocation7 + $0x420] sm:$0xff]
    %v3678 = vld [vmem:[#allocation9 + $0x15] ss:$0 sm:$0xff]
    %vm3679 = vcmask 326656
    %v3681 = vsel %vm3679, %v3672, 0
    %3683 = vmatpush.msra.mxu0 0.0
    %3684 = vmatpush.msra.mxu0 0.0
    %3685 = vmatpush.msra.mxu0 0.0
    %3686 = vmatpush.msra.mxu0 0.0
    %3687 = vmatpush.msra.mxu0 0.0
    %3688 = vmatpush.msra.mxu0 0.0
    %3689 = vmatpush.msra.mxu0 0.0
    %3690 = vmatpush.msra.mxu0 0.0
    %3691 = vmatpush.msra.mxu0 0.0
    %3692 = vmatpush.msra.mxu0 0.0
    %3693 = vmatpush.msra.mxu0 0.0
    %3694 = vmatpush.msra.mxu0 %v3677
    %3695 = vmatpush.msra.mxu0 %v3676
    %3696 = vmatpush.msra.mxu0 %v3675
    %3697 = vmatpush.msra.mxu0 %v3674
    %3698 = vmatpush.msra.mxu0 %v3673
    %3699 = vmatmul.f32.gmra.mxu0 %v3681
    %v3700 = vpop.f32.mrf.mxu0
    %v3701 = vadd.f32 %v3678, %v3700
    %3702 = vdwg.mxu0
    %3703 = vst [vmem:[#allocation10] sm:$0xff] %v3701
    // Predicated region
    $region26: #{tpu_custom_call.1} parent=1 // pred_check
      _
    $region27: #{tpu_custom_call.1} parent=1 // pred_check_branch
      %3705 = sbr.rel (0) target = $region29
    $region28: #{tpu_custom_call.1} parent=1 // pred_region
      %3707 = vsyncadd [#allocation6], 0
      %s3709 = sshll.u32 [#allocation10], 4
      %s3710 = int_to_ptr.vmem [resolvable:$true] %s3709
      %s3711 = sshll.u32 %s3, 4
      %s3712 = int_to_ptr.hbm [resolvable:$true] %s3711
      %3714 = dma.vmem_to_hbm [thread:$0]  %s3710, 128, %s3712, [#allocation6]
    $region29: #{tpu_custom_call.1} parent=1 // pred_fallthru
      _
    // Predicated region
    $region30: #{tpu_custom_call.1} parent=1 // pred_check
      _
    $region31: #{tpu_custom_call.1} parent=1 // pred_check_branch
      %3716 = sbr.rel (0) target = $region33
    $region32: #{tpu_custom_call.1} parent=1 // pred_region
      %3718 = dma.done [#allocation6], 128
    $region33: #{tpu_custom_call.1} parent=1 // pred_fallthru
      _
    %3719 = vsyncpa [#allocation5], 1
    %3720 = vsyncpa [#allocation8], 1
    %3721 = vsyncpa [#allocation6], 1

</llo_original>
